<compile_context>
chip_gen: v6e
topology: v6e:2x2x1
jax: 0.10.0
libtpu: 0.0.40
codegen_flags: <defaults>
</compile_context>

<pallas_src>
import functools

import jax
import jax.numpy as jnp
from jax import lax
from jax.experimental import pallas as pl
from jax.experimental.pallas import tpu as pltpu

INPUT_DIM = 8          # input_dim
EMBED_DIM = 16         # embed_dim
HIDDEN_DIM = 32        # hidden_dim
BATCH = 2
SEQ = 8


# ----------------------------- shared math (traced inside & outside kernel) ---

def _gelu(x):
    # exact (erf-based) GELU, matching torch.nn.GELU() default
    return 0.5 * x * (1.0 + lax.erf(x * 0.7071067811865476))


def _layernorm(x, gamma, beta, eps=1e-5):
    mu = jnp.mean(x, axis=-1, keepdims=True)
    var = jnp.mean(jnp.square(x - mu), axis=-1, keepdims=True)
    return (x - mu) * lax.rsqrt(var + eps) * gamma + beta


def _lstm_direction(xs, w_ih, w_hh, b, hidden, reverse):
    """Reference-only helper. xs: list of T arrays (B, in) -> list of (B, hidden)."""
    T = len(xs)
    B = xs[0].shape[0]
    h = jnp.zeros((B, hidden), jnp.float32)
    c = jnp.zeros((B, hidden), jnp.float32)
    outs = [None] * T
    order = range(T - 1, -1, -1) if reverse else range(T)
    for t in order:
        gates = (jnp.dot(xs[t], w_ih, preferred_element_type=jnp.float32)
                 + jnp.dot(h, w_hh, preferred_element_type=jnp.float32) + b)
        i = jax.nn.sigmoid(gates[:, 0 * hidden:1 * hidden])
        f = jax.nn.sigmoid(gates[:, 1 * hidden:2 * hidden])
        g = jnp.tanh(gates[:, 2 * hidden:3 * hidden])
        o = jax.nn.sigmoid(gates[:, 3 * hidden:4 * hidden])
        c = f * c + i * g
        h = o * jnp.tanh(c)
        outs[t] = h
    return outs


# ----------------------------------------------------------- Pallas kernel ----

def lstm_branch_kernel(x_ref, lstm_ref, head_ref, out_ref,
                       za_ref, zb_ref, oa_ref, ob_ref, *, seq_len, batch):
    T, B = seq_len, batch
    D, H, E = INPUT_DIM, HIDDEN_DIM, EMBED_DIM
    H2 = 2 * H
    f32 = jnp.float32

    # -------- unpack fused LSTM weights (static, 8-aligned row offsets) ------
    r = 0
    w0 = lstm_ref[r:r + 2 * D, :]; r += 2 * D           # (2D, 8H)  folded proj+ih, fwd/bwd
    whh0 = lstm_ref[r:r + H2, :]; r += H2                # (2H, 8H)  block-diag recurrent L0
    w1a = lstm_ref[r:r + H2, :]; r += H2                 # (2H, 8H)  L1 input gates vs ZA
    w1b = lstm_ref[r:r + H2, :]; r += H2                 # (2H, 8H)  L1 input gates vs ZB
    whh1 = lstm_ref[r:r + H2, :]; r += H2                # (2H, 8H)  block-diag recurrent L1
    btile = lstm_ref[r:r + 8, :]                         # row0=b0_cat, row1=b1_cat
    b0 = btile[0:1, :]
    b1 = btile[1:2, :]

    # -------- fused bidirectional recurrence ---------------------------------
    # gin (T*B, 8H) is "aligned": row block s carries fwd input-gates for time s
    # in the fwd lanes and bwd input-gates for time T-1-s in the bwd lanes.
    # Gate lane layout: [i_f i_b | f_f f_b | g_f g_b | o_f o_b], each H wide, so
    # every 2H gate block matches the [fwd | bwd] layout of the fused h/c state.
    def bilstm(gin, whh, ya_ref, yb_ref):
        h = jnp.zeros((B, H2), f32)
        c = jnp.zeros((B, H2), f32)
        for s in range(T):
            g = gin[s * B:(s + 1) * B, :] + jnp.dot(
                h, whh, preferred_element_type=f32)
            ig = jax.nn.sigmoid(g[:, 0 * H2:1 * H2])
            fg = jax.nn.sigmoid(g[:, 1 * H2:2 * H2])
            gg = jnp.tanh(g[:, 2 * H2:3 * H2])
            og = jax.nn.sigmoid(g[:, 3 * H2:4 * H2])
            c = fg * c + ig * gg
            h = og * jnp.tanh(c)
            # h lanes = [h_fwd(time s) | h_bwd(time T-1-s)]
            ya_ref[s * B:(s + 1) * B, :] = h               # time-ordered fwd / reversed bwd
            yb_ref[(T - 1 - s) * B:(T - s) * B, :] = h     # reversed fwd / time-ordered bwd

    x = x_ref[...].astype(f32)                                      # (T*B, 2D)
    # hoisted layer-0 input gates (projection already folded into w0)
    gin0 = jnp.dot(x, w0, preferred_element_type=f32) + b0          # (T*B, 8H)
    bilstm(gin0, whh0, za_ref, zb_ref)

    # hoisted layer-1 input gates from the two layer-0 output buffers
    gin1 = (jnp.dot(za_ref[...], w1a, preferred_element_type=f32)
            + jnp.dot(zb_ref[...], w1b, preferred_element_type=f32) + b1)
    bilstm(gin1, whh1, oa_ref, ob_ref)

    # time-ordered lstm_out[t*B+b] = [h1_fwd[t] | h1_bwd[t]]  (single lane select)
    lane = lax.broadcasted_iota(jnp.int32, (T * B, H2), 1)
    lout = jnp.where(lane < H, oa_ref[...], ob_ref[...])            # (T*B, 2H)

    # -------- unpack head params ----------------------------------------------
    w_ca1 = head_ref[0:H2, :]                                       # (2H, 2H)
    w_fc1 = head_ref[H2:2 * H2, :]                                  # (2H, 2H) cols>=H are 0
    w_fc2 = head_ref[2 * H2:2 * H2 + H, :]                          # (H, 2H)  cols>=E are 0
    vec = head_ref[2 * H2 + H:2 * H2 + H + 16, :]                   # (16, 2H)
    w_ta_row, w_ca2_row = vec[0:1, :], vec[1:2, :]
    b_ca1, g_ca, be_ca = vec[2:3, :], vec[3:4, :], vec[4:5, :]
    b_fc1, g_fc1, be_fc1 = vec[5:6, :H], vec[6:7, :H], vec[7:8, :H]
    b_fc2, g_fc2, be_fc2 = vec[8:9, :E], vec[9:10, :E], vec[10:11, :E]
    b_ta, b_ca2 = vec[11:12, 0:1], vec[11:12, 1:2]

    # -------- time attention: softmax over time, weighted sum -----------------
    logits = jnp.sum(lout * w_ta_row, axis=-1, keepdims=True) + b_ta   # (T*B, 1)
    m = jnp.max(logits, axis=0, keepdims=True)                         # global max (stable)
    e = jnp.exp(logits - m)                                            # (T*B, 1)
    ctx = jnp.zeros((B, H2), f32)
    den = jnp.zeros((B, 1), f32)
    for t in range(T):
        et = e[t * B:(t + 1) * B, :]
        ctx = ctx + lout[t * B:(t + 1) * B, :] * et
        den = den + et
    time_context = ctx * (1.0 / den)                                   # (B, 2H)

    # -------- channel attention ------------------------------------------------
    h1 = _gelu(_layernorm(
        jnp.dot(time_context, w_ca1, preferred_element_type=f32) + b_ca1,
        g_ca, be_ca))
    cw = jax.nn.sigmoid(jnp.sum(h1 * w_ca2_row, axis=-1, keepdims=True) + b_ca2)
    attended = time_context * cw                                       # (B, 2H)

    # -------- feature compression (Dropout = identity in eval) ----------------
    c1 = _gelu(_layernorm(
        jnp.dot(attended, w_fc1, preferred_element_type=f32)[:, :H] + b_fc1,
        g_fc1, be_fc1))
    c2 = _gelu(_layernorm(
        jnp.dot(c1, w_fc2, preferred_element_type=f32)[:, :E] + b_fc2,
        g_fc2, be_fc2))
    out_ref[...] = c2.astype(out_ref.dtype)


# -------------------------------------------------------------- parameters ----

def init_params(key):
    D, H, E = INPUT_DIM, HIDDEN_DIM, EMBED_DIM
    P = 2 * D
    keys = iter(jax.random.split(key, 64))

    def mat(shape, scale):
        return jax.random.normal(next(keys), shape, jnp.float32) * scale

    params = {}
    params["w_proj"] = mat((D, P), 1.0 / (D ** 0.5))
    params["b_proj"] = mat((1, P), 0.02)

    def lstm_dir(in_dim):
        s = 1.0 / (H ** 0.5)
        # (w_ih^T, w_hh^T, b_ih + b_hh) already combined / transposed
        return (mat((in_dim, 4 * H), s), mat((H, 4 * H), s), mat((1, 4 * H), s))

    params["l0f"] = lstm_dir(P)
    params["l0b"] = lstm_dir(P)
    params["l1f"] = lstm_dir(2 * H)
    params["l1b"] = lstm_dir(2 * H)

    params["w_ta"] = mat((2 * H, 1), 1.0 / ((2 * H) ** 0.5))
    params["b_ta"] = mat((1, 1), 0.02)

    params["w_ca1"] = mat((2 * H, 2 * H), 1.0 / ((2 * H) ** 0.5))
    params["b_ca1"] = mat((1, 2 * H), 0.02)
    params["g_ca"] = jnp.ones((1, 2 * H), jnp.float32)
    params["be_ca"] = jnp.zeros((1, 2 * H), jnp.float32)
    params["w_ca2"] = mat((2 * H, 1), 1.0 / ((2 * H) ** 0.5))
    params["b_ca2"] = mat((1, 1), 0.02)

    params["w_fc1"] = mat((2 * H, H), 1.0 / ((2 * H) ** 0.5))
    params["b_fc1"] = mat((1, H), 0.02)
    params["g_fc1"] = jnp.ones((1, H), jnp.float32)
    params["be_fc1"] = jnp.zeros((1, H), jnp.float32)
    params["w_fc2"] = mat((H, E), 1.0 / (H ** 0.5))
    params["b_fc2"] = mat((1, E), 0.02)
    params["g_fc2"] = jnp.ones((1, E), jnp.float32)
    params["be_fc2"] = jnp.zeros((1, E), jnp.float32)
    return params


# ------------------------------------------------- operand fusion / packing ---

def _fuse_gate_cols(wf, wb):
    """(*, 4H) fwd + (*, 4H) bwd -> (*, 8H): per-gate blocks [gate_f | gate_b]."""
    H = HIDDEN_DIM
    parts = []
    for k in range(4):
        parts.append(wf[..., k * H:(k + 1) * H])
        parts.append(wb[..., k * H:(k + 1) * H])
    return jnp.concatenate(parts, axis=-1)


def prepare_operands(time_series, params):
    D, H, E = INPUT_DIM, HIDDEN_DIM, EMBED_DIM
    H2, H4, H8 = 2 * H, 4 * H, 8 * H
    B, T, _ = time_series.shape
    hp = lax.Precision.HIGHEST   # exact one-time weight folding

    # input rows = t*B + b; bwd copy time-reversed so row block s carries
    # [x(t=s) | x(t=T-1-s)] -> layer-0 gate buffer comes out pre-aligned.
    x_tm = jnp.transpose(time_series, (1, 0, 2)).astype(jnp.float32)    # (T, B, D)
    x_fwd = x_tm.reshape(T * B, D)
    x_bwd = jnp.flip(x_tm, axis=0).reshape(T * B, D)
    x_cat = jnp.concatenate([x_fwd, x_bwd], axis=-1)                    # (T*B, 2D)

    wih0f, whh0f, b0f = params["l0f"]
    wih0b, whh0b, b0b = params["l0b"]
    wih1f, whh1f, b1f = params["l1f"]
    wih1b, whh1b, b1b = params["l1b"]
    w_proj, b_proj = params["w_proj"], params["b_proj"]

    # fold input_projection into layer-0 input weights / biases
    w0f = jnp.dot(w_proj, wih0f, precision=hp)            # (D, 4H)
    w0b = jnp.dot(w_proj, wih0b, precision=hp)
    bb0f = jnp.dot(b_proj, wih0f, precision=hp) + b0f     # (1, 4H)
    bb0b = jnp.dot(b_proj, wih0b, precision=hp) + b0b

    zD = jnp.zeros((D, H4), jnp.float32)
    zH = jnp.zeros((H, H4), jnp.float32)

    w0_cat = jnp.concatenate([_fuse_gate_cols(w0f, zD),
                              _fuse_gate_cols(zD, w0b)], axis=0)         # (2D, 8H)
    b0_cat = _fuse_gate_cols(bb0f, bb0b)                                 # (1, 8H)
    whh0_blk = jnp.concatenate([_fuse_gate_cols(whh0f, zH),
                                _fuse_gate_cols(zH, whh0b)], axis=0)     # (2H, 8H)
    whh1_blk = jnp.concatenate([_fuse_gate_cols(whh1f, zH),
                                _fuse_gate_cols(zH, whh1b)], axis=0)
    # layer-1 hoisted input-gate weights against ZA ([hf(t)|hb(T-1-t)]) and
    # ZB ([hf(T-1-t)|hb(t)]) buffers
    w1_a = jnp.concatenate([_fuse_gate_cols(wih1f[:H, :], zH),
                            _fuse_gate_cols(zH, wih1b[H:, :])], axis=0)  # (2H, 8H)
    w1_b = jnp.concatenate([_fuse_gate_cols(zH, wih1b[:H, :]),
                            _fuse_gate_cols(wih1f[H:, :], zH)], axis=0)  # (2H, 8H)
    b1_cat = _fuse_gate_cols(b1f, b1b)                                   # (1, 8H)

    pack_lstm = jnp.concatenate(
        [w0_cat, whh0_blk, w1_a, w1_b, whh1_blk, b0_cat, b1_cat,
         jnp.zeros((6, H8), jnp.float32)], axis=0)                       # (2D+8H+8, 8H)

    def padw(a):
        return jnp.pad(a, ((0, 0), (0, H2 - a.shape[1])))

    vec_rows = jnp.concatenate([
        params["w_ta"].T, params["w_ca2"].T,
        params["b_ca1"], params["g_ca"], params["be_ca"],
        padw(params["b_fc1"]), padw(params["g_fc1"]), padw(params["be_fc1"]),
        padw(params["b_fc2"]), padw(params["g_fc2"]), padw(params["be_fc2"]),
        padw(jnp.concatenate([params["b_ta"], params["b_ca2"]], axis=1)),
        jnp.zeros((4, H2), jnp.float32),
    ], axis=0)                                                           # (16, 2H)

    pack_head = jnp.concatenate([
        params["w_ca1"],                 # rows [0, 2H)
        padw(params["w_fc1"]),           # rows [2H, 4H)
        padw(params["w_fc2"]),           # rows [4H, 5H)
        vec_rows,                        # rows [5H, 5H+16)
    ], axis=0)                                                           # (5H+16, 2H)

    return x_cat, pack_lstm, pack_head


# ------------------------------------------------------------------ wrapper ---

@jax.jit
def lstm_branch_forward(time_series, params):
    """time_series: (B, T, Din) batch-first float32, like the PyTorch module."""
    B, T, _ = time_series.shape
    x_cat, pack_lstm, pack_head = prepare_operands(time_series, params)

    vmem = pl.BlockSpec(memory_space=pltpu.MemorySpace.VMEM)
    out = pl.pallas_call(
        functools.partial(lstm_branch_kernel, seq_len=T, batch=B),
        out_shape=jax.ShapeDtypeStruct((B, EMBED_DIM), jnp.float32),
        in_specs=[vmem, vmem, vmem],
        out_specs=vmem,
        scratch_shapes=[pltpu.VMEM((T * B, 2 * HIDDEN_DIM), jnp.float32)] * 4,
    )(x_cat, pack_lstm, pack_head)
    return out


# ------------------------------------------------------- pure-JAX reference ---

def reference_forward(time_series, params):
    x = jnp.transpose(time_series, (1, 0, 2)).astype(jnp.float32)    # (T, B, Din)
    T, B, Din = x.shape
    H = HIDDEN_DIM
    proj = x.reshape(T * B, Din) @ params["w_proj"] + params["b_proj"]
    xs0 = [proj[t * B:(t + 1) * B] for t in range(T)]
    f0 = _lstm_direction(xs0, *params["l0f"], H, False)
    b0 = _lstm_direction(xs0, *params["l0b"], H, True)
    xs1 = [jnp.concatenate([f0[t], b0[t]], -1) for t in range(T)]
    f1 = _lstm_direction(xs1, *params["l1f"], H, False)
    b1 = _lstm_direction(xs1, *params["l1b"], H, True)
    lstm_out = jnp.stack([jnp.concatenate([f1[t], b1[t]], -1)
                          for t in range(T)], axis=1)                 # (B, T, 2H)
    logits = lstm_out @ params["w_ta"] + params["b_ta"]               # (B, T, 1)
    w = jax.nn.softmax(logits, axis=1)
    time_context = jnp.sum(lstm_out * w, axis=1)                      # (B, 2H)
    h1 = _gelu(_layernorm(time_context @ params["w_ca1"] + params["b_ca1"],
                          params["g_ca"], params["be_ca"]))
    cw = jax.nn.sigmoid(h1 @ params["w_ca2"] + params["b_ca2"])       # (B, 1)
    attended = time_context * cw
    c1 = _gelu(_layernorm(attended @ params["w_fc1"] + params["b_fc1"],
                          params["g_fc1"], params["be_fc1"]))
    c2 = _gelu(_layernorm(c1 @ params["w_fc2"] + params["b_fc2"],
                          params["g_fc2"], params["be_fc2"]))
    return c2


# --------------------------------------------------------------------- main ---

if __name__ == "__main__":
    key = jax.random.PRNGKey(0)
    k_x, k_p = jax.random.split(key)
    x = jax.random.normal(k_x, (BATCH, SEQ, INPUT_DIM), jnp.float32)
    params = init_params(k_p)

    out = lstm_branch_forward(x, params)
    out = jax.block_until_ready(out)

    ref = reference_forward(x, params)
    assert out.shape == (BATCH, EMBED_DIM), out.shape
    assert bool(jnp.all(jnp.isfinite(out)))
    max_err = float(jnp.max(jnp.abs(out - ref)))
    assert max_err < 2e-2, f"max abs err {max_err}"
    print("KERNEL_OK")
</pallas_src>

<mosaic_0001>
module attributes {stable_mosaic.version = 11 : i64} {
  func.func @lstm_branch_kernel(%arg0: memref<16x16xf32, #tpu.memory_space<vmem>>, %arg1: memref<280x256xf32, #tpu.memory_space<vmem>>, %arg2: memref<176x64xf32, #tpu.memory_space<vmem>>, %arg3: memref<2x16xf32, #tpu.memory_space<vmem>>, %arg4: memref<16x64xf32, #tpu.memory_space<vmem>>, %arg5: memref<16x64xf32, #tpu.memory_space<vmem>>, %arg6: memref<16x64xf32, #tpu.memory_space<vmem>>, %arg7: memref<16x64xf32, #tpu.memory_space<vmem>>) attributes {dimension_semantics = [], scalar_prefetch = 0 : i64, scratch_operands = 4 : i64, tpu.core_type = #tpu.core_type<tc>} {
    %c0 = arith.constant 0 : index
    %c0_0 = arith.constant 0 : index
    %0 = vector.load %arg1[%c0, %c0_0] : memref<280x256xf32, #tpu.memory_space<vmem>>, vector<16x256xf32>
    %c16 = arith.constant 16 : index
    %c0_1 = arith.constant 0 : index
    %1 = vector.load %arg1[%c16, %c0_1] : memref<280x256xf32, #tpu.memory_space<vmem>>, vector<64x256xf32>
    %c80 = arith.constant 80 : index
    %c0_2 = arith.constant 0 : index
    %2 = vector.load %arg1[%c80, %c0_2] : memref<280x256xf32, #tpu.memory_space<vmem>>, vector<64x256xf32>
    %c144 = arith.constant 144 : index
    %c0_3 = arith.constant 0 : index
    %3 = vector.load %arg1[%c144, %c0_3] : memref<280x256xf32, #tpu.memory_space<vmem>>, vector<64x256xf32>
    %c208 = arith.constant 208 : index
    %c0_4 = arith.constant 0 : index
    %4 = vector.load %arg1[%c208, %c0_4] : memref<280x256xf32, #tpu.memory_space<vmem>>, vector<64x256xf32>
    %c272 = arith.constant 272 : index
    %c0_5 = arith.constant 0 : index
    %5 = vector.load %arg1[%c272, %c0_5] : memref<280x256xf32, #tpu.memory_space<vmem>>, vector<8x256xf32>
    %6 = vector.extract_strided_slice %5 {offsets = [0, 0], sizes = [1, 256], strides = [1, 1]} : vector<8x256xf32> to vector<1x256xf32>
    %7 = vector.extract_strided_slice %5 {offsets = [1, 0], sizes = [1, 256], strides = [1, 1]} : vector<8x256xf32> to vector<1x256xf32>
    %c0_6 = arith.constant 0 : index
    %c0_7 = arith.constant 0 : index
    %8 = vector.load %arg0[%c0_6, %c0_7] : memref<16x16xf32, #tpu.memory_space<vmem>>, vector<16x16xf32>
    %cst = arith.constant dense<0.000000e+00> : vector<16x256xf32>
    %9 = tpu.matmul %8, %0, %cst {dimension_numbers = #tpu.dot_dimension_numbers<[1], [0], [0], [1], [0, 0, 1, 1], [], []>} : vector<16x16xf32>, vector<16x256xf32>, vector<16x256xf32> -> vector<16x256xf32>
    %10 = vector.broadcast %6 : vector<1x256xf32> to vector<16x256xf32>
    %11 = arith.addf %9, %10 : vector<16x256xf32>
    %cst_8 = arith.constant 0.000000e+00 : f32
    %12 = vector.broadcast %cst_8 : f32 to vector<2x64xf32>
    %cst_9 = arith.constant 0.000000e+00 : f32
    %13 = vector.broadcast %cst_9 : f32 to vector<2x64xf32>
    %14 = vector.extract_strided_slice %11 {offsets = [0, 0], sizes = [2, 256], strides = [1, 1]} : vector<16x256xf32> to vector<2x256xf32>
    %cst_10 = arith.constant dense<0.000000e+00> : vector<2x256xf32>
    %15 = tpu.matmul %12, %1, %cst_10 {dimension_numbers = #tpu.dot_dimension_numbers<[1], [0], [0], [1], [0, 0, 1, 1], [], []>} : vector<2x64xf32>, vector<64x256xf32>, vector<2x256xf32> -> vector<2x256xf32>
    %16 = arith.addf %14, %15 : vector<2x256xf32>
    %17 = vector.extract_strided_slice %16 {offsets = [0, 0], sizes = [2, 64], strides = [1, 1]} : vector<2x256xf32> to vector<2x64xf32>
    %18 = arith.negf %17 : vector<2x64xf32>
    %19 = math.exp %18 : vector<2x64xf32>
    %cst_11 = arith.constant 1.000000e+00 : f32
    %20 = vector.broadcast %cst_11 : f32 to vector<2x64xf32>
    %21 = arith.addf %20, %19 : vector<2x64xf32>
    %22 = arith.divf %20, %21 : vector<2x64xf32>
    %23 = vector.extract_strided_slice %16 {offsets = [0, 64], sizes = [2, 64], strides = [1, 1]} : vector<2x256xf32> to vector<2x64xf32>
    %24 = arith.negf %23 : vector<2x64xf32>
    %25 = math.exp %24 : vector<2x64xf32>
    %cst_12 = arith.constant 1.000000e+00 : f32
    %26 = vector.broadcast %cst_12 : f32 to vector<2x64xf32>
    %27 = arith.addf %26, %25 : vector<2x64xf32>
    %28 = arith.divf %26, %27 : vector<2x64xf32>
    %29 = vector.extract_strided_slice %16 {offsets = [0, 128], sizes = [2, 64], strides = [1, 1]} : vector<2x256xf32> to vector<2x64xf32>
    %30 = math.tanh %29 : vector<2x64xf32>
    %31 = vector.extract_strided_slice %16 {offsets = [0, 192], sizes = [2, 64], strides = [1, 1]} : vector<2x256xf32> to vector<2x64xf32>
    %32 = arith.negf %31 : vector<2x64xf32>
    %33 = math.exp %32 : vector<2x64xf32>
    %cst_13 = arith.constant 1.000000e+00 : f32
    %34 = vector.broadcast %cst_13 : f32 to vector<2x64xf32>
    %35 = arith.addf %34, %33 : vector<2x64xf32>
    %36 = arith.divf %34, %35 : vector<2x64xf32>
    %37 = arith.mulf %28, %13 : vector<2x64xf32>
    %38 = arith.mulf %22, %30 : vector<2x64xf32>
    %39 = arith.addf %37, %38 : vector<2x64xf32>
    %40 = math.tanh %39 : vector<2x64xf32>
    %41 = arith.mulf %36, %40 : vector<2x64xf32>
    %c0_14 = arith.constant 0 : index
    %c0_15 = arith.constant 0 : index
    %42 = vector.load %arg4[%c0_14, %c0_15] : memref<16x64xf32, #tpu.memory_space<vmem>>, vector<2x64xf32>
    tpu.vector_store %arg4[%c0_14, %c0_15], %41 {strides = array<i32>} : memref<16x64xf32, #tpu.memory_space<vmem>>, vector<2x64xf32>,
    %c14 = arith.constant 14 : index
    %c0_16 = arith.constant 0 : index
    %43 = vector.load %arg5[%c14, %c0_16] : memref<16x64xf32, #tpu.memory_space<vmem>>, vector<2x64xf32>
    tpu.vector_store %arg5[%c14, %c0_16], %41 {strides = array<i32>} : memref<16x64xf32, #tpu.memory_space<vmem>>, vector<2x64xf32>,
    %44 = vector.extract_strided_slice %11 {offsets = [2, 0], sizes = [2, 256], strides = [1, 1]} : vector<16x256xf32> to vector<2x256xf32>
    %cst_17 = arith.constant dense<0.000000e+00> : vector<2x256xf32>
    %45 = tpu.matmul %41, %1, %cst_17 {dimension_numbers = #tpu.dot_dimension_numbers<[1], [0], [0], [1], [0, 0, 1, 1], [], []>} : vector<2x64xf32>, vector<64x256xf32>, vector<2x256xf32> -> vector<2x256xf32>
    %46 = arith.addf %44, %45 : vector<2x256xf32>
    %47 = vector.extract_strided_slice %46 {offsets = [0, 0], sizes = [2, 64], strides = [1, 1]} : vector<2x256xf32> to vector<2x64xf32>
    %48 = arith.negf %47 : vector<2x64xf32>
    %49 = math.exp %48 : vector<2x64xf32>
    %cst_18 = arith.constant 1.000000e+00 : f32
    %50 = vector.broadcast %cst_18 : f32 to vector<2x64xf32>
    %51 = arith.addf %50, %49 : vector<2x64xf32>
    %52 = arith.divf %50, %51 : vector<2x64xf32>
    %53 = vector.extract_strided_slice %46 {offsets = [0, 64], sizes = [2, 64], strides = [1, 1]} : vector<2x256xf32> to vector<2x64xf32>
    %54 = arith.negf %53 : vector<2x64xf32>
    %55 = math.exp %54 : vector<2x64xf32>
    %cst_19 = arith.constant 1.000000e+00 : f32
    %56 = vector.broadcast %cst_19 : f32 to vector<2x64xf32>
    %57 = arith.addf %56, %55 : vector<2x64xf32>
    %58 = arith.divf %56, %57 : vector<2x64xf32>
    %59 = vector.extract_strided_slice %46 {offsets = [0, 128], sizes = [2, 64], strides = [1, 1]} : vector<2x256xf32> to vector<2x64xf32>
    %60 = math.tanh %59 : vector<2x64xf32>
    %61 = vector.extract_strided_slice %46 {offsets = [0, 192], sizes = [2, 64], strides = [1, 1]} : vector<2x256xf32> to vector<2x64xf32>
    %62 = arith.negf %61 : vector<2x64xf32>
    %63 = math.exp %62 : vector<2x64xf32>
    %cst_20 = arith.constant 1.000000e+00 : f32
    %64 = vector.broadcast %cst_20 : f32 to vector<2x64xf32>
    %65 = arith.addf %64, %63 : vector<2x64xf32>
    %66 = arith.divf %64, %65 : vector<2x64xf32>
    %67 = arith.mulf %58, %39 : vector<2x64xf32>
    %68 = arith.mulf %52, %60 : vector<2x64xf32>
    %69 = arith.addf %67, %68 : vector<2x64xf32>
    %70 = math.tanh %69 : vector<2x64xf32>
    %71 = arith.mulf %66, %70 : vector<2x64xf32>
    %c2 = arith.constant 2 : index
    %c0_21 = arith.constant 0 : index
    %72 = vector.load %arg4[%c2, %c0_21] : memref<16x64xf32, #tpu.memory_space<vmem>>, vector<2x64xf32>
    tpu.vector_store %arg4[%c2, %c0_21], %71 {strides = array<i32>} : memref<16x64xf32, #tpu.memory_space<vmem>>, vector<2x64xf32>,
    %c12 = arith.constant 12 : index
    %c0_22 = arith.constant 0 : index
    %73 = vector.load %arg5[%c12, %c0_22] : memref<16x64xf32, #tpu.memory_space<vmem>>, vector<2x64xf32>
    tpu.vector_store %arg5[%c12, %c0_22], %71 {strides = array<i32>} : memref<16x64xf32, #tpu.memory_space<vmem>>, vector<2x64xf32>,
    %74 = vector.extract_strided_slice %11 {offsets = [4, 0], sizes = [2, 256], strides = [1, 1]} : vector<16x256xf32> to vector<2x256xf32>
    %cst_23 = arith.constant dense<0.000000e+00> : vector<2x256xf32>
    %75 = tpu.matmul %71, %1, %cst_23 {dimension_numbers = #tpu.dot_dimension_numbers<[1], [0], [0], [1], [0, 0, 1, 1], [], []>} : vector<2x64xf32>, vector<64x256xf32>, vector<2x256xf32> -> vector<2x256xf32>
    %76 = arith.addf %74, %75 : vector<2x256xf32>
    %77 = vector.extract_strided_slice %76 {offsets = [0, 0], sizes = [2, 64], strides = [1, 1]} : vector<2x256xf32> to vector<2x64xf32>
    %78 = arith.negf %77 : vector<2x64xf32>
    %79 = math.exp %78 : vector<2x64xf32>
    %cst_24 = arith.constant 1.000000e+00 : f32
    %80 = vector.broadcast %cst_24 : f32 to vector<2x64xf32>
    %81 = arith.addf %80, %79 : vector<2x64xf32>
    %82 = arith.divf %80, %81 : vector<2x64xf32>
    %83 = vector.extract_strided_slice %76 {offsets = [0, 64], sizes = [2, 64], strides = [1, 1]} : vector<2x256xf32> to vector<2x64xf32>
    %84 = arith.negf %83 : vector<2x64xf32>
    %85 = math.exp %84 : vector<2x64xf32>
    %cst_25 = arith.constant 1.000000e+00 : f32
    %86 = vector.broadcast %cst_25 : f32 to vector<2x64xf32>
    %87 = arith.addf %86, %85 : vector<2x64xf32>
    %88 = arith.divf %86, %87 : vector<2x64xf32>
    %89 = vector.extract_strided_slice %76 {offsets = [0, 128], sizes = [2, 64], strides = [1, 1]} : vector<2x256xf32> to vector<2x64xf32>
    %90 = math.tanh %89 : vector<2x64xf32>
    %91 = vector.extract_strided_slice %76 {offsets = [0, 192], sizes = [2, 64], strides = [1, 1]} : vector<2x256xf32> to vector<2x64xf32>
    %92 = arith.negf %91 : vector<2x64xf32>
    %93 = math.exp %92 : vector<2x64xf32>
    %cst_26 = arith.constant 1.000000e+00 : f32
    %94 = vector.broadcast %cst_26 : f32 to vector<2x64xf32>
    %95 = arith.addf %94, %93 : vector<2x64xf32>
    %96 = arith.divf %94, %95 : vector<2x64xf32>
    %97 = arith.mulf %88, %69 : vector<2x64xf32>
    %98 = arith.mulf %82, %90 : vector<2x64xf32>
    %99 = arith.addf %97, %98 : vector<2x64xf32>
    %100 = math.tanh %99 : vector<2x64xf32>
    %101 = arith.mulf %96, %100 : vector<2x64xf32>
    %c4 = arith.constant 4 : index
    %c0_27 = arith.constant 0 : index
    %102 = vector.load %arg4[%c4, %c0_27] : memref<16x64xf32, #tpu.memory_space<vmem>>, vector<2x64xf32>
    tpu.vector_store %arg4[%c4, %c0_27], %101 {strides = array<i32>} : memref<16x64xf32, #tpu.memory_space<vmem>>, vector<2x64xf32>,
    %c10 = arith.constant 10 : index
    %c0_28 = arith.constant 0 : index
    %103 = vector.load %arg5[%c10, %c0_28] : memref<16x64xf32, #tpu.memory_space<vmem>>, vector<2x64xf32>
    tpu.vector_store %arg5[%c10, %c0_28], %101 {strides = array<i32>} : memref<16x64xf32, #tpu.memory_space<vmem>>, vector<2x64xf32>,
    %104 = vector.extract_strided_slice %11 {offsets = [6, 0], sizes = [2, 256], strides = [1, 1]} : vector<16x256xf32> to vector<2x256xf32>
    %cst_29 = arith.constant dense<0.000000e+00> : vector<2x256xf32>
    %105 = tpu.matmul %101, %1, %cst_29 {dimension_numbers = #tpu.dot_dimension_numbers<[1], [0], [0], [1], [0, 0, 1, 1], [], []>} : vector<2x64xf32>, vector<64x256xf32>, vector<2x256xf32> -> vector<2x256xf32>
    %106 = arith.addf %104, %105 : vector<2x256xf32>
    %107 = vector.extract_strided_slice %106 {offsets = [0, 0], sizes = [2, 64], strides = [1, 1]} : vector<2x256xf32> to vector<2x64xf32>
    %108 = arith.negf %107 : vector<2x64xf32>
    %109 = math.exp %108 : vector<2x64xf32>
    %cst_30 = arith.constant 1.000000e+00 : f32
    %110 = vector.broadcast %cst_30 : f32 to vector<2x64xf32>
    %111 = arith.addf %110, %109 : vector<2x64xf32>
    %112 = arith.divf %110, %111 : vector<2x64xf32>
    %113 = vector.extract_strided_slice %106 {offsets = [0, 64], sizes = [2, 64], strides = [1, 1]} : vector<2x256xf32> to vector<2x64xf32>
    %114 = arith.negf %113 : vector<2x64xf32>
    %115 = math.exp %114 : vector<2x64xf32>
    %cst_31 = arith.constant 1.000000e+00 : f32
    %116 = vector.broadcast %cst_31 : f32 to vector<2x64xf32>
    %117 = arith.addf %116, %115 : vector<2x64xf32>
    %118 = arith.divf %116, %117 : vector<2x64xf32>
    %119 = vector.extract_strided_slice %106 {offsets = [0, 128], sizes = [2, 64], strides = [1, 1]} : vector<2x256xf32> to vector<2x64xf32>
    %120 = math.tanh %119 : vector<2x64xf32>
    %121 = vector.extract_strided_slice %106 {offsets = [0, 192], sizes = [2, 64], strides = [1, 1]} : vector<2x256xf32> to vector<2x64xf32>
    %122 = arith.negf %121 : vector<2x64xf32>
    %123 = math.exp %122 : vector<2x64xf32>
    %cst_32 = arith.constant 1.000000e+00 : f32
    %124 = vector.broadcast %cst_32 : f32 to vector<2x64xf32>
    %125 = arith.addf %124, %123 : vector<2x64xf32>
    %126 = arith.divf %124, %125 : vector<2x64xf32>
    %127 = arith.mulf %118, %99 : vector<2x64xf32>
    %128 = arith.mulf %112, %120 : vector<2x64xf32>
    %129 = arith.addf %127, %128 : vector<2x64xf32>
    %130 = math.tanh %129 : vector<2x64xf32>
    %131 = arith.mulf %126, %130 : vector<2x64xf32>
    %c6 = arith.constant 6 : index
    %c0_33 = arith.constant 0 : index
    %132 = vector.load %arg4[%c6, %c0_33] : memref<16x64xf32, #tpu.memory_space<vmem>>, vector<2x64xf32>
    tpu.vector_store %arg4[%c6, %c0_33], %131 {strides = array<i32>} : memref<16x64xf32, #tpu.memory_space<vmem>>, vector<2x64xf32>,
    %c8 = arith.constant 8 : index
    %c0_34 = arith.constant 0 : index
    %133 = vector.load %arg5[%c8, %c0_34] : memref<16x64xf32, #tpu.memory_space<vmem>>, vector<2x64xf32>
    tpu.vector_store %arg5[%c8, %c0_34], %131 {strides = array<i32>} : memref<16x64xf32, #tpu.memory_space<vmem>>, vector<2x64xf32>,
    %134 = vector.extract_strided_slice %11 {offsets = [8, 0], sizes = [2, 256], strides = [1, 1]} : vector<16x256xf32> to vector<2x256xf32>
    %cst_35 = arith.constant dense<0.000000e+00> : vector<2x256xf32>
    %135 = tpu.matmul %131, %1, %cst_35 {dimension_numbers = #tpu.dot_dimension_numbers<[1], [0], [0], [1], [0, 0, 1, 1], [], []>} : vector<2x64xf32>, vector<64x256xf32>, vector<2x256xf32> -> vector<2x256xf32>
    %136 = arith.addf %134, %135 : vector<2x256xf32>
    %137 = vector.extract_strided_slice %136 {offsets = [0, 0], sizes = [2, 64], strides = [1, 1]} : vector<2x256xf32> to vector<2x64xf32>
    %138 = arith.negf %137 : vector<2x64xf32>
    %139 = math.exp %138 : vector<2x64xf32>
    %cst_36 = arith.constant 1.000000e+00 : f32
    %140 = vector.broadcast %cst_36 : f32 to vector<2x64xf32>
    %141 = arith.addf %140, %139 : vector<2x64xf32>
    %142 = arith.divf %140, %141 : vector<2x64xf32>
    %143 = vector.extract_strided_slice %136 {offsets = [0, 64], sizes = [2, 64], strides = [1, 1]} : vector<2x256xf32> to vector<2x64xf32>
    %144 = arith.negf %143 : vector<2x64xf32>
    %145 = math.exp %144 : vector<2x64xf32>
    %cst_37 = arith.constant 1.000000e+00 : f32
    %146 = vector.broadcast %cst_37 : f32 to vector<2x64xf32>
    %147 = arith.addf %146, %145 : vector<2x64xf32>
    %148 = arith.divf %146, %147 : vector<2x64xf32>
    %149 = vector.extract_strided_slice %136 {offsets = [0, 128], sizes = [2, 64], strides = [1, 1]} : vector<2x256xf32> to vector<2x64xf32>
    %150 = math.tanh %149 : vector<2x64xf32>
    %151 = vector.extract_strided_slice %136 {offsets = [0, 192], sizes = [2, 64], strides = [1, 1]} : vector<2x256xf32> to vector<2x64xf32>
    %152 = arith.negf %151 : vector<2x64xf32>
    %153 = math.exp %152 : vector<2x64xf32>
    %cst_38 = arith.constant 1.000000e+00 : f32
    %154 = vector.broadcast %cst_38 : f32 to vector<2x64xf32>
    %155 = arith.addf %154, %153 : vector<2x64xf32>
    %156 = arith.divf %154, %155 : vector<2x64xf32>
    %157 = arith.mulf %148, %129 : vector<2x64xf32>
    %158 = arith.mulf %142, %150 : vector<2x64xf32>
    %159 = arith.addf %157, %158 : vector<2x64xf32>
    %160 = math.tanh %159 : vector<2x64xf32>
    %161 = arith.mulf %156, %160 : vector<2x64xf32>
    %c8_39 = arith.constant 8 : index
    %c0_40 = arith.constant 0 : index
    %162 = vector.load %arg4[%c8_39, %c0_40] : memref<16x64xf32, #tpu.memory_space<vmem>>, vector<2x64xf32>
    tpu.vector_store %arg4[%c8_39, %c0_40], %161 {strides = array<i32>} : memref<16x64xf32, #tpu.memory_space<vmem>>, vector<2x64xf32>,
    %c6_41 = arith.constant 6 : index
    %c0_42 = arith.constant 0 : index
    %163 = vector.load %arg5[%c6_41, %c0_42] : memref<16x64xf32, #tpu.memory_space<vmem>>, vector<2x64xf32>
    tpu.vector_store %arg5[%c6_41, %c0_42], %161 {strides = array<i32>} : memref<16x64xf32, #tpu.memory_space<vmem>>, vector<2x64xf32>,
    %164 = vector.extract_strided_slice %11 {offsets = [10, 0], sizes = [2, 256], strides = [1, 1]} : vector<16x256xf32> to vector<2x256xf32>
    %cst_43 = arith.constant dense<0.000000e+00> : vector<2x256xf32>
    %165 = tpu.matmul %161, %1, %cst_43 {dimension_numbers = #tpu.dot_dimension_numbers<[1], [0], [0], [1], [0, 0, 1, 1], [], []>} : vector<2x64xf32>, vector<64x256xf32>, vector<2x256xf32> -> vector<2x256xf32>
    %166 = arith.addf %164, %165 : vector<2x256xf32>
    %167 = vector.extract_strided_slice %166 {offsets = [0, 0], sizes = [2, 64], strides = [1, 1]} : vector<2x256xf32> to vector<2x64xf32>
    %168 = arith.negf %167 : vector<2x64xf32>
    %169 = math.exp %168 : vector<2x64xf32>
    %cst_44 = arith.constant 1.000000e+00 : f32
    %170 = vector.broadcast %cst_44 : f32 to vector<2x64xf32>
    %171 = arith.addf %170, %169 : vector<2x64xf32>
    %172 = arith.divf %170, %171 : vector<2x64xf32>
    %173 = vector.extract_strided_slice %166 {offsets = [0, 64], sizes = [2, 64], strides = [1, 1]} : vector<2x256xf32> to vector<2x64xf32>
    %174 = arith.negf %173 : vector<2x64xf32>
    %175 = math.exp %174 : vector<2x64xf32>
    %cst_45 = arith.constant 1.000000e+00 : f32
    %176 = vector.broadcast %cst_45 : f32 to vector<2x64xf32>
    %177 = arith.addf %176, %175 : vector<2x64xf32>
    %178 = arith.divf %176, %177 : vector<2x64xf32>
    %179 = vector.extract_strided_slice %166 {offsets = [0, 128], sizes = [2, 64], strides = [1, 1]} : vector<2x256xf32> to vector<2x64xf32>
    %180 = math.tanh %179 : vector<2x64xf32>
    %181 = vector.extract_strided_slice %166 {offsets = [0, 192], sizes = [2, 64], strides = [1, 1]} : vector<2x256xf32> to vector<2x64xf32>
    %182 = arith.negf %181 : vector<2x64xf32>
    %183 = math.exp %182 : vector<2x64xf32>
    %cst_46 = arith.constant 1.000000e+00 : f32
    %184 = vector.broadcast %cst_46 : f32 to vector<2x64xf32>
    %185 = arith.addf %184, %183 : vector<2x64xf32>
    %186 = arith.divf %184, %185 : vector<2x64xf32>
    %187 = arith.mulf %178, %159 : vector<2x64xf32>
    %188 = arith.mulf %172, %180 : vector<2x64xf32>
    %189 = arith.addf %187, %188 : vector<2x64xf32>
    %190 = math.tanh %189 : vector<2x64xf32>
    %191 = arith.mulf %186, %190 : vector<2x64xf32>
    %c10_47 = arith.constant 10 : index
    %c0_48 = arith.constant 0 : index
    %192 = vector.load %arg4[%c10_47, %c0_48] : memref<16x64xf32, #tpu.memory_space<vmem>>, vector<2x64xf32>
    tpu.vector_store %arg4[%c10_47, %c0_48], %191 {strides = array<i32>} : memref<16x64xf32, #tpu.memory_space<vmem>>, vector<2x64xf32>,
    %c4_49 = arith.constant 4 : index
    %c0_50 = arith.constant 0 : index
    %193 = vector.load %arg5[%c4_49, %c0_50] : memref<16x64xf32, #tpu.memory_space<vmem>>, vector<2x64xf32>
    tpu.vector_store %arg5[%c4_49, %c0_50], %191 {strides = array<i32>} : memref<16x64xf32, #tpu.memory_space<vmem>>, vector<2x64xf32>,
    %194 = vector.extract_strided_slice %11 {offsets = [12, 0], sizes = [2, 256], strides = [1, 1]} : vector<16x256xf32> to vector<2x256xf32>
    %cst_51 = arith.constant dense<0.000000e+00> : vector<2x256xf32>
    %195 = tpu.matmul %191, %1, %cst_51 {dimension_numbers = #tpu.dot_dimension_numbers<[1], [0], [0], [1], [0, 0, 1, 1], [], []>} : vector<2x64xf32>, vector<64x256xf32>, vector<2x256xf32> -> vector<2x256xf32>
    %196 = arith.addf %194, %195 : vector<2x256xf32>
    %197 = vector.extract_strided_slice %196 {offsets = [0, 0], sizes = [2, 64], strides = [1, 1]} : vector<2x256xf32> to vector<2x64xf32>
    %198 = arith.negf %197 : vector<2x64xf32>
    %199 = math.exp %198 : vector<2x64xf32>
    %cst_52 = arith.constant 1.000000e+00 : f32
    %200 = vector.broadcast %cst_52 : f32 to vector<2x64xf32>
    %201 = arith.addf %200, %199 : vector<2x64xf32>
    %202 = arith.divf %200, %201 : vector<2x64xf32>
    %203 = vector.extract_strided_slice %196 {offsets = [0, 64], sizes = [2, 64], strides = [1, 1]} : vector<2x256xf32> to vector<2x64xf32>
    %204 = arith.negf %203 : vector<2x64xf32>
    %205 = math.exp %204 : vector<2x64xf32>
    %cst_53 = arith.constant 1.000000e+00 : f32
    %206 = vector.broadcast %cst_53 : f32 to vector<2x64xf32>
    %207 = arith.addf %206, %205 : vector<2x64xf32>
    %208 = arith.divf %206, %207 : vector<2x64xf32>
    %209 = vector.extract_strided_slice %196 {offsets = [0, 128], sizes = [2, 64], strides = [1, 1]} : vector<2x256xf32> to vector<2x64xf32>
    %210 = math.tanh %209 : vector<2x64xf32>
    %211 = vector.extract_strided_slice %196 {offsets = [0, 192], sizes = [2, 64], strides = [1, 1]} : vector<2x256xf32> to vector<2x64xf32>
    %212 = arith.negf %211 : vector<2x64xf32>
    %213 = math.exp %212 : vector<2x64xf32>
    %cst_54 = arith.constant 1.000000e+00 : f32
    %214 = vector.broadcast %cst_54 : f32 to vector<2x64xf32>
    %215 = arith.addf %214, %213 : vector<2x64xf32>
    %216 = arith.divf %214, %215 : vector<2x64xf32>
    %217 = arith.mulf %208, %189 : vector<2x64xf32>
    %218 = arith.mulf %202, %210 : vector<2x64xf32>
    %219 = arith.addf %217, %218 : vector<2x64xf32>
    %220 = math.tanh %219 : vector<2x64xf32>
    %221 = arith.mulf %216, %220 : vector<2x64xf32>
    %c12_55 = arith.constant 12 : index
    %c0_56 = arith.constant 0 : index
    %222 = vector.load %arg4[%c12_55, %c0_56] : memref<16x64xf32, #tpu.memory_space<vmem>>, vector<2x64xf32>
    tpu.vector_store %arg4[%c12_55, %c0_56], %221 {strides = array<i32>} : memref<16x64xf32, #tpu.memory_space<vmem>>, vector<2x64xf32>,
    %c2_57 = arith.constant 2 : index
    %c0_58 = arith.constant 0 : index
    %223 = vector.load %arg5[%c2_57, %c0_58] : memref<16x64xf32, #tpu.memory_space<vmem>>, vector<2x64xf32>
    tpu.vector_store %arg5[%c2_57, %c0_58], %221 {strides = array<i32>} : memref<16x64xf32, #tpu.memory_space<vmem>>, vector<2x64xf32>,
    %224 = vector.extract_strided_slice %11 {offsets = [14, 0], sizes = [2, 256], strides = [1, 1]} : vector<16x256xf32> to vector<2x256xf32>
    %cst_59 = arith.constant dense<0.000000e+00> : vector<2x256xf32>
    %225 = tpu.matmul %221, %1, %cst_59 {dimension_numbers = #tpu.dot_dimension_numbers<[1], [0], [0], [1], [0, 0, 1, 1], [], []>} : vector<2x64xf32>, vector<64x256xf32>, vector<2x256xf32> -> vector<2x256xf32>
    %226 = arith.addf %224, %225 : vector<2x256xf32>
    %227 = vector.extract_strided_slice %226 {offsets = [0, 0], sizes = [2, 64], strides = [1, 1]} : vector<2x256xf32> to vector<2x64xf32>
    %228 = arith.negf %227 : vector<2x64xf32>
    %229 = math.exp %228 : vector<2x64xf32>
    %cst_60 = arith.constant 1.000000e+00 : f32
    %230 = vector.broadcast %cst_60 : f32 to vector<2x64xf32>
    %231 = arith.addf %230, %229 : vector<2x64xf32>
    %232 = arith.divf %230, %231 : vector<2x64xf32>
    %233 = vector.extract_strided_slice %226 {offsets = [0, 64], sizes = [2, 64], strides = [1, 1]} : vector<2x256xf32> to vector<2x64xf32>
    %234 = arith.negf %233 : vector<2x64xf32>
    %235 = math.exp %234 : vector<2x64xf32>
    %cst_61 = arith.constant 1.000000e+00 : f32
    %236 = vector.broadcast %cst_61 : f32 to vector<2x64xf32>
    %237 = arith.addf %236, %235 : vector<2x64xf32>
    %238 = arith.divf %236, %237 : vector<2x64xf32>
    %239 = vector.extract_strided_slice %226 {offsets = [0, 128], sizes = [2, 64], strides = [1, 1]} : vector<2x256xf32> to vector<2x64xf32>
    %240 = math.tanh %239 : vector<2x64xf32>
    %241 = vector.extract_strided_slice %226 {offsets = [0, 192], sizes = [2, 64], strides = [1, 1]} : vector<2x256xf32> to vector<2x64xf32>
    %242 = arith.negf %241 : vector<2x64xf32>
    %243 = math.exp %242 : vector<2x64xf32>
    %cst_62 = arith.constant 1.000000e+00 : f32
    %244 = vector.broadcast %cst_62 : f32 to vector<2x64xf32>
    %245 = arith.addf %244, %243 : vector<2x64xf32>
    %246 = arith.divf %244, %245 : vector<2x64xf32>
    %247 = arith.mulf %238, %219 : vector<2x64xf32>
    %248 = arith.mulf %232, %240 : vector<2x64xf32>
    %249 = arith.addf %247, %248 : vector<2x64xf32>
    %250 = math.tanh %249 : vector<2x64xf32>
    %251 = arith.mulf %246, %250 : vector<2x64xf32>
    %c14_63 = arith.constant 14 : index
    %c0_64 = arith.constant 0 : index
    %252 = vector.load %arg4[%c14_63, %c0_64] : memref<16x64xf32, #tpu.memory_space<vmem>>, vector<2x64xf32>
    tpu.vector_store %arg4[%c14_63, %c0_64], %251 {strides = array<i32>} : memref<16x64xf32, #tpu.memory_space<vmem>>, vector<2x64xf32>,
    %c0_65 = arith.constant 0 : index
    %c0_66 = arith.constant 0 : index
    %253 = vector.load %arg5[%c0_65, %c0_66] : memref<16x64xf32, #tpu.memory_space<vmem>>, vector<2x64xf32>
    tpu.vector_store %arg5[%c0_65, %c0_66], %251 {strides = array<i32>} : memref<16x64xf32, #tpu.memory_space<vmem>>, vector<2x64xf32>,
    %c0_67 = arith.constant 0 : index
    %c0_68 = arith.constant 0 : index
    %254 = vector.load %arg4[%c0_67, %c0_68] : memref<16x64xf32, #tpu.memory_space<vmem>>, vector<16x64xf32>
    %cst_69 = arith.constant dense<0.000000e+00> : vector<16x256xf32>
    %255 = tpu.matmul %254, %2, %cst_69 {dimension_numbers = #tpu.dot_dimension_numbers<[1], [0], [0], [1], [0, 0, 1, 1], [], []>} : vector<16x64xf32>, vector<64x256xf32>, vector<16x256xf32> -> vector<16x256xf32>
    %c0_70 = arith.constant 0 : index
    %c0_71 = arith.constant 0 : index
    %256 = vector.load %arg5[%c0_70, %c0_71] : memref<16x64xf32, #tpu.memory_space<vmem>>, vector<16x64xf32>
    %cst_72 = arith.constant dense<0.000000e+00> : vector<16x256xf32>
    %257 = tpu.matmul %256, %3, %cst_72 {dimension_numbers = #tpu.dot_dimension_numbers<[1], [0], [0], [1], [0, 0, 1, 1], [], []>} : vector<16x64xf32>, vector<64x256xf32>, vector<16x256xf32> -> vector<16x256xf32>
    %258 = arith.addf %255, %257 : vector<16x256xf32>
    %259 = vector.broadcast %7 : vector<1x256xf32> to vector<16x256xf32>
    %260 = arith.addf %258, %259 : vector<16x256xf32>
    %cst_73 = arith.constant 0.000000e+00 : f32
    %261 = vector.broadcast %cst_73 : f32 to vector<2x64xf32>
    %cst_74 = arith.constant 0.000000e+00 : f32
    %262 = vector.broadcast %cst_74 : f32 to vector<2x64xf32>
    %263 = vector.extract_strided_slice %260 {offsets = [0, 0], sizes = [2, 256], strides = [1, 1]} : vector<16x256xf32> to vector<2x256xf32>
    %cst_75 = arith.constant dense<0.000000e+00> : vector<2x256xf32>
    %264 = tpu.matmul %261, %4, %cst_75 {dimension_numbers = #tpu.dot_dimension_numbers<[1], [0], [0], [1], [0, 0, 1, 1], [], []>} : vector<2x64xf32>, vector<64x256xf32>, vector<2x256xf32> -> vector<2x256xf32>
    %265 = arith.addf %263, %264 : vector<2x256xf32>
    %266 = vector.extract_strided_slice %265 {offsets = [0, 0], sizes = [2, 64], strides = [1, 1]} : vector<2x256xf32> to vector<2x64xf32>
    %267 = arith.negf %266 : vector<2x64xf32>
    %268 = math.exp %267 : vector<2x64xf32>
    %cst_76 = arith.constant 1.000000e+00 : f32
    %269 = vector.broadcast %cst_76 : f32 to vector<2x64xf32>
    %270 = arith.addf %269, %268 : vector<2x64xf32>
    %271 = arith.divf %269, %270 : vector<2x64xf32>
    %272 = vector.extract_strided_slice %265 {offsets = [0, 64], sizes = [2, 64], strides = [1, 1]} : vector<2x256xf32> to vector<2x64xf32>
    %273 = arith.negf %272 : vector<2x64xf32>
    %274 = math.exp %273 : vector<2x64xf32>
    %cst_77 = arith.constant 1.000000e+00 : f32
    %275 = vector.broadcast %cst_77 : f32 to vector<2x64xf32>
    %276 = arith.addf %275, %274 : vector<2x64xf32>
    %277 = arith.divf %275, %276 : vector<2x64xf32>
    %278 = vector.extract_strided_slice %265 {offsets = [0, 128], sizes = [2, 64], strides = [1, 1]} : vector<2x256xf32> to vector<2x64xf32>
    %279 = math.tanh %278 : vector<2x64xf32>
    %280 = vector.extract_strided_slice %265 {offsets = [0, 192], sizes = [2, 64], strides = [1, 1]} : vector<2x256xf32> to vector<2x64xf32>
    %281 = arith.negf %280 : vector<2x64xf32>
    %282 = math.exp %281 : vector<2x64xf32>
    %cst_78 = arith.constant 1.000000e+00 : f32
    %283 = vector.broadcast %cst_78 : f32 to vector<2x64xf32>
    %284 = arith.addf %283, %282 : vector<2x64xf32>
    %285 = arith.divf %283, %284 : vector<2x64xf32>
    %286 = arith.mulf %277, %262 : vector<2x64xf32>
    %287 = arith.mulf %271, %279 : vector<2x64xf32>
    %288 = arith.addf %286, %287 : vector<2x64xf32>
    %289 = math.tanh %288 : vector<2x64xf32>
    %290 = arith.mulf %285, %289 : vector<2x64xf32>
    %c0_79 = arith.constant 0 : index
    %c0_80 = arith.constant 0 : index
    %291 = vector.load %arg6[%c0_79, %c0_80] : memref<16x64xf32, #tpu.memory_space<vmem>>, vector<2x64xf32>
    tpu.vector_store %arg6[%c0_79, %c0_80], %290 {strides = array<i32>} : memref<16x64xf32, #tpu.memory_space<vmem>>, vector<2x64xf32>,
    %c14_81 = arith.constant 14 : index
    %c0_82 = arith.constant 0 : index
    %292 = vector.load %arg7[%c14_81, %c0_82] : memref<16x64xf32, #tpu.memory_space<vmem>>, vector<2x64xf32>
    tpu.vector_store %arg7[%c14_81, %c0_82], %290 {strides = array<i32>} : memref<16x64xf32, #tpu.memory_space<vmem>>, vector<2x64xf32>,
    %293 = vector.extract_strided_slice %260 {offsets = [2, 0], sizes = [2, 256], strides = [1, 1]} : vector<16x256xf32> to vector<2x256xf32>
    %cst_83 = arith.constant dense<0.000000e+00> : vector<2x256xf32>
    %294 = tpu.matmul %290, %4, %cst_83 {dimension_numbers = #tpu.dot_dimension_numbers<[1], [0], [0], [1], [0, 0, 1, 1], [], []>} : vector<2x64xf32>, vector<64x256xf32>, vector<2x256xf32> -> vector<2x256xf32>
    %295 = arith.addf %293, %294 : vector<2x256xf32>
    %296 = vector.extract_strided_slice %295 {offsets = [0, 0], sizes = [2, 64], strides = [1, 1]} : vector<2x256xf32> to vector<2x64xf32>
    %297 = arith.negf %296 : vector<2x64xf32>
    %298 = math.exp %297 : vector<2x64xf32>
    %cst_84 = arith.constant 1.000000e+00 : f32
    %299 = vector.broadcast %cst_84 : f32 to vector<2x64xf32>
    %300 = arith.addf %299, %298 : vector<2x64xf32>
    %301 = arith.divf %299, %300 : vector<2x64xf32>
    %302 = vector.extract_strided_slice %295 {offsets = [0, 64], sizes = [2, 64], strides = [1, 1]} : vector<2x256xf32> to vector<2x64xf32>
    %303 = arith.negf %302 : vector<2x64xf32>
    %304 = math.exp %303 : vector<2x64xf32>
    %cst_85 = arith.constant 1.000000e+00 : f32
    %305 = vector.broadcast %cst_85 : f32 to vector<2x64xf32>
    %306 = arith.addf %305, %304 : vector<2x64xf32>
    %307 = arith.divf %305, %306 : vector<2x64xf32>
    %308 = vector.extract_strided_slice %295 {offsets = [0, 128], sizes = [2, 64], strides = [1, 1]} : vector<2x256xf32> to vector<2x64xf32>
    %309 = math.tanh %308 : vector<2x64xf32>
    %310 = vector.extract_strided_slice %295 {offsets = [0, 192], sizes = [2, 64], strides = [1, 1]} : vector<2x256xf32> to vector<2x64xf32>
    %311 = arith.negf %310 : vector<2x64xf32>
    %312 = math.exp %311 : vector<2x64xf32>
    %cst_86 = arith.constant 1.000000e+00 : f32
    %313 = vector.broadcast %cst_86 : f32 to vector<2x64xf32>
    %314 = arith.addf %313, %312 : vector<2x64xf32>
    %315 = arith.divf %313, %314 : vector<2x64xf32>
    %316 = arith.mulf %307, %288 : vector<2x64xf32>
    %317 = arith.mulf %301, %309 : vector<2x64xf32>
    %318 = arith.addf %316, %317 : vector<2x64xf32>
    %319 = math.tanh %318 : vector<2x64xf32>
    %320 = arith.mulf %315, %319 : vector<2x64xf32>
    %c2_87 = arith.constant 2 : index
    %c0_88 = arith.constant 0 : index
    %321 = vector.load %arg6[%c2_87, %c0_88] : memref<16x64xf32, #tpu.memory_space<vmem>>, vector<2x64xf32>
    tpu.vector_store %arg6[%c2_87, %c0_88], %320 {strides = array<i32>} : memref<16x64xf32, #tpu.memory_space<vmem>>, vector<2x64xf32>,
    %c12_89 = arith.constant 12 : index
    %c0_90 = arith.constant 0 : index
    %322 = vector.load %arg7[%c12_89, %c0_90] : memref<16x64xf32, #tpu.memory_space<vmem>>, vector<2x64xf32>
    tpu.vector_store %arg7[%c12_89, %c0_90], %320 {strides = array<i32>} : memref<16x64xf32, #tpu.memory_space<vmem>>, vector<2x64xf32>,
    %323 = vector.extract_strided_slice %260 {offsets = [4, 0], sizes = [2, 256], strides = [1, 1]} : vector<16x256xf32> to vector<2x256xf32>
    %cst_91 = arith.constant dense<0.000000e+00> : vector<2x256xf32>
    %324 = tpu.matmul %320, %4, %cst_91 {dimension_numbers = #tpu.dot_dimension_numbers<[1], [0], [0], [1], [0, 0, 1, 1], [], []>} : vector<2x64xf32>, vector<64x256xf32>, vector<2x256xf32> -> vector<2x256xf32>
    %325 = arith.addf %323, %324 : vector<2x256xf32>
    %326 = vector.extract_strided_slice %325 {offsets = [0, 0], sizes = [2, 64], strides = [1, 1]} : vector<2x256xf32> to vector<2x64xf32>
    %327 = arith.negf %326 : vector<2x64xf32>
    %328 = math.exp %327 : vector<2x64xf32>
    %cst_92 = arith.constant 1.000000e+00 : f32
    %329 = vector.broadcast %cst_92 : f32 to vector<2x64xf32>
    %330 = arith.addf %329, %328 : vector<2x64xf32>
    %331 = arith.divf %329, %330 : vector<2x64xf32>
    %332 = vector.extract_strided_slice %325 {offsets = [0, 64], sizes = [2, 64], strides = [1, 1]} : vector<2x256xf32> to vector<2x64xf32>
    %333 = arith.negf %332 : vector<2x64xf32>
    %334 = math.exp %333 : vector<2x64xf32>
    %cst_93 = arith.constant 1.000000e+00 : f32
    %335 = vector.broadcast %cst_93 : f32 to vector<2x64xf32>
    %336 = arith.addf %335, %334 : vector<2x64xf32>
    %337 = arith.divf %335, %336 : vector<2x64xf32>
    %338 = vector.extract_strided_slice %325 {offsets = [0, 128], sizes = [2, 64], strides = [1, 1]} : vector<2x256xf32> to vector<2x64xf32>
    %339 = math.tanh %338 : vector<2x64xf32>
    %340 = vector.extract_strided_slice %325 {offsets = [0, 192], sizes = [2, 64], strides = [1, 1]} : vector<2x256xf32> to vector<2x64xf32>
    %341 = arith.negf %340 : vector<2x64xf32>
    %342 = math.exp %341 : vector<2x64xf32>
    %cst_94 = arith.constant 1.000000e+00 : f32
    %343 = vector.broadcast %cst_94 : f32 to vector<2x64xf32>
    %344 = arith.addf %343, %342 : vector<2x64xf32>
    %345 = arith.divf %343, %344 : vector<2x64xf32>
    %346 = arith.mulf %337, %318 : vector<2x64xf32>
    %347 = arith.mulf %331, %339 : vector<2x64xf32>
    %348 = arith.addf %346, %347 : vector<2x64xf32>
    %349 = math.tanh %348 : vector<2x64xf32>
    %350 = arith.mulf %345, %349 : vector<2x64xf32>
    %c4_95 = arith.constant 4 : index
    %c0_96 = arith.constant 0 : index
    %351 = vector.load %arg6[%c4_95, %c0_96] : memref<16x64xf32, #tpu.memory_space<vmem>>, vector<2x64xf32>
    tpu.vector_store %arg6[%c4_95, %c0_96], %350 {strides = array<i32>} : memref<16x64xf32, #tpu.memory_space<vmem>>, vector<2x64xf32>,
    %c10_97 = arith.constant 10 : index
    %c0_98 = arith.constant 0 : index
    %352 = vector.load %arg7[%c10_97, %c0_98] : memref<16x64xf32, #tpu.memory_space<vmem>>, vector<2x64xf32>
    tpu.vector_store %arg7[%c10_97, %c0_98], %350 {strides = array<i32>} : memref<16x64xf32, #tpu.memory_space<vmem>>, vector<2x64xf32>,
    %353 = vector.extract_strided_slice %260 {offsets = [6, 0], sizes = [2, 256], strides = [1, 1]} : vector<16x256xf32> to vector<2x256xf32>
    %cst_99 = arith.constant dense<0.000000e+00> : vector<2x256xf32>
    %354 = tpu.matmul %350, %4, %cst_99 {dimension_numbers = #tpu.dot_dimension_numbers<[1], [0], [0], [1], [0, 0, 1, 1], [], []>} : vector<2x64xf32>, vector<64x256xf32>, vector<2x256xf32> -> vector<2x256xf32>
    %355 = arith.addf %353, %354 : vector<2x256xf32>
    %356 = vector.extract_strided_slice %355 {offsets = [0, 0], sizes = [2, 64], strides = [1, 1]} : vector<2x256xf32> to vector<2x64xf32>
    %357 = arith.negf %356 : vector<2x64xf32>
    %358 = math.exp %357 : vector<2x64xf32>
    %cst_100 = arith.constant 1.000000e+00 : f32
    %359 = vector.broadcast %cst_100 : f32 to vector<2x64xf32>
    %360 = arith.addf %359, %358 : vector<2x64xf32>
    %361 = arith.divf %359, %360 : vector<2x64xf32>
    %362 = vector.extract_strided_slice %355 {offsets = [0, 64], sizes = [2, 64], strides = [1, 1]} : vector<2x256xf32> to vector<2x64xf32>
    %363 = arith.negf %362 : vector<2x64xf32>
    %364 = math.exp %363 : vector<2x64xf32>
    %cst_101 = arith.constant 1.000000e+00 : f32
    %365 = vector.broadcast %cst_101 : f32 to vector<2x64xf32>
    %366 = arith.addf %365, %364 : vector<2x64xf32>
    %367 = arith.divf %365, %366 : vector<2x64xf32>
    %368 = vector.extract_strided_slice %355 {offsets = [0, 128], sizes = [2, 64], strides = [1, 1]} : vector<2x256xf32> to vector<2x64xf32>
    %369 = math.tanh %368 : vector<2x64xf32>
    %370 = vector.extract_strided_slice %355 {offsets = [0, 192], sizes = [2, 64], strides = [1, 1]} : vector<2x256xf32> to vector<2x64xf32>
    %371 = arith.negf %370 : vector<2x64xf32>
    %372 = math.exp %371 : vector<2x64xf32>
    %cst_102 = arith.constant 1.000000e+00 : f32
    %373 = vector.broadcast %cst_102 : f32 to vector<2x64xf32>
    %374 = arith.addf %373, %372 : vector<2x64xf32>
    %375 = arith.divf %373, %374 : vector<2x64xf32>
    %376 = arith.mulf %367, %348 : vector<2x64xf32>
    %377 = arith.mulf %361, %369 : vector<2x64xf32>
    %378 = arith.addf %376, %377 : vector<2x64xf32>
    %379 = math.tanh %378 : vector<2x64xf32>
    %380 = arith.mulf %375, %379 : vector<2x64xf32>
    %c6_103 = arith.constant 6 : index
    %c0_104 = arith.constant 0 : index
    %381 = vector.load %arg6[%c6_103, %c0_104] : memref<16x64xf32, #tpu.memory_space<vmem>>, vector<2x64xf32>
    tpu.vector_store %arg6[%c6_103, %c0_104], %380 {strides = array<i32>} : memref<16x64xf32, #tpu.memory_space<vmem>>, vector<2x64xf32>,
    %c8_105 = arith.constant 8 : index
    %c0_106 = arith.constant 0 : index
    %382 = vector.load %arg7[%c8_105, %c0_106] : memref<16x64xf32, #tpu.memory_space<vmem>>, vector<2x64xf32>
    tpu.vector_store %arg7[%c8_105, %c0_106], %380 {strides = array<i32>} : memref<16x64xf32, #tpu.memory_space<vmem>>, vector<2x64xf32>,
    %383 = vector.extract_strided_slice %260 {offsets = [8, 0], sizes = [2, 256], strides = [1, 1]} : vector<16x256xf32> to vector<2x256xf32>
    %cst_107 = arith.constant dense<0.000000e+00> : vector<2x256xf32>
    %384 = tpu.matmul %380, %4, %cst_107 {dimension_numbers = #tpu.dot_dimension_numbers<[1], [0], [0], [1], [0, 0, 1, 1], [], []>} : vector<2x64xf32>, vector<64x256xf32>, vector<2x256xf32> -> vector<2x256xf32>
    %385 = arith.addf %383, %384 : vector<2x256xf32>
    %386 = vector.extract_strided_slice %385 {offsets = [0, 0], sizes = [2, 64], strides = [1, 1]} : vector<2x256xf32> to vector<2x64xf32>
    %387 = arith.negf %386 : vector<2x64xf32>
    %388 = math.exp %387 : vector<2x64xf32>
    %cst_108 = arith.constant 1.000000e+00 : f32
    %389 = vector.broadcast %cst_108 : f32 to vector<2x64xf32>
    %390 = arith.addf %389, %388 : vector<2x64xf32>
    %391 = arith.divf %389, %390 : vector<2x64xf32>
    %392 = vector.extract_strided_slice %385 {offsets = [0, 64], sizes = [2, 64], strides = [1, 1]} : vector<2x256xf32> to vector<2x64xf32>
    %393 = arith.negf %392 : vector<2x64xf32>
    %394 = math.exp %393 : vector<2x64xf32>
    %cst_109 = arith.constant 1.000000e+00 : f32
    %395 = vector.broadcast %cst_109 : f32 to vector<2x64xf32>
    %396 = arith.addf %395, %394 : vector<2x64xf32>
    %397 = arith.divf %395, %396 : vector<2x64xf32>
    %398 = vector.extract_strided_slice %385 {offsets = [0, 128], sizes = [2, 64], strides = [1, 1]} : vector<2x256xf32> to vector<2x64xf32>
    %399 = math.tanh %398 : vector<2x64xf32>
    %400 = vector.extract_strided_slice %385 {offsets = [0, 192], sizes = [2, 64], strides = [1, 1]} : vector<2x256xf32> to vector<2x64xf32>
    %401 = arith.negf %400 : vector<2x64xf32>
    %402 = math.exp %401 : vector<2x64xf32>
    %cst_110 = arith.constant 1.000000e+00 : f32
    %403 = vector.broadcast %cst_110 : f32 to vector<2x64xf32>
    %404 = arith.addf %403, %402 : vector<2x64xf32>
    %405 = arith.divf %403, %404 : vector<2x64xf32>
    %406 = arith.mulf %397, %378 : vector<2x64xf32>
    %407 = arith.mulf %391, %399 : vector<2x64xf32>
    %408 = arith.addf %406, %407 : vector<2x64xf32>
    %409 = math.tanh %408 : vector<2x64xf32>
    %410 = arith.mulf %405, %409 : vector<2x64xf32>
    %c8_111 = arith.constant 8 : index
    %c0_112 = arith.constant 0 : index
    %411 = vector.load %arg6[%c8_111, %c0_112] : memref<16x64xf32, #tpu.memory_space<vmem>>, vector<2x64xf32>
    tpu.vector_store %arg6[%c8_111, %c0_112], %410 {strides = array<i32>} : memref<16x64xf32, #tpu.memory_space<vmem>>, vector<2x64xf32>,
    %c6_113 = arith.constant 6 : index
    %c0_114 = arith.constant 0 : index
    %412 = vector.load %arg7[%c6_113, %c0_114] : memref<16x64xf32, #tpu.memory_space<vmem>>, vector<2x64xf32>
    tpu.vector_store %arg7[%c6_113, %c0_114], %410 {strides = array<i32>} : memref<16x64xf32, #tpu.memory_space<vmem>>, vector<2x64xf32>,
    %413 = vector.extract_strided_slice %260 {offsets = [10, 0], sizes = [2, 256], strides = [1, 1]} : vector<16x256xf32> to vector<2x256xf32>
    %cst_115 = arith.constant dense<0.000000e+00> : vector<2x256xf32>
    %414 = tpu.matmul %410, %4, %cst_115 {dimension_numbers = #tpu.dot_dimension_numbers<[1], [0], [0], [1], [0, 0, 1, 1], [], []>} : vector<2x64xf32>, vector<64x256xf32>, vector<2x256xf32> -> vector<2x256xf32>
    %415 = arith.addf %413, %414 : vector<2x256xf32>
    %416 = vector.extract_strided_slice %415 {offsets = [0, 0], sizes = [2, 64], strides = [1, 1]} : vector<2x256xf32> to vector<2x64xf32>
    %417 = arith.negf %416 : vector<2x64xf32>
    %418 = math.exp %417 : vector<2x64xf32>
    %cst_116 = arith.constant 1.000000e+00 : f32
    %419 = vector.broadcast %cst_116 : f32 to vector<2x64xf32>
    %420 = arith.addf %419, %418 : vector<2x64xf32>
    %421 = arith.divf %419, %420 : vector<2x64xf32>
    %422 = vector.extract_strided_slice %415 {offsets = [0, 64], sizes = [2, 64], strides = [1, 1]} : vector<2x256xf32> to vector<2x64xf32>
    %423 = arith.negf %422 : vector<2x64xf32>
    %424 = math.exp %423 : vector<2x64xf32>
    %cst_117 = arith.constant 1.000000e+00 : f32
    %425 = vector.broadcast %cst_117 : f32 to vector<2x64xf32>
    %426 = arith.addf %425, %424 : vector<2x64xf32>
    %427 = arith.divf %425, %426 : vector<2x64xf32>
    %428 = vector.extract_strided_slice %415 {offsets = [0, 128], sizes = [2, 64], strides = [1, 1]} : vector<2x256xf32> to vector<2x64xf32>
    %429 = math.tanh %428 : vector<2x64xf32>
    %430 = vector.extract_strided_slice %415 {offsets = [0, 192], sizes = [2, 64], strides = [1, 1]} : vector<2x256xf32> to vector<2x64xf32>
    %431 = arith.negf %430 : vector<2x64xf32>
    %432 = math.exp %431 : vector<2x64xf32>
    %cst_118 = arith.constant 1.000000e+00 : f32
    %433 = vector.broadcast %cst_118 : f32 to vector<2x64xf32>
    %434 = arith.addf %433, %432 : vector<2x64xf32>
    %435 = arith.divf %433, %434 : vector<2x64xf32>
    %436 = arith.mulf %427, %408 : vector<2x64xf32>
    %437 = arith.mulf %421, %429 : vector<2x64xf32>
    %438 = arith.addf %436, %437 : vector<2x64xf32>
    %439 = math.tanh %438 : vector<2x64xf32>
    %440 = arith.mulf %435, %439 : vector<2x64xf32>
    %c10_119 = arith.constant 10 : index
    %c0_120 = arith.constant 0 : index
    %441 = vector.load %arg6[%c10_119, %c0_120] : memref<16x64xf32, #tpu.memory_space<vmem>>, vector<2x64xf32>
    tpu.vector_store %arg6[%c10_119, %c0_120], %440 {strides = array<i32>} : memref<16x64xf32, #tpu.memory_space<vmem>>, vector<2x64xf32>,
    %c4_121 = arith.constant 4 : index
    %c0_122 = arith.constant 0 : index
    %442 = vector.load %arg7[%c4_121, %c0_122] : memref<16x64xf32, #tpu.memory_space<vmem>>, vector<2x64xf32>
    tpu.vector_store %arg7[%c4_121, %c0_122], %440 {strides = array<i32>} : memref<16x64xf32, #tpu.memory_space<vmem>>, vector<2x64xf32>,
    %443 = vector.extract_strided_slice %260 {offsets = [12, 0], sizes = [2, 256], strides = [1, 1]} : vector<16x256xf32> to vector<2x256xf32>
    %cst_123 = arith.constant dense<0.000000e+00> : vector<2x256xf32>
    %444 = tpu.matmul %440, %4, %cst_123 {dimension_numbers = #tpu.dot_dimension_numbers<[1], [0], [0], [1], [0, 0, 1, 1], [], []>} : vector<2x64xf32>, vector<64x256xf32>, vector<2x256xf32> -> vector<2x256xf32>
    %445 = arith.addf %443, %444 : vector<2x256xf32>
    %446 = vector.extract_strided_slice %445 {offsets = [0, 0], sizes = [2, 64], strides = [1, 1]} : vector<2x256xf32> to vector<2x64xf32>
    %447 = arith.negf %446 : vector<2x64xf32>
    %448 = math.exp %447 : vector<2x64xf32>
    %cst_124 = arith.constant 1.000000e+00 : f32
    %449 = vector.broadcast %cst_124 : f32 to vector<2x64xf32>
    %450 = arith.addf %449, %448 : vector<2x64xf32>
    %451 = arith.divf %449, %450 : vector<2x64xf32>
    %452 = vector.extract_strided_slice %445 {offsets = [0, 64], sizes = [2, 64], strides = [1, 1]} : vector<2x256xf32> to vector<2x64xf32>
    %453 = arith.negf %452 : vector<2x64xf32>
    %454 = math.exp %453 : vector<2x64xf32>
    %cst_125 = arith.constant 1.000000e+00 : f32
    %455 = vector.broadcast %cst_125 : f32 to vector<2x64xf32>
    %456 = arith.addf %455, %454 : vector<2x64xf32>
    %457 = arith.divf %455, %456 : vector<2x64xf32>
    %458 = vector.extract_strided_slice %445 {offsets = [0, 128], sizes = [2, 64], strides = [1, 1]} : vector<2x256xf32> to vector<2x64xf32>
    %459 = math.tanh %458 : vector<2x64xf32>
    %460 = vector.extract_strided_slice %445 {offsets = [0, 192], sizes = [2, 64], strides = [1, 1]} : vector<2x256xf32> to vector<2x64xf32>
    %461 = arith.negf %460 : vector<2x64xf32>
    %462 = math.exp %461 : vector<2x64xf32>
    %cst_126 = arith.constant 1.000000e+00 : f32
    %463 = vector.broadcast %cst_126 : f32 to vector<2x64xf32>
    %464 = arith.addf %463, %462 : vector<2x64xf32>
    %465 = arith.divf %463, %464 : vector<2x64xf32>
    %466 = arith.mulf %457, %438 : vector<2x64xf32>
    %467 = arith.mulf %451, %459 : vector<2x64xf32>
    %468 = arith.addf %466, %467 : vector<2x64xf32>
    %469 = math.tanh %468 : vector<2x64xf32>
    %470 = arith.mulf %465, %469 : vector<2x64xf32>
    %c12_127 = arith.constant 12 : index
    %c0_128 = arith.constant 0 : index
    %471 = vector.load %arg6[%c12_127, %c0_128] : memref<16x64xf32, #tpu.memory_space<vmem>>, vector<2x64xf32>
    tpu.vector_store %arg6[%c12_127, %c0_128], %470 {strides = array<i32>} : memref<16x64xf32, #tpu.memory_space<vmem>>, vector<2x64xf32>,
    %c2_129 = arith.constant 2 : index
    %c0_130 = arith.constant 0 : index
    %472 = vector.load %arg7[%c2_129, %c0_130] : memref<16x64xf32, #tpu.memory_space<vmem>>, vector<2x64xf32>
    tpu.vector_store %arg7[%c2_129, %c0_130], %470 {strides = array<i32>} : memref<16x64xf32, #tpu.memory_space<vmem>>, vector<2x64xf32>,
    %473 = vector.extract_strided_slice %260 {offsets = [14, 0], sizes = [2, 256], strides = [1, 1]} : vector<16x256xf32> to vector<2x256xf32>
    %cst_131 = arith.constant dense<0.000000e+00> : vector<2x256xf32>
    %474 = tpu.matmul %470, %4, %cst_131 {dimension_numbers = #tpu.dot_dimension_numbers<[1], [0], [0], [1], [0, 0, 1, 1], [], []>} : vector<2x64xf32>, vector<64x256xf32>, vector<2x256xf32> -> vector<2x256xf32>
    %475 = arith.addf %473, %474 : vector<2x256xf32>
    %476 = vector.extract_strided_slice %475 {offsets = [0, 0], sizes = [2, 64], strides = [1, 1]} : vector<2x256xf32> to vector<2x64xf32>
    %477 = arith.negf %476 : vector<2x64xf32>
    %478 = math.exp %477 : vector<2x64xf32>
    %cst_132 = arith.constant 1.000000e+00 : f32
    %479 = vector.broadcast %cst_132 : f32 to vector<2x64xf32>
    %480 = arith.addf %479, %478 : vector<2x64xf32>
    %481 = arith.divf %479, %480 : vector<2x64xf32>
    %482 = vector.extract_strided_slice %475 {offsets = [0, 64], sizes = [2, 64], strides = [1, 1]} : vector<2x256xf32> to vector<2x64xf32>
    %483 = arith.negf %482 : vector<2x64xf32>
    %484 = math.exp %483 : vector<2x64xf32>
    %cst_133 = arith.constant 1.000000e+00 : f32
    %485 = vector.broadcast %cst_133 : f32 to vector<2x64xf32>
    %486 = arith.addf %485, %484 : vector<2x64xf32>
    %487 = arith.divf %485, %486 : vector<2x64xf32>
    %488 = vector.extract_strided_slice %475 {offsets = [0, 128], sizes = [2, 64], strides = [1, 1]} : vector<2x256xf32> to vector<2x64xf32>
    %489 = math.tanh %488 : vector<2x64xf32>
    %490 = vector.extract_strided_slice %475 {offsets = [0, 192], sizes = [2, 64], strides = [1, 1]} : vector<2x256xf32> to vector<2x64xf32>
    %491 = arith.negf %490 : vector<2x64xf32>
    %492 = math.exp %491 : vector<2x64xf32>
    %cst_134 = arith.constant 1.000000e+00 : f32
    %493 = vector.broadcast %cst_134 : f32 to vector<2x64xf32>
    %494 = arith.addf %493, %492 : vector<2x64xf32>
    %495 = arith.divf %493, %494 : vector<2x64xf32>
    %496 = arith.mulf %487, %468 : vector<2x64xf32>
    %497 = arith.mulf %481, %489 : vector<2x64xf32>
    %498 = arith.addf %496, %497 : vector<2x64xf32>
    %499 = math.tanh %498 : vector<2x64xf32>
    %500 = arith.mulf %495, %499 : vector<2x64xf32>
    %c14_135 = arith.constant 14 : index
    %c0_136 = arith.constant 0 : index
    %501 = vector.load %arg6[%c14_135, %c0_136] : memref<16x64xf32, #tpu.memory_space<vmem>>, vector<2x64xf32>
    tpu.vector_store %arg6[%c14_135, %c0_136], %500 {strides = array<i32>} : memref<16x64xf32, #tpu.memory_space<vmem>>, vector<2x64xf32>,
    %c0_137 = arith.constant 0 : index
    %c0_138 = arith.constant 0 : index
    %502 = vector.load %arg7[%c0_137, %c0_138] : memref<16x64xf32, #tpu.memory_space<vmem>>, vector<2x64xf32>
    tpu.vector_store %arg7[%c0_137, %c0_138], %500 {strides = array<i32>} : memref<16x64xf32, #tpu.memory_space<vmem>>, vector<2x64xf32>,
    %503 = tpu.iota {dimensions = array<i32: 1>} : vector<16x64xi32>
    %c32_i32 = arith.constant 32 : i32
    %504 = vector.broadcast %c32_i32 : i32 to vector<16x64xi32>
    %505 = arith.cmpi slt, %503, %504 : vector<16x64xi32>
    %c0_139 = arith.constant 0 : index
    %c0_140 = arith.constant 0 : index
    %506 = vector.load %arg6[%c0_139, %c0_140] : memref<16x64xf32, #tpu.memory_space<vmem>>, vector<16x64xf32>
    %c0_141 = arith.constant 0 : index
    %c0_142 = arith.constant 0 : index
    %507 = vector.load %arg7[%c0_141, %c0_142] : memref<16x64xf32, #tpu.memory_space<vmem>>, vector<16x64xf32>
    %508 = arith.select %505, %506, %507 : vector<16x64xi1>, vector<16x64xf32>
    %c0_143 = arith.constant 0 : index
    %c0_144 = arith.constant 0 : index
    %509 = vector.load %arg2[%c0_143, %c0_144] : memref<176x64xf32, #tpu.memory_space<vmem>>, vector<64x64xf32>
    %c64 = arith.constant 64 : index
    %c0_145 = arith.constant 0 : index
    %510 = vector.load %arg2[%c64, %c0_145] : memref<176x64xf32, #tpu.memory_space<vmem>>, vector<64x64xf32>
    %c128 = arith.constant 128 : index
    %c0_146 = arith.constant 0 : index
    %511 = vector.load %arg2[%c128, %c0_146] : memref<176x64xf32, #tpu.memory_space<vmem>>, vector<32x64xf32>
    %c160 = arith.constant 160 : index
    %c0_147 = arith.constant 0 : index
    %512 = vector.load %arg2[%c160, %c0_147] : memref<176x64xf32, #tpu.memory_space<vmem>>, vector<16x64xf32>
    %513 = vector.extract_strided_slice %512 {offsets = [0, 0], sizes = [1, 64], strides = [1, 1]} : vector<16x64xf32> to vector<1x64xf32>
    %514 = vector.extract_strided_slice %512 {offsets = [1, 0], sizes = [1, 64], strides = [1, 1]} : vector<16x64xf32> to vector<1x64xf32>
    %515 = vector.extract_strided_slice %512 {offsets = [2, 0], sizes = [1, 64], strides = [1, 1]} : vector<16x64xf32> to vector<1x64xf32>
    %516 = vector.extract_strided_slice %512 {offsets = [3, 0], sizes = [1, 64], strides = [1, 1]} : vector<16x64xf32> to vector<1x64xf32>
    %517 = vector.extract_strided_slice %512 {offsets = [4, 0], sizes = [1, 64], strides = [1, 1]} : vector<16x64xf32> to vector<1x64xf32>
    %518 = vector.extract_strided_slice %512 {offsets = [5, 0], sizes = [1, 32], strides = [1, 1]} : vector<16x64xf32> to vector<1x32xf32>
    %519 = vector.extract_strided_slice %512 {offsets = [6, 0], sizes = [1, 32], strides = [1, 1]} : vector<16x64xf32> to vector<1x32xf32>
    %520 = vector.extract_strided_slice %512 {offsets = [7, 0], sizes = [1, 32], strides = [1, 1]} : vector<16x64xf32> to vector<1x32xf32>
    %521 = vector.extract_strided_slice %512 {offsets = [8, 0], sizes = [1, 16], strides = [1, 1]} : vector<16x64xf32> to vector<1x16xf32>
    %522 = vector.extract_strided_slice %512 {offsets = [9, 0], sizes = [1, 16], strides = [1, 1]} : vector<16x64xf32> to vector<1x16xf32>
    %523 = vector.extract_strided_slice %512 {offsets = [10, 0], sizes = [1, 16], strides = [1, 1]} : vector<16x64xf32> to vector<1x16xf32>
    %524 = vector.extract_strided_slice %512 {offsets = [11, 0], sizes = [1, 1], strides = [1, 1]} : vector<16x64xf32> to vector<1x1xf32>
    %525 = vector.extract_strided_slice %512 {offsets = [11, 1], sizes = [1, 1], strides = [1, 1]} : vector<16x64xf32> to vector<1x1xf32>
    %526 = vector.broadcast %513 : vector<1x64xf32> to vector<16x64xf32>
    %527 = arith.mulf %508, %526 : vector<16x64xf32>
    %cst_148 = arith.constant dense<0.000000e+00> : vector<16xf32>
    %528 = vector.multi_reduction <add>, %527, %cst_148 [1] : vector<16x64xf32> to vector<16xf32>
    %529 = vector.shape_cast %528 : vector<16xf32> to vector<16x1xf32>
    %530 = vector.broadcast %524 : vector<1x1xf32> to vector<16x1xf32>
    %531 = arith.addf %529, %530 : vector<16x1xf32>
    %cst_149 = arith.constant dense<0xFF800000> : vector<1xf32>
    %532 = vector.multi_reduction <maximumf>, %531, %cst_149 [0] : vector<16x1xf32> to vector<1xf32>
    %533 = vector.shape_cast %532 : vector<1xf32> to vector<1x1xf32>
    %534 = vector.broadcast %533 : vector<1x1xf32> to vector<16x1xf32>
    %535 = arith.subf %531, %534 : vector<16x1xf32>
    %536 = math.exp %535 : vector<16x1xf32>
    %cst_150 = arith.constant 0.000000e+00 : f32
    %537 = vector.broadcast %cst_150 : f32 to vector<2x64xf32>
    %cst_151 = arith.constant 0.000000e+00 : f32
    %538 = vector.broadcast %cst_151 : f32 to vector<2x1xf32>
    %539 = vector.extract_strided_slice %536 {offsets = [0, 0], sizes = [2, 1], strides = [1, 1]} : vector<16x1xf32> to vector<2x1xf32>
    %540 = vector.extract_strided_slice %508 {offsets = [0, 0], sizes = [2, 64], strides = [1, 1]} : vector<16x64xf32> to vector<2x64xf32>
    %541 = vector.broadcast %539 : vector<2x1xf32> to vector<2x64xf32>
    %542 = arith.mulf %540, %541 : vector<2x64xf32>
    %543 = arith.addf %537, %542 : vector<2x64xf32>
    %544 = arith.addf %538, %539 : vector<2x1xf32>
    %545 = vector.extract_strided_slice %536 {offsets = [2, 0], sizes = [2, 1], strides = [1, 1]} : vector<16x1xf32> to vector<2x1xf32>
    %546 = vector.extract_strided_slice %508 {offsets = [2, 0], sizes = [2, 64], strides = [1, 1]} : vector<16x64xf32> to vector<2x64xf32>
    %547 = vector.broadcast %545 : vector<2x1xf32> to vector<2x64xf32>
    %548 = arith.mulf %546, %547 : vector<2x64xf32>
    %549 = arith.addf %543, %548 : vector<2x64xf32>
    %550 = arith.addf %544, %545 : vector<2x1xf32>
    %551 = vector.extract_strided_slice %536 {offsets = [4, 0], sizes = [2, 1], strides = [1, 1]} : vector<16x1xf32> to vector<2x1xf32>
    %552 = vector.extract_strided_slice %508 {offsets = [4, 0], sizes = [2, 64], strides = [1, 1]} : vector<16x64xf32> to vector<2x64xf32>
    %553 = vector.broadcast %551 : vector<2x1xf32> to vector<2x64xf32>
    %554 = arith.mulf %552, %553 : vector<2x64xf32>
    %555 = arith.addf %549, %554 : vector<2x64xf32>
    %556 = arith.addf %550, %551 : vector<2x1xf32>
    %557 = vector.extract_strided_slice %536 {offsets = [6, 0], sizes = [2, 1], strides = [1, 1]} : vector<16x1xf32> to vector<2x1xf32>
    %558 = vector.extract_strided_slice %508 {offsets = [6, 0], sizes = [2, 64], strides = [1, 1]} : vector<16x64xf32> to vector<2x64xf32>
    %559 = vector.broadcast %557 : vector<2x1xf32> to vector<2x64xf32>
    %560 = arith.mulf %558, %559 : vector<2x64xf32>
    %561 = arith.addf %555, %560 : vector<2x64xf32>
    %562 = arith.addf %556, %557 : vector<2x1xf32>
    %563 = vector.extract_strided_slice %536 {offsets = [8, 0], sizes = [2, 1], strides = [1, 1]} : vector<16x1xf32> to vector<2x1xf32>
    %564 = vector.extract_strided_slice %508 {offsets = [8, 0], sizes = [2, 64], strides = [1, 1]} : vector<16x64xf32> to vector<2x64xf32>
    %565 = vector.broadcast %563 : vector<2x1xf32> to vector<2x64xf32>
    %566 = arith.mulf %564, %565 : vector<2x64xf32>
    %567 = arith.addf %561, %566 : vector<2x64xf32>
    %568 = arith.addf %562, %563 : vector<2x1xf32>
    %569 = vector.extract_strided_slice %536 {offsets = [10, 0], sizes = [2, 1], strides = [1, 1]} : vector<16x1xf32> to vector<2x1xf32>
    %570 = vector.extract_strided_slice %508 {offsets = [10, 0], sizes = [2, 64], strides = [1, 1]} : vector<16x64xf32> to vector<2x64xf32>
    %571 = vector.broadcast %569 : vector<2x1xf32> to vector<2x64xf32>
    %572 = arith.mulf %570, %571 : vector<2x64xf32>
    %573 = arith.addf %567, %572 : vector<2x64xf32>
    %574 = arith.addf %568, %569 : vector<2x1xf32>
    %575 = vector.extract_strided_slice %536 {offsets = [12, 0], sizes = [2, 1], strides = [1, 1]} : vector<16x1xf32> to vector<2x1xf32>
    %576 = vector.extract_strided_slice %508 {offsets = [12, 0], sizes = [2, 64], strides = [1, 1]} : vector<16x64xf32> to vector<2x64xf32>
    %577 = vector.broadcast %575 : vector<2x1xf32> to vector<2x64xf32>
    %578 = arith.mulf %576, %577 : vector<2x64xf32>
    %579 = arith.addf %573, %578 : vector<2x64xf32>
    %580 = arith.addf %574, %575 : vector<2x1xf32>
    %581 = vector.extract_strided_slice %536 {offsets = [14, 0], sizes = [2, 1], strides = [1, 1]} : vector<16x1xf32> to vector<2x1xf32>
    %582 = vector.extract_strided_slice %508 {offsets = [14, 0], sizes = [2, 64], strides = [1, 1]} : vector<16x64xf32> to vector<2x64xf32>
    %583 = vector.broadcast %581 : vector<2x1xf32> to vector<2x64xf32>
    %584 = arith.mulf %582, %583 : vector<2x64xf32>
    %585 = arith.addf %579, %584 : vector<2x64xf32>
    %586 = arith.addf %580, %581 : vector<2x1xf32>
    %cst_152 = arith.constant 1.000000e+00 : f32
    %587 = vector.broadcast %cst_152 : f32 to vector<2x1xf32>
    %588 = arith.divf %587, %586 : vector<2x1xf32>
    %589 = vector.broadcast %588 : vector<2x1xf32> to vector<2x64xf32>
    %590 = arith.mulf %585, %589 : vector<2x64xf32>
    %cst_153 = arith.constant dense<0.000000e+00> : vector<2x64xf32>
    %591 = tpu.matmul %590, %509, %cst_153 {dimension_numbers = #tpu.dot_dimension_numbers<[1], [0], [0], [1], [0, 0, 1, 1], [], []>} : vector<2x64xf32>, vector<64x64xf32>, vector<2x64xf32> -> vector<2x64xf32>
    %592 = vector.broadcast %515 : vector<1x64xf32> to vector<2x64xf32>
    %593 = arith.addf %591, %592 : vector<2x64xf32>
    %cst_154 = arith.constant dense<0.000000e+00> : vector<2xf32>
    %594 = vector.multi_reduction <add>, %593, %cst_154 [1] : vector<2x64xf32> to vector<2xf32>
    %595 = vector.shape_cast %594 : vector<2xf32> to vector<2x1xf32>
    %cst_155 = arith.constant 6.400000e+01 : f32
    %596 = vector.broadcast %cst_155 : f32 to vector<2x1xf32>
    %597 = arith.divf %595, %596 : vector<2x1xf32>
    %598 = vector.broadcast %597 : vector<2x1xf32> to vector<2x64xf32>
    %599 = arith.subf %593, %598 : vector<2x64xf32>
    %600 = arith.mulf %599, %599 : vector<2x64xf32>
    %cst_156 = arith.constant dense<0.000000e+00> : vector<2xf32>
    %601 = vector.multi_reduction <add>, %600, %cst_156 [1] : vector<2x64xf32> to vector<2xf32>
    %602 = vector.shape_cast %601 : vector<2xf32> to vector<2x1xf32>
    %cst_157 = arith.constant 6.400000e+01 : f32
    %603 = vector.broadcast %cst_157 : f32 to vector<2x1xf32>
    %604 = arith.divf %602, %603 : vector<2x1xf32>
    %605 = vector.broadcast %597 : vector<2x1xf32> to vector<2x64xf32>
    %606 = arith.subf %593, %605 : vector<2x64xf32>
    %cst_158 = arith.constant 9.99999974E-6 : f32
    %607 = vector.broadcast %cst_158 : f32 to vector<2x1xf32>
    %608 = arith.addf %604, %607 : vector<2x1xf32>
    %609 = math.rsqrt %608 : vector<2x1xf32>
    %610 = vector.broadcast %609 : vector<2x1xf32> to vector<2x64xf32>
    %611 = arith.mulf %606, %610 : vector<2x64xf32>
    %612 = vector.broadcast %516 : vector<1x64xf32> to vector<2x64xf32>
    %613 = arith.mulf %611, %612 : vector<2x64xf32>
    %614 = vector.broadcast %517 : vector<1x64xf32> to vector<2x64xf32>
    %615 = arith.addf %613, %614 : vector<2x64xf32>
    %cst_159 = arith.constant 5.000000e-01 : f32
    %616 = vector.broadcast %cst_159 : f32 to vector<2x64xf32>
    %617 = arith.mulf %616, %615 : vector<2x64xf32>
    %cst_160 = arith.constant 0.707106769 : f32
    %618 = vector.broadcast %cst_160 : f32 to vector<2x64xf32>
    %619 = arith.mulf %615, %618 : vector<2x64xf32>
    %620 = math.erf %619 : vector<2x64xf32>
    %cst_161 = arith.constant 1.000000e+00 : f32
    %621 = vector.broadcast %cst_161 : f32 to vector<2x64xf32>
    %622 = arith.addf %621, %620 : vector<2x64xf32>
    %623 = arith.mulf %617, %622 : vector<2x64xf32>
    %624 = vector.broadcast %514 : vector<1x64xf32> to vector<2x64xf32>
    %625 = arith.mulf %623, %624 : vector<2x64xf32>
    %cst_162 = arith.constant dense<0.000000e+00> : vector<2xf32>
    %626 = vector.multi_reduction <add>, %625, %cst_162 [1] : vector<2x64xf32> to vector<2xf32>
    %627 = vector.shape_cast %626 : vector<2xf32> to vector<2x1xf32>
    %628 = vector.broadcast %525 : vector<1x1xf32> to vector<2x1xf32>
    %629 = arith.addf %627, %628 : vector<2x1xf32>
    %630 = arith.negf %629 : vector<2x1xf32>
    %631 = math.exp %630 : vector<2x1xf32>
    %cst_163 = arith.constant 1.000000e+00 : f32
    %632 = vector.broadcast %cst_163 : f32 to vector<2x1xf32>
    %633 = arith.addf %632, %631 : vector<2x1xf32>
    %634 = arith.divf %632, %633 : vector<2x1xf32>
    %635 = vector.broadcast %634 : vector<2x1xf32> to vector<2x64xf32>
    %636 = arith.mulf %590, %635 : vector<2x64xf32>
    %cst_164 = arith.constant dense<0.000000e+00> : vector<2x64xf32>
    %637 = tpu.matmul %636, %510, %cst_164 {dimension_numbers = #tpu.dot_dimension_numbers<[1], [0], [0], [1], [0, 0, 1, 1], [], []>} : vector<2x64xf32>, vector<64x64xf32>, vector<2x64xf32> -> vector<2x64xf32>
    %638 = vector.extract_strided_slice %637 {offsets = [0, 0], sizes = [2, 32], strides = [1, 1]} : vector<2x64xf32> to vector<2x32xf32>
    %639 = vector.broadcast %518 : vector<1x32xf32> to vector<2x32xf32>
    %640 = arith.addf %638, %639 : vector<2x32xf32>
    %cst_165 = arith.constant dense<0.000000e+00> : vector<2xf32>
    %641 = vector.multi_reduction <add>, %640, %cst_165 [1] : vector<2x32xf32> to vector<2xf32>
    %642 = vector.shape_cast %641 : vector<2xf32> to vector<2x1xf32>
    %cst_166 = arith.constant 3.200000e+01 : f32
    %643 = vector.broadcast %cst_166 : f32 to vector<2x1xf32>
    %644 = arith.divf %642, %643 : vector<2x1xf32>
    %645 = vector.broadcast %644 : vector<2x1xf32> to vector<2x32xf32>
    %646 = arith.subf %640, %645 : vector<2x32xf32>
    %647 = arith.mulf %646, %646 : vector<2x32xf32>
    %cst_167 = arith.constant dense<0.000000e+00> : vector<2xf32>
    %648 = vector.multi_reduction <add>, %647, %cst_167 [1] : vector<2x32xf32> to vector<2xf32>
    %649 = vector.shape_cast %648 : vector<2xf32> to vector<2x1xf32>
    %cst_168 = arith.constant 3.200000e+01 : f32
    %650 = vector.broadcast %cst_168 : f32 to vector<2x1xf32>
    %651 = arith.divf %649, %650 : vector<2x1xf32>
    %652 = vector.broadcast %644 : vector<2x1xf32> to vector<2x32xf32>
    %653 = arith.subf %640, %652 : vector<2x32xf32>
    %cst_169 = arith.constant 9.99999974E-6 : f32
    %654 = vector.broadcast %cst_169 : f32 to vector<2x1xf32>
    %655 = arith.addf %651, %654 : vector<2x1xf32>
    %656 = math.rsqrt %655 : vector<2x1xf32>
    %657 = vector.broadcast %656 : vector<2x1xf32> to vector<2x32xf32>
    %658 = arith.mulf %653, %657 : vector<2x32xf32>
    %659 = vector.broadcast %519 : vector<1x32xf32> to vector<2x32xf32>
    %660 = arith.mulf %658, %659 : vector<2x32xf32>
    %661 = vector.broadcast %520 : vector<1x32xf32> to vector<2x32xf32>
    %662 = arith.addf %660, %661 : vector<2x32xf32>
    %cst_170 = arith.constant 5.000000e-01 : f32
    %663 = vector.broadcast %cst_170 : f32 to vector<2x32xf32>
    %664 = arith.mulf %663, %662 : vector<2x32xf32>
    %cst_171 = arith.constant 0.707106769 : f32
    %665 = vector.broadcast %cst_171 : f32 to vector<2x32xf32>
    %666 = arith.mulf %662, %665 : vector<2x32xf32>
    %667 = math.erf %666 : vector<2x32xf32>
    %cst_172 = arith.constant 1.000000e+00 : f32
    %668 = vector.broadcast %cst_172 : f32 to vector<2x32xf32>
    %669 = arith.addf %668, %667 : vector<2x32xf32>
    %670 = arith.mulf %664, %669 : vector<2x32xf32>
    %cst_173 = arith.constant dense<0.000000e+00> : vector<2x64xf32>
    %671 = tpu.matmul %670, %511, %cst_173 {dimension_numbers = #tpu.dot_dimension_numbers<[1], [0], [0], [1], [0, 0, 1, 1], [], []>} : vector<2x32xf32>, vector<32x64xf32>, vector<2x64xf32> -> vector<2x64xf32>
    %672 = vector.extract_strided_slice %671 {offsets = [0, 0], sizes = [2, 16], strides = [1, 1]} : vector<2x64xf32> to vector<2x16xf32>
    %673 = vector.broadcast %521 : vector<1x16xf32> to vector<2x16xf32>
    %674 = arith.addf %672, %673 : vector<2x16xf32>
    %cst_174 = arith.constant dense<0.000000e+00> : vector<2xf32>
    %675 = vector.multi_reduction <add>, %674, %cst_174 [1] : vector<2x16xf32> to vector<2xf32>
    %676 = vector.shape_cast %675 : vector<2xf32> to vector<2x1xf32>
    %cst_175 = arith.constant 1.600000e+01 : f32
    %677 = vector.broadcast %cst_175 : f32 to vector<2x1xf32>
    %678 = arith.divf %676, %677 : vector<2x1xf32>
    %679 = vector.broadcast %678 : vector<2x1xf32> to vector<2x16xf32>
    %680 = arith.subf %674, %679 : vector<2x16xf32>
    %681 = arith.mulf %680, %680 : vector<2x16xf32>
    %cst_176 = arith.constant dense<0.000000e+00> : vector<2xf32>
    %682 = vector.multi_reduction <add>, %681, %cst_176 [1] : vector<2x16xf32> to vector<2xf32>
    %683 = vector.shape_cast %682 : vector<2xf32> to vector<2x1xf32>
    %cst_177 = arith.constant 1.600000e+01 : f32
    %684 = vector.broadcast %cst_177 : f32 to vector<2x1xf32>
    %685 = arith.divf %683, %684 : vector<2x1xf32>
    %686 = vector.broadcast %678 : vector<2x1xf32> to vector<2x16xf32>
    %687 = arith.subf %674, %686 : vector<2x16xf32>
    %cst_178 = arith.constant 9.99999974E-6 : f32
    %688 = vector.broadcast %cst_178 : f32 to vector<2x1xf32>
    %689 = arith.addf %685, %688 : vector<2x1xf32>
    %690 = math.rsqrt %689 : vector<2x1xf32>
    %691 = vector.broadcast %690 : vector<2x1xf32> to vector<2x16xf32>
    %692 = arith.mulf %687, %691 : vector<2x16xf32>
    %693 = vector.broadcast %522 : vector<1x16xf32> to vector<2x16xf32>
    %694 = arith.mulf %692, %693 : vector<2x16xf32>
    %695 = vector.broadcast %523 : vector<1x16xf32> to vector<2x16xf32>
    %696 = arith.addf %694, %695 : vector<2x16xf32>
    %cst_179 = arith.constant 5.000000e-01 : f32
    %697 = vector.broadcast %cst_179 : f32 to vector<2x16xf32>
    %698 = arith.mulf %697, %696 : vector<2x16xf32>
    %cst_180 = arith.constant 0.707106769 : f32
    %699 = vector.broadcast %cst_180 : f32 to vector<2x16xf32>
    %700 = arith.mulf %696, %699 : vector<2x16xf32>
    %701 = math.erf %700 : vector<2x16xf32>
    %cst_181 = arith.constant 1.000000e+00 : f32
    %702 = vector.broadcast %cst_181 : f32 to vector<2x16xf32>
    %703 = arith.addf %702, %701 : vector<2x16xf32>
    %704 = arith.mulf %698, %703 : vector<2x16xf32>
    %c0_182 = arith.constant 0 : index
    %c0_183 = arith.constant 0 : index
    %705 = vector.load %arg3[%c0_182, %c0_183] : memref<2x16xf32, #tpu.memory_space<vmem>>, vector<2x16xf32>
    tpu.vector_store %arg3[%c0_182, %c0_183], %704 {strides = array<i32>} : memref<2x16xf32, #tpu.memory_space<vmem>>, vector<2x16xf32>,
    return
  }
}

</mosaic_0001>

<llo_original>
// kernel: lstm_branch_forward.1
$region0: #{lstm_branch_forward.1}
  #allocation0 [shape = 'u32[]', space=smem, size = 0x4, offset = 0x4, fixed_abs, tag = 'smem constant byte address 0x4 - core index']
  #allocation1 [shape = 'u32[144,128]{1,0:T(1,128)}', space=vmem, size = 0x12000, scoped, tag = 'internal scratch']
  #allocation2 [shape = 'f32[16,64]{1,0:T(8,128)}', space=vmem, size = 0x2000, scoped, tag = 'scratch operand']
  #allocation3 [shape = 'f32[16,64]{1,0:T(8,128)}', space=vmem, size = 0x2000, scoped, tag = 'scratch operand']
  #allocation4 [shape = 'f32[16,64]{1,0:T(8,128)}', space=vmem, size = 0x2000, scoped, tag = 'scratch operand']
  #allocation5 [shape = 'f32[16,64]{1,0:T(8,128)}', space=vmem, size = 0x2000, scoped, tag = 'scratch operand']
  %s0 = inlined_call_operand.vmem [shape: f32[16,16], index: 0, kind: input, shape index: {}]
  %s1 = inlined_call_operand.vmem [shape: f32[280,256], index: 1, kind: input, shape index: {}]
  %s2 = inlined_call_operand.vmem [shape: f32[176,64], index: 2, kind: input, shape index: {}]
  %s3 = inlined_call_operand.hbm [shape: f32[2,16], index: 3, kind: output, shape index: {}]
  %s4 = sld [smem:[#allocation0]]
  $region22: #{lstm_branch_forward.1} parent=0
    _
  %s6 = ssub.s32 1, %s4
  %s7 = scalar_select 0, %s6, %s4
  $region1: #{lstm_branch_forward.1} parent=0
    #allocation6 [shape = 'u8[1024]{0}', space=vmem, size = 0x400, scoped, tag = 'output window, operand 0, single buffered']
    #allocation7 [shape = 's32[1]{0}', space=sflag, size = 0x4, scoped, tag = 'scoped memory for lstm_branch_forward.1']
    %8 = vsyncpa [#allocation7], 0
    // Predicated region
    $region2: #{lstm_branch_forward.1} parent=1 // pred_check
      _
    $region3: #{lstm_branch_forward.1} parent=1 // pred_check_branch
      %10 = sbr.rel (0) target = $region5
    $region4: #{lstm_branch_forward.1} parent=1 // pred_region
      _
    $region5: #{lstm_branch_forward.1} parent=1 // pred_fallthru
      _
    // Predicated region
    $region6: #{lstm_branch_forward.1} parent=1 // pred_check
      _
    $region7: #{lstm_branch_forward.1} parent=1 // pred_check_branch
      %12 = sbr.rel (0) target = $region9
    $region8: #{lstm_branch_forward.1} parent=1 // pred_region
      _
    $region9: #{lstm_branch_forward.1} parent=1 // pred_fallthru
      _
    // Predicated region
    $region10: #{lstm_branch_forward.1} parent=1 // pred_check
      _
    $region11: #{lstm_branch_forward.1} parent=1 // pred_check_branch
      %14 = sbr.rel (0) target = $region13
    $region12: #{lstm_branch_forward.1} parent=1 // pred_region
      _
    $region13: #{lstm_branch_forward.1} parent=1 // pred_fallthru
      _
    %v15 = vld [vmem:[%s1] sm:$0xff]
    %v16 = vld [vmem:[%s1 + $0x8] sm:$0xff]
    %v17 = vld [vmem:[%s1 + $0x10] sm:$0xff]
    %v18 = vld [vmem:[%s1 + $0x18] sm:$0xff]
    %v19 = vld [vmem:[%s1 + $0x20] sm:$0xff]
    %v20 = vld [vmem:[%s1 + $0x28] sm:$0xff]
    %v21 = vld [vmem:[%s1 + $0x30] sm:$0xff]
    %v22 = vld [vmem:[%s1 + $0x38] sm:$0xff]
    %v23 = vld [vmem:[%s1 + $0x40] sm:$0xff]
    %v24 = vld [vmem:[%s1 + $0x48] sm:$0xff]
    %v25 = vld [vmem:[%s1 + $0x50] sm:$0xff]
    %v26 = vld [vmem:[%s1 + $0x58] sm:$0xff]
    %v27 = vld [vmem:[%s1 + $0x60] sm:$0xff]
    %v28 = vld [vmem:[%s1 + $0x68] sm:$0xff]
    %v29 = vld [vmem:[%s1 + $0x70] sm:$0xff]
    %v30 = vld [vmem:[%s1 + $0x78] sm:$0xff]
    %v31 = vld [vmem:[%s1 + $0x80] sm:$0xff]
    %v32 = vld [vmem:[%s1 + $0x88] sm:$0xff]
    %v33 = vld [vmem:[%s1 + $0x90] sm:$0xff]
    %v34 = vld [vmem:[%s1 + $0x98] sm:$0xff]
    %v35 = vld [vmem:[%s1 + $0xa0] sm:$0xff]
    %v36 = vld [vmem:[%s1 + $0xa8] sm:$0xff]
    %v37 = vld [vmem:[%s1 + $0xb0] sm:$0xff]
    %v38 = vld [vmem:[%s1 + $0xb8] sm:$0xff]
    %v39 = vld [vmem:[%s1 + $0xc0] sm:$0xff]
    %v40 = vld [vmem:[%s1 + $0xc8] sm:$0xff]
    %v41 = vld [vmem:[%s1 + $0xd0] sm:$0xff]
    %v42 = vld [vmem:[%s1 + $0xd8] sm:$0xff]
    %v43 = vld [vmem:[%s1 + $0xe0] sm:$0xff]
    %v44 = vld [vmem:[%s1 + $0xe8] sm:$0xff]
    %v45 = vld [vmem:[%s1 + $0xf0] sm:$0xff]
    %v46 = vld [vmem:[%s1 + $0xf8] sm:$0xff]
    %v47 = vld [vmem:[%s1 + $0x100] sm:$0xff]
    %v48 = vld [vmem:[%s1 + $0x108] sm:$0xff]
    %v49 = vld [vmem:[%s1 + $0x110] sm:$0xff]
    %v50 = vld [vmem:[%s1 + $0x118] sm:$0xff]
    %v51 = vld [vmem:[%s1 + $0x120] sm:$0xff]
    %v52 = vld [vmem:[%s1 + $0x128] sm:$0xff]
    %v53 = vld [vmem:[%s1 + $0x130] sm:$0xff]
    %v54 = vld [vmem:[%s1 + $0x138] sm:$0xff]
    %v55 = vld [vmem:[%s1 + $0x140] sm:$0xff]
    %v56 = vld [vmem:[%s1 + $0x148] sm:$0xff]
    %v57 = vld [vmem:[%s1 + $0x150] sm:$0xff]
    %v58 = vld [vmem:[%s1 + $0x158] sm:$0xff]
    %v59 = vld [vmem:[%s1 + $0x160] sm:$0xff]
    %v60 = vld [vmem:[%s1 + $0x168] sm:$0xff]
    %v61 = vld [vmem:[%s1 + $0x170] sm:$0xff]
    %v62 = vld [vmem:[%s1 + $0x178] sm:$0xff]
    %v63 = vld [vmem:[%s1 + $0x180] sm:$0xff]
    %v64 = vld [vmem:[%s1 + $0x188] sm:$0xff]
    %v65 = vld [vmem:[%s1 + $0x190] sm:$0xff]
    %v66 = vld [vmem:[%s1 + $0x198] sm:$0xff]
    %v67 = vld [vmem:[%s1 + $0x1a0] sm:$0xff]
    %v68 = vld [vmem:[%s1 + $0x1a8] sm:$0xff]
    %v69 = vld [vmem:[%s1 + $0x1b0] sm:$0xff]
    %v70 = vld [vmem:[%s1 + $0x1b8] sm:$0xff]
    %v71 = vld [vmem:[%s1 + $0x1c0] sm:$0xff]
    %v72 = vld [vmem:[%s1 + $0x1c8] sm:$0xff]
    %v73 = vld [vmem:[%s1 + $0x1d0] sm:$0xff]
    %v74 = vld [vmem:[%s1 + $0x1d8] sm:$0xff]
    %v75 = vld [vmem:[%s1 + $0x1e0] sm:$0xff]
    %v76 = vld [vmem:[%s1 + $0x1e8] sm:$0xff]
    %v77 = vld [vmem:[%s1 + $0x1f0] sm:$0xff]
    %v78 = vld [vmem:[%s1 + $0x1f8] sm:$0xff]
    %v79 = vld [vmem:[%s1 + $0x200] sm:$0xff]
    %v80 = vld [vmem:[%s1 + $0x208] sm:$0xff]
    %v81 = vld [vmem:[%s1 + $0x210] sm:$0xff]
    %v82 = vld [vmem:[%s1 + $0x218] sm:$0xff]
    %v83 = vld [vmem:[%s1 + $0x220] sm:$0xff]
    %v84 = vld [vmem:[%s1 + $0x228] sm:$0xff]
    %v85 = vld [vmem:[%s0] sm:$0xff]
    %v86 = vld [vmem:[%s0 + $0x8] sm:$0xff]
    %v87 = vlaneseq
    %v88 = vshrl.u32 %v87, 7
    %v89 = vsub.s32 0, %v88
    %v90 = vrot.slane %v83, %v89
    %v91 = vlaneseq
    %v92 = vshrl.u32 %v91, 7
    %v93 = vsub.s32 0, %v92
    %v94 = vrot.slane %v84, %v93
    %vm95 = vcmask 130048
    %v97 = vsel %vm95, %v85, 0
    %v100 = vsel %vm95, %v86, 0
    %102 = vmatprep.subr.mxu0 0.0
    %103 = vmatpush1.msra.mxu0 0.0
    %104 = vmatprep.subr.mxu0 0.0
    %105 = vmatpush1.msra.mxu0 0.0
    %106 = vmatprep.subr.mxu0 0.0
    %107 = vmatpush1.msra.mxu0 0.0
    %108 = vmatprep.subr.mxu0 0.0
    %109 = vmatpush1.msra.mxu0 0.0
    %110 = vmatprep.subr.mxu0 0.0
    %111 = vmatpush1.msra.mxu0 0.0
    %112 = vmatprep.subr.mxu0 0.0
    %113 = vmatpush1.msra.mxu0 0.0
    %114 = vmatprep.subr.mxu0 0.0
    %115 = vmatpush1.msra.mxu0 0.0
    %116 = vmatprep.subr.mxu0 0.0
    %117 = vmatpush1.msra.mxu0 0.0
    %118 = vmatprep.subr.mxu0 0.0
    %119 = vmatpush1.msra.mxu0 0.0
    %120 = vmatprep.subr.mxu0 0.0
    %121 = vmatpush1.msra.mxu0 0.0
    %122 = vmatprep.subr.mxu0 0.0
    %123 = vmatpush1.msra.mxu0 0.0
    %124 = vmatprep.subr.mxu0 0.0
    %125 = vmatpush1.msra.mxu0 0.0
    %126 = vmatprep.subr.mxu0 0.0
    %127 = vmatpush1.msra.mxu0 0.0
    %128 = vmatprep.subr.mxu0 0.0
    %129 = vmatpush1.msra.mxu0 0.0
    %130 = vmatprep.subr.mxu0 %v18
    %131 = vmatpush1.msra.mxu0 %v17
    %132 = vmatprep.subr.mxu0 %v16
    %133 = vmatpush1.msra.mxu0 %v15
    %134 = vmatprep.subr.mxu0 0.0
    %135 = vmatpush2.msra.mxu0 0.0
    %136 = vmatprep.subr.mxu0 0.0
    %137 = vmatpush2.msra.mxu0 0.0
    %138 = vmatprep.subr.mxu0 0.0
    %139 = vmatpush2.msra.mxu0 0.0
    %140 = vmatprep.subr.mxu0 0.0
    %141 = vmatpush2.msra.mxu0 0.0
    %142 = vmatprep.subr.mxu0 0.0
    %143 = vmatpush2.msra.mxu0 0.0
    %144 = vmatprep.subr.mxu0 0.0
    %145 = vmatpush2.msra.mxu0 0.0
    %146 = vmatprep.subr.mxu0 0.0
    %147 = vmatpush2.msra.mxu0 0.0
    %148 = vmatprep.subr.mxu0 0.0
    %149 = vmatpush2.msra.mxu0 0.0
    %150 = vmatprep.subr.mxu0 0.0
    %151 = vmatpush2.msra.mxu0 0.0
    %152 = vmatprep.subr.mxu0 0.0
    %153 = vmatpush2.msra.mxu0 0.0
    %154 = vmatprep.subr.mxu0 0.0
    %155 = vmatpush2.msra.mxu0 0.0
    %156 = vmatprep.subr.mxu0 0.0
    %157 = vmatpush2.msra.mxu0 0.0
    %158 = vmatprep.subr.mxu0 0.0
    %159 = vmatpush2.msra.mxu0 0.0
    %160 = vmatprep.subr.mxu0 0.0
    %161 = vmatpush2.msra.mxu0 0.0
    %162 = vmatprep.subr.mxu0 0.0
    %163 = vmatpush2.msra.mxu0 0.0
    %164 = vmatprep.subr.mxu0 0.0
    %165 = vmatpush2.msra.mxu0 0.0
    %166 = vmatprep.mubr.f32.mxu0 0.0
    %167 = vmatmul.mubr.f32.gmra.mxu0 %v97
    %v168 = vpop.f32.mrf.mxu0
    %v169 = vadd.f32 %v90, %v168
    %v170 = vpop.f32.mrf.mxu0
    %v171 = vadd.f32 %v94, %v170
    %172 = vmatprep.mubr.f32.mxu0 0.0
    %173 = vmatmul.mubr.f32.gmra.mxu0 %v100
    %v174 = vpop.f32.mrf.mxu0
    %v175 = vadd.f32 %v90, %v174
    %v176 = vpop.f32.mrf.mxu0
    %v177 = vadd.f32 %v94, %v176
    %178 = vdwg.mxu0
    %vm179 = vcmask 523264
    %v181 = vsel %vm179, 0.0, 0
    %183 = vmatprep.subr.mxu0 0.0
    %184 = vmatpush1.msra.mxu0 0.0
    %185 = vmatprep.subr.mxu0 0.0
    %186 = vmatpush1.msra.mxu0 0.0
    %187 = vmatprep.subr.mxu0 0.0
    %188 = vmatpush1.msra.mxu0 0.0
    %189 = vmatprep.subr.mxu0 0.0
    %190 = vmatpush1.msra.mxu0 0.0
    %191 = vmatprep.subr.mxu0 0.0
    %192 = vmatpush1.msra.mxu0 0.0
    %193 = vmatprep.subr.mxu0 0.0
    %194 = vmatpush1.msra.mxu0 0.0
    %195 = vmatprep.subr.mxu0 0.0
    %196 = vmatpush1.msra.mxu0 0.0
    %197 = vmatprep.subr.mxu0 0.0
    %198 = vmatpush1.msra.mxu0 0.0
    %199 = vmatprep.subr.mxu0 %v34
    %200 = vmatpush1.msra.mxu0 %v33
    %201 = vmatprep.subr.mxu0 %v32
    %202 = vmatpush1.msra.mxu0 %v31
    %203 = vmatprep.subr.mxu0 %v30
    %204 = vmatpush1.msra.mxu0 %v29
    %205 = vmatprep.subr.mxu0 %v28
    %206 = vmatpush1.msra.mxu0 %v27
    %207 = vmatprep.subr.mxu0 %v26
    %208 = vmatpush1.msra.mxu0 %v25
    %209 = vmatprep.subr.mxu0 %v24
    %210 = vmatpush1.msra.mxu0 %v23
    %211 = vmatprep.subr.mxu0 %v22
    %212 = vmatpush1.msra.mxu0 %v21
    %213 = vmatprep.subr.mxu0 %v20
    %214 = vmatpush1.msra.mxu0 %v19
    %215 = vmatprep.subr.mxu0 0.0
    %216 = vmatpush2.msra.mxu0 0.0
    %217 = vmatprep.subr.mxu0 0.0
    %218 = vmatpush2.msra.mxu0 0.0
    %219 = vmatprep.subr.mxu0 0.0
    %220 = vmatpush2.msra.mxu0 0.0
    %221 = vmatprep.subr.mxu0 0.0
    %222 = vmatpush2.msra.mxu0 0.0
    %223 = vmatprep.subr.mxu0 0.0
    %224 = vmatpush2.msra.mxu0 0.0
    %225 = vmatprep.subr.mxu0 0.0
    %226 = vmatpush2.msra.mxu0 0.0
    %227 = vmatprep.subr.mxu0 0.0
    %228 = vmatpush2.msra.mxu0 0.0
    %229 = vmatprep.subr.mxu0 0.0
    %230 = vmatpush2.msra.mxu0 0.0
    %231 = vmatprep.subr.mxu0 0.0
    %232 = vmatpush2.msra.mxu0 0.0
    %233 = vmatprep.subr.mxu0 0.0
    %234 = vmatpush2.msra.mxu0 0.0
    %235 = vmatprep.subr.mxu0 0.0
    %236 = vmatpush2.msra.mxu0 0.0
    %237 = vmatprep.subr.mxu0 0.0
    %238 = vmatpush2.msra.mxu0 0.0
    %239 = vmatprep.subr.mxu0 0.0
    %240 = vmatpush2.msra.mxu0 0.0
    %241 = vmatprep.subr.mxu0 0.0
    %242 = vmatpush2.msra.mxu0 0.0
    %243 = vmatprep.subr.mxu0 0.0
    %244 = vmatpush2.msra.mxu0 0.0
    %245 = vmatprep.subr.mxu0 0.0
    %246 = vmatpush2.msra.mxu0 0.0
    %247 = vmatprep.mubr.f32.mxu0 0.0
    %248 = vmatmul.mubr.f32.gmra.mxu0 %v181
    %v249 = vpop.f32.mrf.mxu0
    %v250 = vadd.f32 0.0, %v249
    %v251 = vpop.f32.mrf.mxu0
    %v252 = vadd.f32 0.0, %v251
    %253 = vdwg.mxu0
    %v254 = vadd.f32 %v169, %v250
    %v255 = vadd.f32 %v171, %v252
    %v256 = vxor.u32 %v254, 2147483648
    %v257 = vmul.f32 %v256, 1.442695
    %v258 = vpow.pop %v257
    %v259 = vadd.f32 %v258, 1.0
    %v260 = vrcp.pop %v259
    %v261 = vmul.f32 1.0, %v260
    %v262 = vtanh.pop %v255
    %v263 = vxor.u32 %v255, 2147483648
    %v264 = vmul.f32 %v263, 1.442695
    %v265 = vpow.pop %v264
    %v266 = vadd.f32 %v265, 1.0
    %v267 = vrcp.pop %v266
    %v268 = vmul.f32 1.0, %v267
    %v269 = vmul.f32 %v261, 0.0
    %v270 = vmul.f32 %v261, %v262
    %272 = vrot.lane.b32.xlu0 %v270, 64
    %v273 = vpop.permute.xlu0 %272
    %v275 = vadd.f32 %v269, %v273
    %v276 = vtanh.pop %v275
    %v277 = vmul.f32 %v268, %v276
    %279 = vrot.lane.b32.xlu0 %v277, 64
    %v280 = vpop.permute.xlu0 %279
    %vm282 = vcmask 517120
    %283 = vst.msk [vmem:[#allocation2] sm:$0x3] %vm282, %v280
    %284 = vst.msk [vmem:[#allocation3 + $0xe] sm:$0x3] %vm282, %v280
    %v285 = vsel %vm179, %v280, 0
    %287 = vmatprep.subr.mxu0 0.0
    %288 = vmatpush1.msra.mxu0 0.0
    %289 = vmatprep.subr.mxu0 0.0
    %290 = vmatpush1.msra.mxu0 0.0
    %291 = vmatprep.subr.mxu0 0.0
    %292 = vmatpush1.msra.mxu0 0.0
    %293 = vmatprep.subr.mxu0 0.0
    %294 = vmatpush1.msra.mxu0 0.0
    %295 = vmatprep.subr.mxu0 0.0
    %296 = vmatpush1.msra.mxu0 0.0
    %297 = vmatprep.subr.mxu0 0.0
    %298 = vmatpush1.msra.mxu0 0.0
    %299 = vmatprep.subr.mxu0 0.0
    %300 = vmatpush1.msra.mxu0 0.0
    %301 = vmatprep.subr.mxu0 0.0
    %302 = vmatpush1.msra.mxu0 0.0
    %303 = vmatprep.subr.mxu0 %v34
    %304 = vmatpush1.msra.mxu0 %v33
    %305 = vmatprep.subr.mxu0 %v32
    %306 = vmatpush1.msra.mxu0 %v31
    %307 = vmatprep.subr.mxu0 %v30
    %308 = vmatpush1.msra.mxu0 %v29
    %309 = vmatprep.subr.mxu0 %v28
    %310 = vmatpush1.msra.mxu0 %v27
    %311 = vmatprep.subr.mxu0 %v26
    %312 = vmatpush1.msra.mxu0 %v25
    %313 = vmatprep.subr.mxu0 %v24
    %314 = vmatpush1.msra.mxu0 %v23
    %315 = vmatprep.subr.mxu0 %v22
    %316 = vmatpush1.msra.mxu0 %v21
    %317 = vmatprep.subr.mxu0 %v20
    %318 = vmatpush1.msra.mxu0 %v19
    %319 = vmatprep.subr.mxu0 0.0
    %320 = vmatpush2.msra.mxu0 0.0
    %321 = vmatprep.subr.mxu0 0.0
    %322 = vmatpush2.msra.mxu0 0.0
    %323 = vmatprep.subr.mxu0 0.0
    %324 = vmatpush2.msra.mxu0 0.0
    %325 = vmatprep.subr.mxu0 0.0
    %326 = vmatpush2.msra.mxu0 0.0
    %327 = vmatprep.subr.mxu0 0.0
    %328 = vmatpush2.msra.mxu0 0.0
    %329 = vmatprep.subr.mxu0 0.0
    %330 = vmatpush2.msra.mxu0 0.0
    %331 = vmatprep.subr.mxu0 0.0
    %332 = vmatpush2.msra.mxu0 0.0
    %333 = vmatprep.subr.mxu0 0.0
    %334 = vmatpush2.msra.mxu0 0.0
    %335 = vmatprep.subr.mxu0 0.0
    %336 = vmatpush2.msra.mxu0 0.0
    %337 = vmatprep.subr.mxu0 0.0
    %338 = vmatpush2.msra.mxu0 0.0
    %339 = vmatprep.subr.mxu0 0.0
    %340 = vmatpush2.msra.mxu0 0.0
    %341 = vmatprep.subr.mxu0 0.0
    %342 = vmatpush2.msra.mxu0 0.0
    %343 = vmatprep.subr.mxu0 0.0
    %344 = vmatpush2.msra.mxu0 0.0
    %345 = vmatprep.subr.mxu0 0.0
    %346 = vmatpush2.msra.mxu0 0.0
    %347 = vmatprep.subr.mxu0 0.0
    %348 = vmatpush2.msra.mxu0 0.0
    %349 = vmatprep.subr.mxu0 0.0
    %350 = vmatpush2.msra.mxu0 0.0
    %351 = vmatprep.mubr.f32.mxu0 0.0
    %352 = vmatmul.mubr.f32.gmra.mxu0 %v285
    %v353 = vpop.f32.mrf.mxu0
    %v354 = vadd.f32 0.0, %v353
    %v355 = vpop.f32.mrf.mxu0
    %v356 = vadd.f32 0.0, %v355
    %357 = vdwg.mxu0
    %v360 = vrot.slane %v354, 6
    %v361 = vrot.slane %v356, 6
    %v364 = vadd.f32 %v169, %v360
    %v365 = vadd.f32 %v171, %v361
    %v366 = vxor.u32 %v364, 2147483648
    %v367 = vmul.f32 %v366, 1.442695
    %v368 = vpow.pop %v367
    %v369 = vadd.f32 %v368, 1.0
    %v370 = vrcp.pop %v369
    %v371 = vmul.f32 1.0, %v370
    %v372 = vtanh.pop %v365
    %v373 = vxor.u32 %v365, 2147483648
    %v374 = vmul.f32 %v373, 1.442695
    %v375 = vpow.pop %v374
    %v376 = vadd.f32 %v375, 1.0
    %v377 = vrcp.pop %v376
    %v378 = vmul.f32 1.0, %v377
    %v380 = vrot.slane %v275, 6
    %v382 = vmul.f32 %v371, %v380
    %v383 = vmul.f32 %v371, %v372
    %385 = vrot.lane.b32.xlu0 %v383, 64
    %v386 = vpop.permute.xlu0 %385
    %v388 = vadd.f32 %v382, %v386
    %v389 = vtanh.pop %v388
    %v390 = vmul.f32 %v378, %v389
    %392 = vrot.lane.b32.xlu0 %v390, 64
    %v393 = vpop.permute.xlu0 %392
    %vm395 = vcmask 519170
    %396 = vst.msk [vmem:[#allocation2] sm:$0xc] %vm395, %v393
    %397 = vst.msk [vmem:[#allocation3 + $0xa] sm:$0xc] %vm395, %v393
    %v398 = vrot.slane %v390, 2
    %399 = vrot.lane.b32.xlu0 %v398, 64
    %v400 = vpop.permute.xlu0 %399
    %v401 = vsel %vm179, %v400, 0
    %403 = vmatprep.subr.mxu0 0.0
    %404 = vmatpush1.msra.mxu0 0.0
    %405 = vmatprep.subr.mxu0 0.0
    %406 = vmatpush1.msra.mxu0 0.0
    %407 = vmatprep.subr.mxu0 0.0
    %408 = vmatpush1.msra.mxu0 0.0
    %409 = vmatprep.subr.mxu0 0.0
    %410 = vmatpush1.msra.mxu0 0.0
    %411 = vmatprep.subr.mxu0 0.0
    %412 = vmatpush1.msra.mxu0 0.0
    %413 = vmatprep.subr.mxu0 0.0
    %414 = vmatpush1.msra.mxu0 0.0
    %415 = vmatprep.subr.mxu0 0.0
    %416 = vmatpush1.msra.mxu0 0.0
    %417 = vmatprep.subr.mxu0 0.0
    %418 = vmatpush1.msra.mxu0 0.0
    %419 = vmatprep.subr.mxu0 %v34
    %420 = vmatpush1.msra.mxu0 %v33
    %421 = vmatprep.subr.mxu0 %v32
    %422 = vmatpush1.msra.mxu0 %v31
    %423 = vmatprep.subr.mxu0 %v30
    %424 = vmatpush1.msra.mxu0 %v29
    %425 = vmatprep.subr.mxu0 %v28
    %426 = vmatpush1.msra.mxu0 %v27
    %427 = vmatprep.subr.mxu0 %v26
    %428 = vmatpush1.msra.mxu0 %v25
    %429 = vmatprep.subr.mxu0 %v24
    %430 = vmatpush1.msra.mxu0 %v23
    %431 = vmatprep.subr.mxu0 %v22
    %432 = vmatpush1.msra.mxu0 %v21
    %433 = vmatprep.subr.mxu0 %v20
    %434 = vmatpush1.msra.mxu0 %v19
    %435 = vmatprep.subr.mxu0 0.0
    %436 = vmatpush2.msra.mxu0 0.0
    %437 = vmatprep.subr.mxu0 0.0
    %438 = vmatpush2.msra.mxu0 0.0
    %439 = vmatprep.subr.mxu0 0.0
    %440 = vmatpush2.msra.mxu0 0.0
    %441 = vmatprep.subr.mxu0 0.0
    %442 = vmatpush2.msra.mxu0 0.0
    %443 = vmatprep.subr.mxu0 0.0
    %444 = vmatpush2.msra.mxu0 0.0
    %445 = vmatprep.subr.mxu0 0.0
    %446 = vmatpush2.msra.mxu0 0.0
    %447 = vmatprep.subr.mxu0 0.0
    %448 = vmatpush2.msra.mxu0 0.0
    %449 = vmatprep.subr.mxu0 0.0
    %450 = vmatpush2.msra.mxu0 0.0
    %451 = vmatprep.subr.mxu0 0.0
    %452 = vmatpush2.msra.mxu0 0.0
    %453 = vmatprep.subr.mxu0 0.0
    %454 = vmatpush2.msra.mxu0 0.0
    %455 = vmatprep.subr.mxu0 0.0
    %456 = vmatpush2.msra.mxu0 0.0
    %457 = vmatprep.subr.mxu0 0.0
    %458 = vmatpush2.msra.mxu0 0.0
    %459 = vmatprep.subr.mxu0 0.0
    %460 = vmatpush2.msra.mxu0 0.0
    %461 = vmatprep.subr.mxu0 0.0
    %462 = vmatpush2.msra.mxu0 0.0
    %463 = vmatprep.subr.mxu0 0.0
    %464 = vmatpush2.msra.mxu0 0.0
    %465 = vmatprep.subr.mxu0 0.0
    %466 = vmatpush2.msra.mxu0 0.0
    %467 = vmatprep.mubr.f32.mxu0 0.0
    %468 = vmatmul.mubr.f32.gmra.mxu0 %v401
    %v469 = vpop.f32.mrf.mxu0
    %v470 = vadd.f32 0.0, %v469
    %v471 = vpop.f32.mrf.mxu0
    %v472 = vadd.f32 0.0, %v471
    %473 = vdwg.mxu0
    %v476 = vrot.slane %v470, 4
    %v477 = vrot.slane %v472, 4
    %v480 = vadd.f32 %v169, %v476
    %v481 = vadd.f32 %v171, %v477
    %v482 = vxor.u32 %v480, 2147483648
    %v483 = vmul.f32 %v482, 1.442695
    %v484 = vpow.pop %v483
    %v485 = vadd.f32 %v484, 1.0
    %v486 = vrcp.pop %v485
    %v487 = vmul.f32 1.0, %v486
    %v488 = vtanh.pop %v481
    %v489 = vxor.u32 %v481, 2147483648
    %v490 = vmul.f32 %v489, 1.442695
    %v491 = vpow.pop %v490
    %v492 = vadd.f32 %v491, 1.0
    %v493 = vrcp.pop %v492
    %v494 = vmul.f32 1.0, %v493
    %v496 = vrot.slane %v388, 6
    %v498 = vmul.f32 %v487, %v496
    %v499 = vmul.f32 %v487, %v488
    %501 = vrot.lane.b32.xlu0 %v499, 64
    %v502 = vpop.permute.xlu0 %501
    %v504 = vadd.f32 %v498, %v502
    %v505 = vtanh.pop %v504
    %v506 = vmul.f32 %v494, %v505
    %508 = vrot.lane.b32.xlu0 %v506, 64
    %v509 = vpop.permute.xlu0 %508
    %vm511 = vcmask 521220
    %512 = vst.msk [vmem:[#allocation2] sm:$0x30] %vm511, %v509
    %513 = vst.msk [vmem:[#allocation3 + $0x6] sm:$0x30] %vm511, %v509
    %v514 = vrot.slane %v506, 4
    %515 = vrot.lane.b32.xlu0 %v514, 64
    %v516 = vpop.permute.xlu0 %515
    %v517 = vsel %vm179, %v516, 0
    %519 = vmatprep.subr.mxu0 0.0
    %520 = vmatpush1.msra.mxu0 0.0
    %521 = vmatprep.subr.mxu0 0.0
    %522 = vmatpush1.msra.mxu0 0.0
    %523 = vmatprep.subr.mxu0 0.0
    %524 = vmatpush1.msra.mxu0 0.0
    %525 = vmatprep.subr.mxu0 0.0
    %526 = vmatpush1.msra.mxu0 0.0
    %527 = vmatprep.subr.mxu0 0.0
    %528 = vmatpush1.msra.mxu0 0.0
    %529 = vmatprep.subr.mxu0 0.0
    %530 = vmatpush1.msra.mxu0 0.0
    %531 = vmatprep.subr.mxu0 0.0
    %532 = vmatpush1.msra.mxu0 0.0
    %533 = vmatprep.subr.mxu0 0.0
    %534 = vmatpush1.msra.mxu0 0.0
    %535 = vmatprep.subr.mxu0 %v34
    %536 = vmatpush1.msra.mxu0 %v33
    %537 = vmatprep.subr.mxu0 %v32
    %538 = vmatpush1.msra.mxu0 %v31
    %539 = vmatprep.subr.mxu0 %v30
    %540 = vmatpush1.msra.mxu0 %v29
    %541 = vmatprep.subr.mxu0 %v28
    %542 = vmatpush1.msra.mxu0 %v27
    %543 = vmatprep.subr.mxu0 %v26
    %544 = vmatpush1.msra.mxu0 %v25
    %545 = vmatprep.subr.mxu0 %v24
    %546 = vmatpush1.msra.mxu0 %v23
    %547 = vmatprep.subr.mxu0 %v22
    %548 = vmatpush1.msra.mxu0 %v21
    %549 = vmatprep.subr.mxu0 %v20
    %550 = vmatpush1.msra.mxu0 %v19
    %551 = vmatprep.subr.mxu0 0.0
    %552 = vmatpush2.msra.mxu0 0.0
    %553 = vmatprep.subr.mxu0 0.0
    %554 = vmatpush2.msra.mxu0 0.0
    %555 = vmatprep.subr.mxu0 0.0
    %556 = vmatpush2.msra.mxu0 0.0
    %557 = vmatprep.subr.mxu0 0.0
    %558 = vmatpush2.msra.mxu0 0.0
    %559 = vmatprep.subr.mxu0 0.0
    %560 = vmatpush2.msra.mxu0 0.0
    %561 = vmatprep.subr.mxu0 0.0
    %562 = vmatpush2.msra.mxu0 0.0
    %563 = vmatprep.subr.mxu0 0.0
    %564 = vmatpush2.msra.mxu0 0.0
    %565 = vmatprep.subr.mxu0 0.0
    %566 = vmatpush2.msra.mxu0 0.0
    %567 = vmatprep.subr.mxu0 0.0
    %568 = vmatpush2.msra.mxu0 0.0
    %569 = vmatprep.subr.mxu0 0.0
    %570 = vmatpush2.msra.mxu0 0.0
    %571 = vmatprep.subr.mxu0 0.0
    %572 = vmatpush2.msra.mxu0 0.0
    %573 = vmatprep.subr.mxu0 0.0
    %574 = vmatpush2.msra.mxu0 0.0
    %575 = vmatprep.subr.mxu0 0.0
    %576 = vmatpush2.msra.mxu0 0.0
    %577 = vmatprep.subr.mxu0 0.0
    %578 = vmatpush2.msra.mxu0 0.0
    %579 = vmatprep.subr.mxu0 0.0
    %580 = vmatpush2.msra.mxu0 0.0
    %581 = vmatprep.subr.mxu0 0.0
    %582 = vmatpush2.msra.mxu0 0.0
    %583 = vmatprep.mubr.f32.mxu0 0.0
    %584 = vmatmul.mubr.f32.gmra.mxu0 %v517
    %v585 = vpop.f32.mrf.mxu0
    %v586 = vadd.f32 0.0, %v585
    %v587 = vpop.f32.mrf.mxu0
    %v588 = vadd.f32 0.0, %v587
    %589 = vdwg.mxu0
    %v592 = vrot.slane %v586, 2
    %v593 = vrot.slane %v588, 2
    %v596 = vadd.f32 %v169, %v592
    %v597 = vadd.f32 %v171, %v593
    %v598 = vxor.u32 %v596, 2147483648
    %v599 = vmul.f32 %v598, 1.442695
    %v600 = vpow.pop %v599
    %v601 = vadd.f32 %v600, 1.0
    %v602 = vrcp.pop %v601
    %v603 = vmul.f32 1.0, %v602
    %v604 = vtanh.pop %v597
    %v605 = vxor.u32 %v597, 2147483648
    %v606 = vmul.f32 %v605, 1.442695
    %v607 = vpow.pop %v606
    %v608 = vadd.f32 %v607, 1.0
    %v609 = vrcp.pop %v608
    %v610 = vmul.f32 1.0, %v609
    %v612 = vrot.slane %v504, 6
    %v614 = vmul.f32 %v603, %v612
    %v615 = vmul.f32 %v603, %v604
    %617 = vrot.lane.b32.xlu0 %v615, 64
    %v618 = vpop.permute.xlu0 %617
    %v620 = vadd.f32 %v614, %v618
    %v621 = vtanh.pop %v620
    %v622 = vmul.f32 %v610, %v621
    %624 = vrot.lane.b32.xlu0 %v622, 64
    %v625 = vpop.permute.xlu0 %624
    %vm627 = vcmask 523270
    %628 = vst.msk [vmem:[#allocation2] sm:$0xc0] %vm627, %v625
    %629 = vst.msk [vmem:[#allocation3 + $0x2] sm:$0xc0] %vm627, %v625
    %v630 = vrot.slane %v622, 6
    %631 = vrot.lane.b32.xlu0 %v630, 64
    %v632 = vpop.permute.xlu0 %631
    %v633 = vsel %vm179, %v632, 0
    %635 = vmatprep.subr.mxu0 0.0
    %636 = vmatpush1.msra.mxu0 0.0
    %637 = vmatprep.subr.mxu0 0.0
    %638 = vmatpush1.msra.mxu0 0.0
    %639 = vmatprep.subr.mxu0 0.0
    %640 = vmatpush1.msra.mxu0 0.0
    %641 = vmatprep.subr.mxu0 0.0
    %642 = vmatpush1.msra.mxu0 0.0
    %643 = vmatprep.subr.mxu0 0.0
    %644 = vmatpush1.msra.mxu0 0.0
    %645 = vmatprep.subr.mxu0 0.0
    %646 = vmatpush1.msra.mxu0 0.0
    %647 = vmatprep.subr.mxu0 0.0
    %648 = vmatpush1.msra.mxu0 0.0
    %649 = vmatprep.subr.mxu0 0.0
    %650 = vmatpush1.msra.mxu0 0.0
    %651 = vmatprep.subr.mxu0 %v34
    %652 = vmatpush1.msra.mxu0 %v33
    %653 = vmatprep.subr.mxu0 %v32
    %654 = vmatpush1.msra.mxu0 %v31
    %655 = vmatprep.subr.mxu0 %v30
    %656 = vmatpush1.msra.mxu0 %v29
    %657 = vmatprep.subr.mxu0 %v28
    %658 = vmatpush1.msra.mxu0 %v27
    %659 = vmatprep.subr.mxu0 %v26
    %660 = vmatpush1.msra.mxu0 %v25
    %661 = vmatprep.subr.mxu0 %v24
    %662 = vmatpush1.msra.mxu0 %v23
    %663 = vmatprep.subr.mxu0 %v22
    %664 = vmatpush1.msra.mxu0 %v21
    %665 = vmatprep.subr.mxu0 %v20
    %666 = vmatpush1.msra.mxu0 %v19
    %667 = vmatprep.subr.mxu0 0.0
    %668 = vmatpush2.msra.mxu0 0.0
    %669 = vmatprep.subr.mxu0 0.0
    %670 = vmatpush2.msra.mxu0 0.0
    %671 = vmatprep.subr.mxu0 0.0
    %672 = vmatpush2.msra.mxu0 0.0
    %673 = vmatprep.subr.mxu0 0.0
    %674 = vmatpush2.msra.mxu0 0.0
    %675 = vmatprep.subr.mxu0 0.0
    %676 = vmatpush2.msra.mxu0 0.0
    %677 = vmatprep.subr.mxu0 0.0
    %678 = vmatpush2.msra.mxu0 0.0
    %679 = vmatprep.subr.mxu0 0.0
    %680 = vmatpush2.msra.mxu0 0.0
    %681 = vmatprep.subr.mxu0 0.0
    %682 = vmatpush2.msra.mxu0 0.0
    %683 = vmatprep.subr.mxu0 0.0
    %684 = vmatpush2.msra.mxu0 0.0
    %685 = vmatprep.subr.mxu0 0.0
    %686 = vmatpush2.msra.mxu0 0.0
    %687 = vmatprep.subr.mxu0 0.0
    %688 = vmatpush2.msra.mxu0 0.0
    %689 = vmatprep.subr.mxu0 0.0
    %690 = vmatpush2.msra.mxu0 0.0
    %691 = vmatprep.subr.mxu0 0.0
    %692 = vmatpush2.msra.mxu0 0.0
    %693 = vmatprep.subr.mxu0 0.0
    %694 = vmatpush2.msra.mxu0 0.0
    %695 = vmatprep.subr.mxu0 0.0
    %696 = vmatpush2.msra.mxu0 0.0
    %697 = vmatprep.subr.mxu0 0.0
    %698 = vmatpush2.msra.mxu0 0.0
    %699 = vmatprep.mubr.f32.mxu0 0.0
    %700 = vmatmul.mubr.f32.gmra.mxu0 %v633
    %v701 = vpop.f32.mrf.mxu0
    %v702 = vadd.f32 0.0, %v701
    %v703 = vpop.f32.mrf.mxu0
    %v704 = vadd.f32 0.0, %v703
    %705 = vdwg.mxu0
    %v706 = vadd.f32 %v175, %v702
    %v707 = vadd.f32 %v177, %v704
    %v708 = vxor.u32 %v706, 2147483648
    %v709 = vmul.f32 %v708, 1.442695
    %v710 = vpow.pop %v709
    %v711 = vadd.f32 %v710, 1.0
    %v712 = vrcp.pop %v711
    %v713 = vmul.f32 1.0, %v712
    %v714 = vtanh.pop %v707
    %v715 = vxor.u32 %v707, 2147483648
    %v716 = vmul.f32 %v715, 1.442695
    %v717 = vpow.pop %v716
    %v718 = vadd.f32 %v717, 1.0
    %v719 = vrcp.pop %v718
    %v720 = vmul.f32 1.0, %v719
    %v722 = vrot.slane %v620, 6
    %v724 = vmul.f32 %v713, %v722
    %v725 = vmul.f32 %v713, %v714
    %727 = vrot.lane.b32.xlu0 %v725, 64
    %v728 = vpop.permute.xlu0 %727
    %v730 = vadd.f32 %v724, %v728
    %v731 = vtanh.pop %v730
    %v732 = vmul.f32 %v720, %v731
    %734 = vrot.lane.b32.xlu0 %v732, 64
    %v735 = vpop.permute.xlu0 %734
    %737 = vst.msk [vmem:[#allocation2 + $0x8] sm:$0x3] %vm282, %v735
    %738 = vst.msk [vmem:[#allocation3 + $0x6] sm:$0x3] %vm282, %v735
    %v739 = vsel %vm179, %v735, 0
    %741 = vmatprep.subr.mxu0 0.0
    %742 = vmatpush1.msra.mxu0 0.0
    %743 = vmatprep.subr.mxu0 0.0
    %744 = vmatpush1.msra.mxu0 0.0
    %745 = vmatprep.subr.mxu0 0.0
    %746 = vmatpush1.msra.mxu0 0.0
    %747 = vmatprep.subr.mxu0 0.0
    %748 = vmatpush1.msra.mxu0 0.0
    %749 = vmatprep.subr.mxu0 0.0
    %750 = vmatpush1.msra.mxu0 0.0
    %751 = vmatprep.subr.mxu0 0.0
    %752 = vmatpush1.msra.mxu0 0.0
    %753 = vmatprep.subr.mxu0 0.0
    %754 = vmatpush1.msra.mxu0 0.0
    %755 = vmatprep.subr.mxu0 0.0
    %756 = vmatpush1.msra.mxu0 0.0
    %757 = vmatprep.subr.mxu0 %v34
    %758 = vmatpush1.msra.mxu0 %v33
    %759 = vmatprep.subr.mxu0 %v32
    %760 = vmatpush1.msra.mxu0 %v31
    %761 = vmatprep.subr.mxu0 %v30
    %762 = vmatpush1.msra.mxu0 %v29
    %763 = vmatprep.subr.mxu0 %v28
    %764 = vmatpush1.msra.mxu0 %v27
    %765 = vmatprep.subr.mxu0 %v26
    %766 = vmatpush1.msra.mxu0 %v25
    %767 = vmatprep.subr.mxu0 %v24
    %768 = vmatpush1.msra.mxu0 %v23
    %769 = vmatprep.subr.mxu0 %v22
    %770 = vmatpush1.msra.mxu0 %v21
    %771 = vmatprep.subr.mxu0 %v20
    %772 = vmatpush1.msra.mxu0 %v19
    %773 = vmatprep.subr.mxu0 0.0
    %774 = vmatpush2.msra.mxu0 0.0
    %775 = vmatprep.subr.mxu0 0.0
    %776 = vmatpush2.msra.mxu0 0.0
    %777 = vmatprep.subr.mxu0 0.0
    %778 = vmatpush2.msra.mxu0 0.0
    %779 = vmatprep.subr.mxu0 0.0
    %780 = vmatpush2.msra.mxu0 0.0
    %781 = vmatprep.subr.mxu0 0.0
    %782 = vmatpush2.msra.mxu0 0.0
    %783 = vmatprep.subr.mxu0 0.0
    %784 = vmatpush2.msra.mxu0 0.0
    %785 = vmatprep.subr.mxu0 0.0
    %786 = vmatpush2.msra.mxu0 0.0
    %787 = vmatprep.subr.mxu0 0.0
    %788 = vmatpush2.msra.mxu0 0.0
    %789 = vmatprep.subr.mxu0 0.0
    %790 = vmatpush2.msra.mxu0 0.0
    %791 = vmatprep.subr.mxu0 0.0
    %792 = vmatpush2.msra.mxu0 0.0
    %793 = vmatprep.subr.mxu0 0.0
    %794 = vmatpush2.msra.mxu0 0.0
    %795 = vmatprep.subr.mxu0 0.0
    %796 = vmatpush2.msra.mxu0 0.0
    %797 = vmatprep.subr.mxu0 0.0
    %798 = vmatpush2.msra.mxu0 0.0
    %799 = vmatprep.subr.mxu0 0.0
    %800 = vmatpush2.msra.mxu0 0.0
    %801 = vmatprep.subr.mxu0 0.0
    %802 = vmatpush2.msra.mxu0 0.0
    %803 = vmatprep.subr.mxu0 0.0
    %804 = vmatpush2.msra.mxu0 0.0
    %805 = vmatprep.mubr.f32.mxu0 0.0
    %806 = vmatmul.mubr.f32.gmra.mxu0 %v739
    %v807 = vpop.f32.mrf.mxu0
    %v808 = vadd.f32 0.0, %v807
    %v809 = vpop.f32.mrf.mxu0
    %v810 = vadd.f32 0.0, %v809
    %811 = vdwg.mxu0
    %v814 = vrot.slane %v808, 6
    %v815 = vrot.slane %v810, 6
    %v818 = vadd.f32 %v175, %v814
    %v819 = vadd.f32 %v177, %v815
    %v820 = vxor.u32 %v818, 2147483648
    %v821 = vmul.f32 %v820, 1.442695
    %v822 = vpow.pop %v821
    %v823 = vadd.f32 %v822, 1.0
    %v824 = vrcp.pop %v823
    %v825 = vmul.f32 1.0, %v824
    %v826 = vtanh.pop %v819
    %v827 = vxor.u32 %v819, 2147483648
    %v828 = vmul.f32 %v827, 1.442695
    %v829 = vpow.pop %v828
    %v830 = vadd.f32 %v829, 1.0
    %v831 = vrcp.pop %v830
    %v832 = vmul.f32 1.0, %v831
    %v834 = vrot.slane %v730, 6
    %v836 = vmul.f32 %v825, %v834
    %v837 = vmul.f32 %v825, %v826
    %839 = vrot.lane.b32.xlu0 %v837, 64
    %v840 = vpop.permute.xlu0 %839
    %v842 = vadd.f32 %v836, %v840
    %v843 = vtanh.pop %v842
    %v844 = vmul.f32 %v832, %v843
    %846 = vrot.lane.b32.xlu0 %v844, 64
    %v847 = vpop.permute.xlu0 %846
    %849 = vst.msk [vmem:[#allocation2 + $0x8] sm:$0xc] %vm395, %v847
    %850 = vst.msk [vmem:[#allocation3 + $0x2] sm:$0xc] %vm395, %v847
    %v851 = vrot.slane %v844, 2
    %852 = vrot.lane.b32.xlu0 %v851, 64
    %v853 = vpop.permute.xlu0 %852
    %v854 = vsel %vm179, %v853, 0
    %856 = vmatprep.subr.mxu0 0.0
    %857 = vmatpush1.msra.mxu0 0.0
    %858 = vmatprep.subr.mxu0 0.0
    %859 = vmatpush1.msra.mxu0 0.0
    %860 = vmatprep.subr.mxu0 0.0
    %861 = vmatpush1.msra.mxu0 0.0
    %862 = vmatprep.subr.mxu0 0.0
    %863 = vmatpush1.msra.mxu0 0.0
    %864 = vmatprep.subr.mxu0 0.0
    %865 = vmatpush1.msra.mxu0 0.0
    %866 = vmatprep.subr.mxu0 0.0
    %867 = vmatpush1.msra.mxu0 0.0
    %868 = vmatprep.subr.mxu0 0.0
    %869 = vmatpush1.msra.mxu0 0.0
    %870 = vmatprep.subr.mxu0 0.0
    %871 = vmatpush1.msra.mxu0 0.0
    %872 = vmatprep.subr.mxu0 %v34
    %873 = vmatpush1.msra.mxu0 %v33
    %874 = vmatprep.subr.mxu0 %v32
    %875 = vmatpush1.msra.mxu0 %v31
    %876 = vmatprep.subr.mxu0 %v30
    %877 = vmatpush1.msra.mxu0 %v29
    %878 = vmatprep.subr.mxu0 %v28
    %879 = vmatpush1.msra.mxu0 %v27
    %880 = vmatprep.subr.mxu0 %v26
    %881 = vmatpush1.msra.mxu0 %v25
    %882 = vmatprep.subr.mxu0 %v24
    %883 = vmatpush1.msra.mxu0 %v23
    %884 = vmatprep.subr.mxu0 %v22
    %885 = vmatpush1.msra.mxu0 %v21
    %886 = vmatprep.subr.mxu0 %v20
    %887 = vmatpush1.msra.mxu0 %v19
    %888 = vmatprep.subr.mxu0 0.0
    %889 = vmatpush2.msra.mxu0 0.0
    %890 = vmatprep.subr.mxu0 0.0
    %891 = vmatpush2.msra.mxu0 0.0
    %892 = vmatprep.subr.mxu0 0.0
    %893 = vmatpush2.msra.mxu0 0.0
    %894 = vmatprep.subr.mxu0 0.0
    %895 = vmatpush2.msra.mxu0 0.0
    %896 = vmatprep.subr.mxu0 0.0
    %897 = vmatpush2.msra.mxu0 0.0
    %898 = vmatprep.subr.mxu0 0.0
    %899 = vmatpush2.msra.mxu0 0.0
    %900 = vmatprep.subr.mxu0 0.0
    %901 = vmatpush2.msra.mxu0 0.0
    %902 = vmatprep.subr.mxu0 0.0
    %903 = vmatpush2.msra.mxu0 0.0
    %904 = vmatprep.subr.mxu0 0.0
    %905 = vmatpush2.msra.mxu0 0.0
    %906 = vmatprep.subr.mxu0 0.0
    %907 = vmatpush2.msra.mxu0 0.0
    %908 = vmatprep.subr.mxu0 0.0
    %909 = vmatpush2.msra.mxu0 0.0
    %910 = vmatprep.subr.mxu0 0.0
    %911 = vmatpush2.msra.mxu0 0.0
    %912 = vmatprep.subr.mxu0 0.0
    %913 = vmatpush2.msra.mxu0 0.0
    %914 = vmatprep.subr.mxu0 0.0
    %915 = vmatpush2.msra.mxu0 0.0
    %916 = vmatprep.subr.mxu0 0.0
    %917 = vmatpush2.msra.mxu0 0.0
    %918 = vmatprep.subr.mxu0 0.0
    %919 = vmatpush2.msra.mxu0 0.0
    %920 = vmatprep.mubr.f32.mxu0 0.0
    %921 = vmatmul.mubr.f32.gmra.mxu0 %v854
    %v922 = vpop.f32.mrf.mxu0
    %v923 = vadd.f32 0.0, %v922
    %v924 = vpop.f32.mrf.mxu0
    %v925 = vadd.f32 0.0, %v924
    %926 = vdwg.mxu0
    %v929 = vrot.slane %v923, 4
    %v930 = vrot.slane %v925, 4
    %v933 = vadd.f32 %v175, %v929
    %v934 = vadd.f32 %v177, %v930
    %v935 = vxor.u32 %v933, 2147483648
    %v936 = vmul.f32 %v935, 1.442695
    %v937 = vpow.pop %v936
    %v938 = vadd.f32 %v937, 1.0
    %v939 = vrcp.pop %v938
    %v940 = vmul.f32 1.0, %v939
    %v941 = vtanh.pop %v934
    %v942 = vxor.u32 %v934, 2147483648
    %v943 = vmul.f32 %v942, 1.442695
    %v944 = vpow.pop %v943
    %v945 = vadd.f32 %v944, 1.0
    %v946 = vrcp.pop %v945
    %v947 = vmul.f32 1.0, %v946
    %v949 = vrot.slane %v842, 6
    %v951 = vmul.f32 %v940, %v949
    %v952 = vmul.f32 %v940, %v941
    %954 = vrot.lane.b32.xlu0 %v952, 64
    %v955 = vpop.permute.xlu0 %954
    %v957 = vadd.f32 %v951, %v955
    %v958 = vtanh.pop %v957
    %v959 = vmul.f32 %v947, %v958
    %961 = vrot.lane.b32.xlu0 %v959, 64
    %v962 = vpop.permute.xlu0 %961
    %964 = vst.msk [vmem:[#allocation2 + $0x8] sm:$0x30] %vm511, %v962
    %965 = vst.msk [vmem:[#allocation3 - $0x2] sm:$0x30] %vm511, %v962
    %v966 = vrot.slane %v959, 4
    %967 = vrot.lane.b32.xlu0 %v966, 64
    %v968 = vpop.permute.xlu0 %967
    %v969 = vsel %vm179, %v968, 0
    %971 = vmatprep.subr.mxu0 0.0
    %972 = vmatpush1.msra.mxu0 0.0
    %973 = vmatprep.subr.mxu0 0.0
    %974 = vmatpush1.msra.mxu0 0.0
    %975 = vmatprep.subr.mxu0 0.0
    %976 = vmatpush1.msra.mxu0 0.0
    %977 = vmatprep.subr.mxu0 0.0
    %978 = vmatpush1.msra.mxu0 0.0
    %979 = vmatprep.subr.mxu0 0.0
    %980 = vmatpush1.msra.mxu0 0.0
    %981 = vmatprep.subr.mxu0 0.0
    %982 = vmatpush1.msra.mxu0 0.0
    %983 = vmatprep.subr.mxu0 0.0
    %984 = vmatpush1.msra.mxu0 0.0
    %985 = vmatprep.subr.mxu0 0.0
    %986 = vmatpush1.msra.mxu0 0.0
    %987 = vmatprep.subr.mxu0 %v34
    %988 = vmatpush1.msra.mxu0 %v33
    %989 = vmatprep.subr.mxu0 %v32
    %990 = vmatpush1.msra.mxu0 %v31
    %991 = vmatprep.subr.mxu0 %v30
    %992 = vmatpush1.msra.mxu0 %v29
    %993 = vmatprep.subr.mxu0 %v28
    %994 = vmatpush1.msra.mxu0 %v27
    %995 = vmatprep.subr.mxu0 %v26
    %996 = vmatpush1.msra.mxu0 %v25
    %997 = vmatprep.subr.mxu0 %v24
    %998 = vmatpush1.msra.mxu0 %v23
    %999 = vmatprep.subr.mxu0 %v22
    %1000 = vmatpush1.msra.mxu0 %v21
    %1001 = vmatprep.subr.mxu0 %v20
    %1002 = vmatpush1.msra.mxu0 %v19
    %1003 = vmatprep.subr.mxu0 0.0
    %1004 = vmatpush2.msra.mxu0 0.0
    %1005 = vmatprep.subr.mxu0 0.0
    %1006 = vmatpush2.msra.mxu0 0.0
    %1007 = vmatprep.subr.mxu0 0.0
    %1008 = vmatpush2.msra.mxu0 0.0
    %1009 = vmatprep.subr.mxu0 0.0
    %1010 = vmatpush2.msra.mxu0 0.0
    %1011 = vmatprep.subr.mxu0 0.0
    %1012 = vmatpush2.msra.mxu0 0.0
    %1013 = vmatprep.subr.mxu0 0.0
    %1014 = vmatpush2.msra.mxu0 0.0
    %1015 = vmatprep.subr.mxu0 0.0
    %1016 = vmatpush2.msra.mxu0 0.0
    %1017 = vmatprep.subr.mxu0 0.0
    %1018 = vmatpush2.msra.mxu0 0.0
    %1019 = vmatprep.subr.mxu0 0.0
    %1020 = vmatpush2.msra.mxu0 0.0
    %1021 = vmatprep.subr.mxu0 0.0
    %1022 = vmatpush2.msra.mxu0 0.0
    %1023 = vmatprep.subr.mxu0 0.0
    %1024 = vmatpush2.msra.mxu0 0.0
    %1025 = vmatprep.subr.mxu0 0.0
    %1026 = vmatpush2.msra.mxu0 0.0
    %1027 = vmatprep.subr.mxu0 0.0
    %1028 = vmatpush2.msra.mxu0 0.0
    %1029 = vmatprep.subr.mxu0 0.0
    %1030 = vmatpush2.msra.mxu0 0.0
    %1031 = vmatprep.subr.mxu0 0.0
    %1032 = vmatpush2.msra.mxu0 0.0
    %1033 = vmatprep.subr.mxu0 0.0
    %1034 = vmatpush2.msra.mxu0 0.0
    %1035 = vmatprep.mubr.f32.mxu0 0.0
    %1036 = vmatmul.mubr.f32.gmra.mxu0 %v969
    %v1037 = vpop.f32.mrf.mxu0
    %v1038 = vadd.f32 0.0, %v1037
    %v1039 = vpop.f32.mrf.mxu0
    %v1040 = vadd.f32 0.0, %v1039
    %1041 = vdwg.mxu0
    %v1044 = vrot.slane %v1038, 2
    %v1045 = vrot.slane %v1040, 2
    %v1048 = vadd.f32 %v175, %v1044
    %v1049 = vadd.f32 %v177, %v1045
    %v1050 = vxor.u32 %v1048, 2147483648
    %v1051 = vmul.f32 %v1050, 1.442695
    %v1052 = vpow.pop %v1051
    %v1053 = vadd.f32 %v1052, 1.0
    %v1054 = vrcp.pop %v1053
    %v1055 = vmul.f32 1.0, %v1054
    %v1056 = vtanh.pop %v1049
    %v1057 = vxor.u32 %v1049, 2147483648
    %v1058 = vmul.f32 %v1057, 1.442695
    %v1059 = vpow.pop %v1058
    %v1060 = vadd.f32 %v1059, 1.0
    %v1061 = vrcp.pop %v1060
    %v1062 = vmul.f32 1.0, %v1061
    %v1064 = vrot.slane %v957, 6
    %v1066 = vmul.f32 %v1055, %v1064
    %v1067 = vmul.f32 %v1055, %v1056
    %1069 = vrot.lane.b32.xlu0 %v1067, 64
    %v1070 = vpop.permute.xlu0 %1069
    %v1072 = vadd.f32 %v1066, %v1070
    %v1073 = vtanh.pop %v1072
    %v1074 = vmul.f32 %v1062, %v1073
    %1076 = vrot.lane.b32.xlu0 %v1074, 64
    %v1077 = vpop.permute.xlu0 %1076
    %1079 = vst.msk [vmem:[#allocation2 + $0x8] sm:$0xc0] %vm627, %v1077
    %1080 = vst.msk [vmem:[#allocation3 - $0x6] sm:$0xc0] %vm627, %v1077
    %v1081 = vld [vmem:[#allocation2] sm:$0xff]
    %v1082 = vld [vmem:[#allocation2 + $0x8] sm:$0xff]
    %v1083 = vld [vmem:[#allocation3] sm:$0xff]
    %v1084 = vld [vmem:[#allocation3 + $0x8] sm:$0xff]
    %v1086 = vsel %vm179, %v1083, 0
    %v1089 = vsel %vm179, %v1084, 0
    %1091 = vmatprep.subr.mxu0 0.0
    %1092 = vmatpush1.msra.mxu0 0.0
    %1093 = vmatprep.subr.mxu0 0.0
    %1094 = vmatpush1.msra.mxu0 0.0
    %1095 = vmatprep.subr.mxu0 0.0
    %1096 = vmatpush1.msra.mxu0 0.0
    %1097 = vmatprep.subr.mxu0 0.0
    %1098 = vmatpush1.msra.mxu0 0.0
    %1099 = vmatprep.subr.mxu0 0.0
    %1100 = vmatpush1.msra.mxu0 0.0
    %1101 = vmatprep.subr.mxu0 0.0
    %1102 = vmatpush1.msra.mxu0 0.0
    %1103 = vmatprep.subr.mxu0 0.0
    %1104 = vmatpush1.msra.mxu0 0.0
    %1105 = vmatprep.subr.mxu0 0.0
    %1106 = vmatpush1.msra.mxu0 0.0
    %1107 = vmatprep.subr.mxu0 %v66
    %1108 = vmatpush1.msra.mxu0 %v65
    %1109 = vmatprep.subr.mxu0 %v64
    %1110 = vmatpush1.msra.mxu0 %v63
    %1111 = vmatprep.subr.mxu0 %v62
    %1112 = vmatpush1.msra.mxu0 %v61
    %1113 = vmatprep.subr.mxu0 %v60
    %1114 = vmatpush1.msra.mxu0 %v59
    %1115 = vmatprep.subr.mxu0 %v58
    %1116 = vmatpush1.msra.mxu0 %v57
    %1117 = vmatprep.subr.mxu0 %v56
    %1118 = vmatpush1.msra.mxu0 %v55
    %1119 = vmatprep.subr.mxu0 %v54
    %1120 = vmatpush1.msra.mxu0 %v53
    %1121 = vmatprep.subr.mxu0 %v52
    %1122 = vmatpush1.msra.mxu0 %v51
    %1123 = vmatprep.subr.mxu0 0.0
    %1124 = vmatpush2.msra.mxu0 0.0
    %1125 = vmatprep.subr.mxu0 0.0
    %1126 = vmatpush2.msra.mxu0 0.0
    %1127 = vmatprep.subr.mxu0 0.0
    %1128 = vmatpush2.msra.mxu0 0.0
    %1129 = vmatprep.subr.mxu0 0.0
    %1130 = vmatpush2.msra.mxu0 0.0
    %1131 = vmatprep.subr.mxu0 0.0
    %1132 = vmatpush2.msra.mxu0 0.0
    %1133 = vmatprep.subr.mxu0 0.0
    %1134 = vmatpush2.msra.mxu0 0.0
    %1135 = vmatprep.subr.mxu0 0.0
    %1136 = vmatpush2.msra.mxu0 0.0
    %1137 = vmatprep.subr.mxu0 0.0
    %1138 = vmatpush2.msra.mxu0 0.0
    %1139 = vmatprep.subr.mxu0 0.0
    %1140 = vmatpush2.msra.mxu0 0.0
    %1141 = vmatprep.subr.mxu0 0.0
    %1142 = vmatpush2.msra.mxu0 0.0
    %1143 = vmatprep.subr.mxu0 0.0
    %1144 = vmatpush2.msra.mxu0 0.0
    %1145 = vmatprep.subr.mxu0 0.0
    %1146 = vmatpush2.msra.mxu0 0.0
    %1147 = vmatprep.subr.mxu0 0.0
    %1148 = vmatpush2.msra.mxu0 0.0
    %1149 = vmatprep.subr.mxu0 0.0
    %1150 = vmatpush2.msra.mxu0 0.0
    %1151 = vmatprep.subr.mxu0 0.0
    %1152 = vmatpush2.msra.mxu0 0.0
    %1153 = vmatprep.subr.mxu0 0.0
    %1154 = vmatpush2.msra.mxu0 0.0
    %1155 = vmatprep.mubr.f32.mxu0 0.0
    %1156 = vmatmul.mubr.f32.gmra.mxu0 %v1086
    %v1157 = vpop.f32.mrf.mxu0
    %v1158 = vadd.f32 0.0, %v1157
    %v1159 = vpop.f32.mrf.mxu0
    %v1160 = vadd.f32 0.0, %v1159
    %1161 = vmatprep.mubr.f32.mxu0 0.0
    %1162 = vmatmul.mubr.f32.gmra.mxu0 %v1089
    %v1163 = vpop.f32.mrf.mxu0
    %v1164 = vadd.f32 0.0, %v1163
    %v1165 = vpop.f32.mrf.mxu0
    %v1166 = vadd.f32 0.0, %v1165
    %1167 = vdwg.mxu0
    %v1169 = vsel %vm179, %v1081, 0
    %v1172 = vsel %vm179, %v1082, 0
    %1174 = vmatprep.subr.mxu0 0.0
    %1175 = vmatpush1.msra.mxu0 0.0
    %1176 = vmatprep.subr.mxu0 0.0
    %1177 = vmatpush1.msra.mxu0 0.0
    %1178 = vmatprep.subr.mxu0 0.0
    %1179 = vmatpush1.msra.mxu0 0.0
    %1180 = vmatprep.subr.mxu0 0.0
    %1181 = vmatpush1.msra.mxu0 0.0
    %1182 = vmatprep.subr.mxu0 0.0
    %1183 = vmatpush1.msra.mxu0 0.0
    %1184 = vmatprep.subr.mxu0 0.0
    %1185 = vmatpush1.msra.mxu0 0.0
    %1186 = vmatprep.subr.mxu0 0.0
    %1187 = vmatpush1.msra.mxu0 0.0
    %1188 = vmatprep.subr.mxu0 0.0
    %1189 = vmatpush1.msra.mxu0 0.0
    %1190 = vmatprep.subr.mxu0 %v50
    %1191 = vmatpush1.msra.mxu0 %v49
    %1192 = vmatprep.subr.mxu0 %v48
    %1193 = vmatpush1.msra.mxu0 %v47
    %1194 = vmatprep.subr.mxu0 %v46
    %1195 = vmatpush1.msra.mxu0 %v45
    %1196 = vmatprep.subr.mxu0 %v44
    %1197 = vmatpush1.msra.mxu0 %v43
    %1198 = vmatprep.subr.mxu0 %v42
    %1199 = vmatpush1.msra.mxu0 %v41
    %1200 = vmatprep.subr.mxu0 %v40
    %1201 = vmatpush1.msra.mxu0 %v39
    %1202 = vmatprep.subr.mxu0 %v38
    %1203 = vmatpush1.msra.mxu0 %v37
    %1204 = vmatprep.subr.mxu0 %v36
    %1205 = vmatpush1.msra.mxu0 %v35
    %1206 = vmatprep.subr.mxu0 0.0
    %1207 = vmatpush2.msra.mxu0 0.0
    %1208 = vmatprep.subr.mxu0 0.0
    %1209 = vmatpush2.msra.mxu0 0.0
    %1210 = vmatprep.subr.mxu0 0.0
    %1211 = vmatpush2.msra.mxu0 0.0
    %1212 = vmatprep.subr.mxu0 0.0
    %1213 = vmatpush2.msra.mxu0 0.0
    %1214 = vmatprep.subr.mxu0 0.0
    %1215 = vmatpush2.msra.mxu0 0.0
    %1216 = vmatprep.subr.mxu0 0.0
    %1217 = vmatpush2.msra.mxu0 0.0
    %1218 = vmatprep.subr.mxu0 0.0
    %1219 = vmatpush2.msra.mxu0 0.0
    %1220 = vmatprep.subr.mxu0 0.0
    %1221 = vmatpush2.msra.mxu0 0.0
    %1222 = vmatprep.subr.mxu0 0.0
    %1223 = vmatpush2.msra.mxu0 0.0
    %1224 = vmatprep.subr.mxu0 0.0
    %1225 = vmatpush2.msra.mxu0 0.0
    %1226 = vmatprep.subr.mxu0 0.0
    %1227 = vmatpush2.msra.mxu0 0.0
    %1228 = vmatprep.subr.mxu0 0.0
    %1229 = vmatpush2.msra.mxu0 0.0
    %1230 = vmatprep.subr.mxu0 0.0
    %1231 = vmatpush2.msra.mxu0 0.0
    %1232 = vmatprep.subr.mxu0 0.0
    %1233 = vmatpush2.msra.mxu0 0.0
    %1234 = vmatprep.subr.mxu0 0.0
    %1235 = vmatpush2.msra.mxu0 0.0
    %1236 = vmatprep.subr.mxu0 0.0
    %1237 = vmatpush2.msra.mxu0 0.0
    %1238 = vmatprep.mubr.f32.mxu0 0.0
    %1239 = vmatmul.mubr.f32.gmra.mxu0 %v1169
    %v1240 = vpop.f32.mrf.mxu0
    %v1241 = vadd.f32 %v1158, %v1240
    %v1242 = vpop.f32.mrf.mxu0
    %v1243 = vadd.f32 %v1160, %v1242
    %1244 = vmatprep.mubr.f32.mxu0 0.0
    %1245 = vmatmul.mubr.f32.gmra.mxu0 %v1172
    %v1246 = vpop.f32.mrf.mxu0
    %v1247 = vadd.f32 %v1164, %v1246
    %v1248 = vpop.f32.mrf.mxu0
    %v1249 = vadd.f32 %v1166, %v1248
    %1250 = vdwg.mxu0
    %v1251 = vlaneseq
    %v1252 = vshrl.u32 %v1251, 7
    %v1253 = vsub.s32 1, %v1252
    %v1254 = vrot.slane %v83, %v1253
    %v1255 = vlaneseq
    %v1256 = vshrl.u32 %v1255, 7
    %v1257 = vsub.s32 1, %v1256
    %v1258 = vrot.slane %v84, %v1257
    %v1259 = vadd.f32 %v1241, %v1254
    %v1260 = vadd.f32 %v1243, %v1258
    %v1261 = vadd.f32 %v1247, %v1254
    %v1262 = vadd.f32 %v1249, %v1258
    %1263 = vmatprep.subr.mxu0 0.0
    %1264 = vmatpush1.msra.mxu0 0.0
    %1265 = vmatprep.subr.mxu0 0.0
    %1266 = vmatpush1.msra.mxu0 0.0
    %1267 = vmatprep.subr.mxu0 0.0
    %1268 = vmatpush1.msra.mxu0 0.0
    %1269 = vmatprep.subr.mxu0 0.0
    %1270 = vmatpush1.msra.mxu0 0.0
    %1271 = vmatprep.subr.mxu0 0.0
    %1272 = vmatpush1.msra.mxu0 0.0
    %1273 = vmatprep.subr.mxu0 0.0
    %1274 = vmatpush1.msra.mxu0 0.0
    %1275 = vmatprep.subr.mxu0 0.0
    %1276 = vmatpush1.msra.mxu0 0.0
    %1277 = vmatprep.subr.mxu0 0.0
    %1278 = vmatpush1.msra.mxu0 0.0
    %1279 = vmatprep.subr.mxu0 %v82
    %1280 = vmatpush1.msra.mxu0 %v81
    %1281 = vmatprep.subr.mxu0 %v80
    %1282 = vmatpush1.msra.mxu0 %v79
    %1283 = vmatprep.subr.mxu0 %v78
    %1284 = vmatpush1.msra.mxu0 %v77
    %1285 = vmatprep.subr.mxu0 %v76
    %1286 = vmatpush1.msra.mxu0 %v75
    %1287 = vmatprep.subr.mxu0 %v74
    %1288 = vmatpush1.msra.mxu0 %v73
    %1289 = vmatprep.subr.mxu0 %v72
    %1290 = vmatpush1.msra.mxu0 %v71
    %1291 = vmatprep.subr.mxu0 %v70
    %1292 = vmatpush1.msra.mxu0 %v69
    %1293 = vmatprep.subr.mxu0 %v68
    %1294 = vmatpush1.msra.mxu0 %v67
    %1295 = vmatprep.subr.mxu0 0.0
    %1296 = vmatpush2.msra.mxu0 0.0
    %1297 = vmatprep.subr.mxu0 0.0
    %1298 = vmatpush2.msra.mxu0 0.0
    %1299 = vmatprep.subr.mxu0 0.0
    %1300 = vmatpush2.msra.mxu0 0.0
    %1301 = vmatprep.subr.mxu0 0.0
    %1302 = vmatpush2.msra.mxu0 0.0
    %1303 = vmatprep.subr.mxu0 0.0
    %1304 = vmatpush2.msra.mxu0 0.0
    %1305 = vmatprep.subr.mxu0 0.0
    %1306 = vmatpush2.msra.mxu0 0.0
    %1307 = vmatprep.subr.mxu0 0.0
    %1308 = vmatpush2.msra.mxu0 0.0
    %1309 = vmatprep.subr.mxu0 0.0
    %1310 = vmatpush2.msra.mxu0 0.0
    %1311 = vmatprep.subr.mxu0 0.0
    %1312 = vmatpush2.msra.mxu0 0.0
    %1313 = vmatprep.subr.mxu0 0.0
    %1314 = vmatpush2.msra.mxu0 0.0
    %1315 = vmatprep.subr.mxu0 0.0
    %1316 = vmatpush2.msra.mxu0 0.0
    %1317 = vmatprep.subr.mxu0 0.0
    %1318 = vmatpush2.msra.mxu0 0.0
    %1319 = vmatprep.subr.mxu0 0.0
    %1320 = vmatpush2.msra.mxu0 0.0
    %1321 = vmatprep.subr.mxu0 0.0
    %1322 = vmatpush2.msra.mxu0 0.0
    %1323 = vmatprep.subr.mxu0 0.0
    %1324 = vmatpush2.msra.mxu0 0.0
    %1325 = vmatprep.subr.mxu0 0.0
    %1326 = vmatpush2.msra.mxu0 0.0
    %1327 = vmatprep.mubr.f32.mxu0 0.0
    %1328 = vmatmul.mubr.f32.gmra.mxu0 %v181
    %v1329 = vpop.f32.mrf.mxu0
    %v1330 = vadd.f32 0.0, %v1329
    %v1331 = vpop.f32.mrf.mxu0
    %v1332 = vadd.f32 0.0, %v1331
    %1333 = vdwg.mxu0
    %v1334 = vadd.f32 %v1259, %v1330
    %v1335 = vadd.f32 %v1260, %v1332
    %v1336 = vxor.u32 %v1334, 2147483648
    %v1337 = vmul.f32 %v1336, 1.442695
    %v1338 = vpow.pop %v1337
    %v1339 = vadd.f32 %v1338, 1.0
    %v1340 = vrcp.pop %v1339
    %v1341 = vmul.f32 1.0, %v1340
    %v1342 = vtanh.pop %v1335
    %v1343 = vxor.u32 %v1335, 2147483648
    %v1344 = vmul.f32 %v1343, 1.442695
    %v1345 = vpow.pop %v1344
    %v1346 = vadd.f32 %v1345, 1.0
    %v1347 = vrcp.pop %v1346
    %v1348 = vmul.f32 1.0, %v1347
    %v1349 = vmul.f32 %v1341, 0.0
    %v1350 = vmul.f32 %v1341, %v1342
    %1352 = vrot.lane.b32.xlu0 %v1350, 64
    %v1353 = vpop.permute.xlu0 %1352
    %v1355 = vadd.f32 %v1349, %v1353
    %v1356 = vtanh.pop %v1355
    %v1357 = vmul.f32 %v1348, %v1356
    %1359 = vrot.lane.b32.xlu0 %v1357, 64
    %v1360 = vpop.permute.xlu0 %1359
    %1362 = vst.msk [vmem:[#allocation4] sm:$0x3] %vm282, %v1360
    %1363 = vst.msk [vmem:[#allocation5 + $0xe] sm:$0x3] %vm282, %v1360
    %v1364 = vsel %vm179, %v1360, 0
    %1366 = vmatprep.subr.mxu0 0.0
    %1367 = vmatpush1.msra.mxu0 0.0
    %1368 = vmatprep.subr.mxu0 0.0
    %1369 = vmatpush1.msra.mxu0 0.0
    %1370 = vmatprep.subr.mxu0 0.0
    %1371 = vmatpush1.msra.mxu0 0.0
    %1372 = vmatprep.subr.mxu0 0.0
    %1373 = vmatpush1.msra.mxu0 0.0
    %1374 = vmatprep.subr.mxu0 0.0
    %1375 = vmatpush1.msra.mxu0 0.0
    %1376 = vmatprep.subr.mxu0 0.0
    %1377 = vmatpush1.msra.mxu0 0.0
    %1378 = vmatprep.subr.mxu0 0.0
    %1379 = vmatpush1.msra.mxu0 0.0
    %1380 = vmatprep.subr.mxu0 0.0
    %1381 = vmatpush1.msra.mxu0 0.0
    %1382 = vmatprep.subr.mxu0 %v82
    %1383 = vmatpush1.msra.mxu0 %v81
    %1384 = vmatprep.subr.mxu0 %v80
    %1385 = vmatpush1.msra.mxu0 %v79
    %1386 = vmatprep.subr.mxu0 %v78
    %1387 = vmatpush1.msra.mxu0 %v77
    %1388 = vmatprep.subr.mxu0 %v76
    %1389 = vmatpush1.msra.mxu0 %v75
    %1390 = vmatprep.subr.mxu0 %v74
    %1391 = vmatpush1.msra.mxu0 %v73
    %1392 = vmatprep.subr.mxu0 %v72
    %1393 = vmatpush1.msra.mxu0 %v71
    %1394 = vmatprep.subr.mxu0 %v70
    %1395 = vmatpush1.msra.mxu0 %v69
    %1396 = vmatprep.subr.mxu0 %v68
    %1397 = vmatpush1.msra.mxu0 %v67
    %1398 = vmatprep.subr.mxu0 0.0
    %1399 = vmatpush2.msra.mxu0 0.0
    %1400 = vmatprep.subr.mxu0 0.0
    %1401 = vmatpush2.msra.mxu0 0.0
    %1402 = vmatprep.subr.mxu0 0.0
    %1403 = vmatpush2.msra.mxu0 0.0
    %1404 = vmatprep.subr.mxu0 0.0
    %1405 = vmatpush2.msra.mxu0 0.0
    %1406 = vmatprep.subr.mxu0 0.0
    %1407 = vmatpush2.msra.mxu0 0.0
    %1408 = vmatprep.subr.mxu0 0.0
    %1409 = vmatpush2.msra.mxu0 0.0
    %1410 = vmatprep.subr.mxu0 0.0
    %1411 = vmatpush2.msra.mxu0 0.0
    %1412 = vmatprep.subr.mxu0 0.0
    %1413 = vmatpush2.msra.mxu0 0.0
    %1414 = vmatprep.subr.mxu0 0.0
    %1415 = vmatpush2.msra.mxu0 0.0
    %1416 = vmatprep.subr.mxu0 0.0
    %1417 = vmatpush2.msra.mxu0 0.0
    %1418 = vmatprep.subr.mxu0 0.0
    %1419 = vmatpush2.msra.mxu0 0.0
    %1420 = vmatprep.subr.mxu0 0.0
    %1421 = vmatpush2.msra.mxu0 0.0
    %1422 = vmatprep.subr.mxu0 0.0
    %1423 = vmatpush2.msra.mxu0 0.0
    %1424 = vmatprep.subr.mxu0 0.0
    %1425 = vmatpush2.msra.mxu0 0.0
    %1426 = vmatprep.subr.mxu0 0.0
    %1427 = vmatpush2.msra.mxu0 0.0
    %1428 = vmatprep.subr.mxu0 0.0
    %1429 = vmatpush2.msra.mxu0 0.0
    %1430 = vmatprep.mubr.f32.mxu0 0.0
    %1431 = vmatmul.mubr.f32.gmra.mxu0 %v1364
    %v1432 = vpop.f32.mrf.mxu0
    %v1433 = vadd.f32 0.0, %v1432
    %v1434 = vpop.f32.mrf.mxu0
    %v1435 = vadd.f32 0.0, %v1434
    %1436 = vdwg.mxu0
    %v1439 = vrot.slane %v1433, 6
    %v1440 = vrot.slane %v1435, 6
    %v1443 = vadd.f32 %v1259, %v1439
    %v1444 = vadd.f32 %v1260, %v1440
    %v1445 = vxor.u32 %v1443, 2147483648
    %v1446 = vmul.f32 %v1445, 1.442695
    %v1447 = vpow.pop %v1446
    %v1448 = vadd.f32 %v1447, 1.0
    %v1449 = vrcp.pop %v1448
    %v1450 = vmul.f32 1.0, %v1449
    %v1451 = vtanh.pop %v1444
    %v1452 = vxor.u32 %v1444, 2147483648
    %v1453 = vmul.f32 %v1452, 1.442695
    %v1454 = vpow.pop %v1453
    %v1455 = vadd.f32 %v1454, 1.0
    %v1456 = vrcp.pop %v1455
    %v1457 = vmul.f32 1.0, %v1456
    %v1459 = vrot.slane %v1355, 6
    %v1461 = vmul.f32 %v1450, %v1459
    %v1462 = vmul.f32 %v1450, %v1451
    %1464 = vrot.lane.b32.xlu0 %v1462, 64
    %v1465 = vpop.permute.xlu0 %1464
    %v1467 = vadd.f32 %v1461, %v1465
    %v1468 = vtanh.pop %v1467
    %v1469 = vmul.f32 %v1457, %v1468
    %1471 = vrot.lane.b32.xlu0 %v1469, 64
    %v1472 = vpop.permute.xlu0 %1471
    %1474 = vst.msk [vmem:[#allocation4] sm:$0xc] %vm395, %v1472
    %1475 = vst.msk [vmem:[#allocation5 + $0xa] sm:$0xc] %vm395, %v1472
    %v1476 = vrot.slane %v1469, 2
    %1477 = vrot.lane.b32.xlu0 %v1476, 64
    %v1478 = vpop.permute.xlu0 %1477
    %v1479 = vsel %vm179, %v1478, 0
    %1481 = vmatprep.subr.mxu0 0.0
    %1482 = vmatpush1.msra.mxu0 0.0
    %1483 = vmatprep.subr.mxu0 0.0
    %1484 = vmatpush1.msra.mxu0 0.0
    %1485 = vmatprep.subr.mxu0 0.0
    %1486 = vmatpush1.msra.mxu0 0.0
    %1487 = vmatprep.subr.mxu0 0.0
    %1488 = vmatpush1.msra.mxu0 0.0
    %1489 = vmatprep.subr.mxu0 0.0
    %1490 = vmatpush1.msra.mxu0 0.0
    %1491 = vmatprep.subr.mxu0 0.0
    %1492 = vmatpush1.msra.mxu0 0.0
    %1493 = vmatprep.subr.mxu0 0.0
    %1494 = vmatpush1.msra.mxu0 0.0
    %1495 = vmatprep.subr.mxu0 0.0
    %1496 = vmatpush1.msra.mxu0 0.0
    %1497 = vmatprep.subr.mxu0 %v82
    %1498 = vmatpush1.msra.mxu0 %v81
    %1499 = vmatprep.subr.mxu0 %v80
    %1500 = vmatpush1.msra.mxu0 %v79
    %1501 = vmatprep.subr.mxu0 %v78
    %1502 = vmatpush1.msra.mxu0 %v77
    %1503 = vmatprep.subr.mxu0 %v76
    %1504 = vmatpush1.msra.mxu0 %v75
    %1505 = vmatprep.subr.mxu0 %v74
    %1506 = vmatpush1.msra.mxu0 %v73
    %1507 = vmatprep.subr.mxu0 %v72
    %1508 = vmatpush1.msra.mxu0 %v71
    %1509 = vmatprep.subr.mxu0 %v70
    %1510 = vmatpush1.msra.mxu0 %v69
    %1511 = vmatprep.subr.mxu0 %v68
    %1512 = vmatpush1.msra.mxu0 %v67
    %1513 = vmatprep.subr.mxu0 0.0
    %1514 = vmatpush2.msra.mxu0 0.0
    %1515 = vmatprep.subr.mxu0 0.0
    %1516 = vmatpush2.msra.mxu0 0.0
    %1517 = vmatprep.subr.mxu0 0.0
    %1518 = vmatpush2.msra.mxu0 0.0
    %1519 = vmatprep.subr.mxu0 0.0
    %1520 = vmatpush2.msra.mxu0 0.0
    %1521 = vmatprep.subr.mxu0 0.0
    %1522 = vmatpush2.msra.mxu0 0.0
    %1523 = vmatprep.subr.mxu0 0.0
    %1524 = vmatpush2.msra.mxu0 0.0
    %1525 = vmatprep.subr.mxu0 0.0
    %1526 = vmatpush2.msra.mxu0 0.0
    %1527 = vmatprep.subr.mxu0 0.0
    %1528 = vmatpush2.msra.mxu0 0.0
    %1529 = vmatprep.subr.mxu0 0.0
    %1530 = vmatpush2.msra.mxu0 0.0
    %1531 = vmatprep.subr.mxu0 0.0
    %1532 = vmatpush2.msra.mxu0 0.0
    %1533 = vmatprep.subr.mxu0 0.0
    %1534 = vmatpush2.msra.mxu0 0.0
    %1535 = vmatprep.subr.mxu0 0.0
    %1536 = vmatpush2.msra.mxu0 0.0
    %1537 = vmatprep.subr.mxu0 0.0
    %1538 = vmatpush2.msra.mxu0 0.0
    %1539 = vmatprep.subr.mxu0 0.0
    %1540 = vmatpush2.msra.mxu0 0.0
    %1541 = vmatprep.subr.mxu0 0.0
    %1542 = vmatpush2.msra.mxu0 0.0
    %1543 = vmatprep.subr.mxu0 0.0
    %1544 = vmatpush2.msra.mxu0 0.0
    %1545 = vmatprep.mubr.f32.mxu0 0.0
    %1546 = vmatmul.mubr.f32.gmra.mxu0 %v1479
    %v1547 = vpop.f32.mrf.mxu0
    %v1548 = vadd.f32 0.0, %v1547
    %v1549 = vpop.f32.mrf.mxu0
    %v1550 = vadd.f32 0.0, %v1549
    %1551 = vdwg.mxu0
    %v1554 = vrot.slane %v1548, 4
    %v1555 = vrot.slane %v1550, 4
    %v1558 = vadd.f32 %v1259, %v1554
    %v1559 = vadd.f32 %v1260, %v1555
    %v1560 = vxor.u32 %v1558, 2147483648
    %v1561 = vmul.f32 %v1560, 1.442695
    %v1562 = vpow.pop %v1561
    %v1563 = vadd.f32 %v1562, 1.0
    %v1564 = vrcp.pop %v1563
    %v1565 = vmul.f32 1.0, %v1564
    %v1566 = vtanh.pop %v1559
    %v1567 = vxor.u32 %v1559, 2147483648
    %v1568 = vmul.f32 %v1567, 1.442695
    %v1569 = vpow.pop %v1568
    %v1570 = vadd.f32 %v1569, 1.0
    %v1571 = vrcp.pop %v1570
    %v1572 = vmul.f32 1.0, %v1571
    %v1574 = vrot.slane %v1467, 6
    %v1576 = vmul.f32 %v1565, %v1574
    %v1577 = vmul.f32 %v1565, %v1566
    %1579 = vrot.lane.b32.xlu0 %v1577, 64
    %v1580 = vpop.permute.xlu0 %1579
    %v1582 = vadd.f32 %v1576, %v1580
    %v1583 = vtanh.pop %v1582
    %v1584 = vmul.f32 %v1572, %v1583
    %1586 = vrot.lane.b32.xlu0 %v1584, 64
    %v1587 = vpop.permute.xlu0 %1586
    %1589 = vst.msk [vmem:[#allocation4] sm:$0x30] %vm511, %v1587
    %1590 = vst.msk [vmem:[#allocation5 + $0x6] sm:$0x30] %vm511, %v1587
    %v1591 = vrot.slane %v1584, 4
    %1592 = vrot.lane.b32.xlu0 %v1591, 64
    %v1593 = vpop.permute.xlu0 %1592
    %v1594 = vsel %vm179, %v1593, 0
    %1596 = vmatprep.subr.mxu0 0.0
    %1597 = vmatpush1.msra.mxu0 0.0
    %1598 = vmatprep.subr.mxu0 0.0
    %1599 = vmatpush1.msra.mxu0 0.0
    %1600 = vmatprep.subr.mxu0 0.0
    %1601 = vmatpush1.msra.mxu0 0.0
    %1602 = vmatprep.subr.mxu0 0.0
    %1603 = vmatpush1.msra.mxu0 0.0
    %1604 = vmatprep.subr.mxu0 0.0
    %1605 = vmatpush1.msra.mxu0 0.0
    %1606 = vmatprep.subr.mxu0 0.0
    %1607 = vmatpush1.msra.mxu0 0.0
    %1608 = vmatprep.subr.mxu0 0.0
    %1609 = vmatpush1.msra.mxu0 0.0
    %1610 = vmatprep.subr.mxu0 0.0
    %1611 = vmatpush1.msra.mxu0 0.0
    %1612 = vmatprep.subr.mxu0 %v82
    %1613 = vmatpush1.msra.mxu0 %v81
    %1614 = vmatprep.subr.mxu0 %v80
    %1615 = vmatpush1.msra.mxu0 %v79
    %1616 = vmatprep.subr.mxu0 %v78
    %1617 = vmatpush1.msra.mxu0 %v77
    %1618 = vmatprep.subr.mxu0 %v76
    %1619 = vmatpush1.msra.mxu0 %v75
    %1620 = vmatprep.subr.mxu0 %v74
    %1621 = vmatpush1.msra.mxu0 %v73
    %1622 = vmatprep.subr.mxu0 %v72
    %1623 = vmatpush1.msra.mxu0 %v71
    %1624 = vmatprep.subr.mxu0 %v70
    %1625 = vmatpush1.msra.mxu0 %v69
    %1626 = vmatprep.subr.mxu0 %v68
    %1627 = vmatpush1.msra.mxu0 %v67
    %1628 = vmatprep.subr.mxu0 0.0
    %1629 = vmatpush2.msra.mxu0 0.0
    %1630 = vmatprep.subr.mxu0 0.0
    %1631 = vmatpush2.msra.mxu0 0.0
    %1632 = vmatprep.subr.mxu0 0.0
    %1633 = vmatpush2.msra.mxu0 0.0
    %1634 = vmatprep.subr.mxu0 0.0
    %1635 = vmatpush2.msra.mxu0 0.0
    %1636 = vmatprep.subr.mxu0 0.0
    %1637 = vmatpush2.msra.mxu0 0.0
    %1638 = vmatprep.subr.mxu0 0.0
    %1639 = vmatpush2.msra.mxu0 0.0
    %1640 = vmatprep.subr.mxu0 0.0
    %1641 = vmatpush2.msra.mxu0 0.0
    %1642 = vmatprep.subr.mxu0 0.0
    %1643 = vmatpush2.msra.mxu0 0.0
    %1644 = vmatprep.subr.mxu0 0.0
    %1645 = vmatpush2.msra.mxu0 0.0
    %1646 = vmatprep.subr.mxu0 0.0
    %1647 = vmatpush2.msra.mxu0 0.0
    %1648 = vmatprep.subr.mxu0 0.0
    %1649 = vmatpush2.msra.mxu0 0.0
    %1650 = vmatprep.subr.mxu0 0.0
    %1651 = vmatpush2.msra.mxu0 0.0
    %1652 = vmatprep.subr.mxu0 0.0
    %1653 = vmatpush2.msra.mxu0 0.0
    %1654 = vmatprep.subr.mxu0 0.0
    %1655 = vmatpush2.msra.mxu0 0.0
    %1656 = vmatprep.subr.mxu0 0.0
    %1657 = vmatpush2.msra.mxu0 0.0
    %1658 = vmatprep.subr.mxu0 0.0
    %1659 = vmatpush2.msra.mxu0 0.0
    %1660 = vmatprep.mubr.f32.mxu0 0.0
    %1661 = vmatmul.mubr.f32.gmra.mxu0 %v1594
    %v1662 = vpop.f32.mrf.mxu0
    %v1663 = vadd.f32 0.0, %v1662
    %v1664 = vpop.f32.mrf.mxu0
    %v1665 = vadd.f32 0.0, %v1664
    %1666 = vdwg.mxu0
    %v1669 = vrot.slane %v1663, 2
    %v1670 = vrot.slane %v1665, 2
    %v1673 = vadd.f32 %v1259, %v1669
    %v1674 = vadd.f32 %v1260, %v1670
    %v1675 = vxor.u32 %v1673, 2147483648
    %v1676 = vmul.f32 %v1675, 1.442695
    %v1677 = vpow.pop %v1676
    %v1678 = vadd.f32 %v1677, 1.0
    %v1679 = vrcp.pop %v1678
    %v1680 = vmul.f32 1.0, %v1679
    %v1681 = vtanh.pop %v1674
    %v1682 = vxor.u32 %v1674, 2147483648
    %v1683 = vmul.f32 %v1682, 1.442695
    %v1684 = vpow.pop %v1683
    %v1685 = vadd.f32 %v1684, 1.0
    %v1686 = vrcp.pop %v1685
    %v1687 = vmul.f32 1.0, %v1686
    %v1689 = vrot.slane %v1582, 6
    %v1691 = vmul.f32 %v1680, %v1689
    %v1692 = vmul.f32 %v1680, %v1681
    %1694 = vrot.lane.b32.xlu0 %v1692, 64
    %v1695 = vpop.permute.xlu0 %1694
    %v1697 = vadd.f32 %v1691, %v1695
    %v1698 = vtanh.pop %v1697
    %v1699 = vmul.f32 %v1687, %v1698
    %1701 = vrot.lane.b32.xlu0 %v1699, 64
    %v1702 = vpop.permute.xlu0 %1701
    %1704 = vst.msk [vmem:[#allocation4] sm:$0xc0] %vm627, %v1702
    %1705 = vst.msk [vmem:[#allocation5 + $0x2] sm:$0xc0] %vm627, %v1702
    %v1706 = vrot.slane %v1699, 6
    %1707 = vrot.lane.b32.xlu0 %v1706, 64
    %v1708 = vpop.permute.xlu0 %1707
    %v1709 = vsel %vm179, %v1708, 0
    %1711 = vmatprep.subr.mxu0 0.0
    %1712 = vmatpush1.msra.mxu0 0.0
    %1713 = vmatprep.subr.mxu0 0.0
    %1714 = vmatpush1.msra.mxu0 0.0
    %1715 = vmatprep.subr.mxu0 0.0
    %1716 = vmatpush1.msra.mxu0 0.0
    %1717 = vmatprep.subr.mxu0 0.0
    %1718 = vmatpush1.msra.mxu0 0.0
    %1719 = vmatprep.subr.mxu0 0.0
    %1720 = vmatpush1.msra.mxu0 0.0
    %1721 = vmatprep.subr.mxu0 0.0
    %1722 = vmatpush1.msra.mxu0 0.0
    %1723 = vmatprep.subr.mxu0 0.0
    %1724 = vmatpush1.msra.mxu0 0.0
    %1725 = vmatprep.subr.mxu0 0.0
    %1726 = vmatpush1.msra.mxu0 0.0
    %1727 = vmatprep.subr.mxu0 %v82
    %1728 = vmatpush1.msra.mxu0 %v81
    %1729 = vmatprep.subr.mxu0 %v80
    %1730 = vmatpush1.msra.mxu0 %v79
    %1731 = vmatprep.subr.mxu0 %v78
    %1732 = vmatpush1.msra.mxu0 %v77
    %1733 = vmatprep.subr.mxu0 %v76
    %1734 = vmatpush1.msra.mxu0 %v75
    %1735 = vmatprep.subr.mxu0 %v74
    %1736 = vmatpush1.msra.mxu0 %v73
    %1737 = vmatprep.subr.mxu0 %v72
    %1738 = vmatpush1.msra.mxu0 %v71
    %1739 = vmatprep.subr.mxu0 %v70
    %1740 = vmatpush1.msra.mxu0 %v69
    %1741 = vmatprep.subr.mxu0 %v68
    %1742 = vmatpush1.msra.mxu0 %v67
    %1743 = vmatprep.subr.mxu0 0.0
    %1744 = vmatpush2.msra.mxu0 0.0
    %1745 = vmatprep.subr.mxu0 0.0
    %1746 = vmatpush2.msra.mxu0 0.0
    %1747 = vmatprep.subr.mxu0 0.0
    %1748 = vmatpush2.msra.mxu0 0.0
    %1749 = vmatprep.subr.mxu0 0.0
    %1750 = vmatpush2.msra.mxu0 0.0
    %1751 = vmatprep.subr.mxu0 0.0
    %1752 = vmatpush2.msra.mxu0 0.0
    %1753 = vmatprep.subr.mxu0 0.0
    %1754 = vmatpush2.msra.mxu0 0.0
    %1755 = vmatprep.subr.mxu0 0.0
    %1756 = vmatpush2.msra.mxu0 0.0
    %1757 = vmatprep.subr.mxu0 0.0
    %1758 = vmatpush2.msra.mxu0 0.0
    %1759 = vmatprep.subr.mxu0 0.0
    %1760 = vmatpush2.msra.mxu0 0.0
    %1761 = vmatprep.subr.mxu0 0.0
    %1762 = vmatpush2.msra.mxu0 0.0
    %1763 = vmatprep.subr.mxu0 0.0
    %1764 = vmatpush2.msra.mxu0 0.0
    %1765 = vmatprep.subr.mxu0 0.0
    %1766 = vmatpush2.msra.mxu0 0.0
    %1767 = vmatprep.subr.mxu0 0.0
    %1768 = vmatpush2.msra.mxu0 0.0
    %1769 = vmatprep.subr.mxu0 0.0
    %1770 = vmatpush2.msra.mxu0 0.0
    %1771 = vmatprep.subr.mxu0 0.0
    %1772 = vmatpush2.msra.mxu0 0.0
    %1773 = vmatprep.subr.mxu0 0.0
    %1774 = vmatpush2.msra.mxu0 0.0
    %1775 = vmatprep.mubr.f32.mxu0 0.0
    %1776 = vmatmul.mubr.f32.gmra.mxu0 %v1709
    %v1777 = vpop.f32.mrf.mxu0
    %v1778 = vadd.f32 0.0, %v1777
    %v1779 = vpop.f32.mrf.mxu0
    %v1780 = vadd.f32 0.0, %v1779
    %1781 = vdwg.mxu0
    %v1782 = vadd.f32 %v1261, %v1778
    %v1783 = vadd.f32 %v1262, %v1780
    %v1784 = vxor.u32 %v1782, 2147483648
    %v1785 = vmul.f32 %v1784, 1.442695
    %v1786 = vpow.pop %v1785
    %v1787 = vadd.f32 %v1786, 1.0
    %v1788 = vrcp.pop %v1787
    %v1789 = vmul.f32 1.0, %v1788
    %v1790 = vtanh.pop %v1783
    %v1791 = vxor.u32 %v1783, 2147483648
    %v1792 = vmul.f32 %v1791, 1.442695
    %v1793 = vpow.pop %v1792
    %v1794 = vadd.f32 %v1793, 1.0
    %v1795 = vrcp.pop %v1794
    %v1796 = vmul.f32 1.0, %v1795
    %v1798 = vrot.slane %v1697, 6
    %v1800 = vmul.f32 %v1789, %v1798
    %v1801 = vmul.f32 %v1789, %v1790
    %1803 = vrot.lane.b32.xlu0 %v1801, 64
    %v1804 = vpop.permute.xlu0 %1803
    %v1806 = vadd.f32 %v1800, %v1804
    %v1807 = vtanh.pop %v1806
    %v1808 = vmul.f32 %v1796, %v1807
    %1810 = vrot.lane.b32.xlu0 %v1808, 64
    %v1811 = vpop.permute.xlu0 %1810
    %1813 = vst.msk [vmem:[#allocation4 + $0x8] sm:$0x3] %vm282, %v1811
    %1814 = vst.msk [vmem:[#allocation5 + $0x6] sm:$0x3] %vm282, %v1811
    %v1815 = vsel %vm179, %v1811, 0
    %1817 = vmatprep.subr.mxu0 0.0
    %1818 = vmatpush1.msra.mxu0 0.0
    %1819 = vmatprep.subr.mxu0 0.0
    %1820 = vmatpush1.msra.mxu0 0.0
    %1821 = vmatprep.subr.mxu0 0.0
    %1822 = vmatpush1.msra.mxu0 0.0
    %1823 = vmatprep.subr.mxu0 0.0
    %1824 = vmatpush1.msra.mxu0 0.0
    %1825 = vmatprep.subr.mxu0 0.0
    %1826 = vmatpush1.msra.mxu0 0.0
    %1827 = vmatprep.subr.mxu0 0.0
    %1828 = vmatpush1.msra.mxu0 0.0
    %1829 = vmatprep.subr.mxu0 0.0
    %1830 = vmatpush1.msra.mxu0 0.0
    %1831 = vmatprep.subr.mxu0 0.0
    %1832 = vmatpush1.msra.mxu0 0.0
    %1833 = vmatprep.subr.mxu0 %v82
    %1834 = vmatpush1.msra.mxu0 %v81
    %1835 = vmatprep.subr.mxu0 %v80
    %1836 = vmatpush1.msra.mxu0 %v79
    %1837 = vmatprep.subr.mxu0 %v78
    %1838 = vmatpush1.msra.mxu0 %v77
    %1839 = vmatprep.subr.mxu0 %v76
    %1840 = vmatpush1.msra.mxu0 %v75
    %1841 = vmatprep.subr.mxu0 %v74
    %1842 = vmatpush1.msra.mxu0 %v73
    %1843 = vmatprep.subr.mxu0 %v72
    %1844 = vmatpush1.msra.mxu0 %v71
    %1845 = vmatprep.subr.mxu0 %v70
    %1846 = vmatpush1.msra.mxu0 %v69
    %1847 = vmatprep.subr.mxu0 %v68
    %1848 = vmatpush1.msra.mxu0 %v67
    %1849 = vmatprep.subr.mxu0 0.0
    %1850 = vmatpush2.msra.mxu0 0.0
    %1851 = vmatprep.subr.mxu0 0.0
    %1852 = vmatpush2.msra.mxu0 0.0
    %1853 = vmatprep.subr.mxu0 0.0
    %1854 = vmatpush2.msra.mxu0 0.0
    %1855 = vmatprep.subr.mxu0 0.0
    %1856 = vmatpush2.msra.mxu0 0.0
    %1857 = vmatprep.subr.mxu0 0.0
    %1858 = vmatpush2.msra.mxu0 0.0
    %1859 = vmatprep.subr.mxu0 0.0
    %1860 = vmatpush2.msra.mxu0 0.0
    %1861 = vmatprep.subr.mxu0 0.0
    %1862 = vmatpush2.msra.mxu0 0.0
    %1863 = vmatprep.subr.mxu0 0.0
    %1864 = vmatpush2.msra.mxu0 0.0
    %1865 = vmatprep.subr.mxu0 0.0
    %1866 = vmatpush2.msra.mxu0 0.0
    %1867 = vmatprep.subr.mxu0 0.0
    %1868 = vmatpush2.msra.mxu0 0.0
    %1869 = vmatprep.subr.mxu0 0.0
    %1870 = vmatpush2.msra.mxu0 0.0
    %1871 = vmatprep.subr.mxu0 0.0
    %1872 = vmatpush2.msra.mxu0 0.0
    %1873 = vmatprep.subr.mxu0 0.0
    %1874 = vmatpush2.msra.mxu0 0.0
    %1875 = vmatprep.subr.mxu0 0.0
    %1876 = vmatpush2.msra.mxu0 0.0
    %1877 = vmatprep.subr.mxu0 0.0
    %1878 = vmatpush2.msra.mxu0 0.0
    %1879 = vmatprep.subr.mxu0 0.0
    %1880 = vmatpush2.msra.mxu0 0.0
    %1881 = vmatprep.mubr.f32.mxu0 0.0
    %1882 = vmatmul.mubr.f32.gmra.mxu0 %v1815
    %v1883 = vpop.f32.mrf.mxu0
    %v1884 = vadd.f32 0.0, %v1883
    %v1885 = vpop.f32.mrf.mxu0
    %v1886 = vadd.f32 0.0, %v1885
    %1887 = vdwg.mxu0
    %v1890 = vrot.slane %v1884, 6
    %v1891 = vrot.slane %v1886, 6
    %v1894 = vadd.f32 %v1261, %v1890
    %v1895 = vadd.f32 %v1262, %v1891
    %v1896 = vxor.u32 %v1894, 2147483648
    %v1897 = vmul.f32 %v1896, 1.442695
    %v1898 = vpow.pop %v1897
    %v1899 = vadd.f32 %v1898, 1.0
    %v1900 = vrcp.pop %v1899
    %v1901 = vmul.f32 1.0, %v1900
    %v1902 = vtanh.pop %v1895
    %v1903 = vxor.u32 %v1895, 2147483648
    %v1904 = vmul.f32 %v1903, 1.442695
    %v1905 = vpow.pop %v1904
    %v1906 = vadd.f32 %v1905, 1.0
    %v1907 = vrcp.pop %v1906
    %v1908 = vmul.f32 1.0, %v1907
    %v1910 = vrot.slane %v1806, 6
    %v1912 = vmul.f32 %v1901, %v1910
    %v1913 = vmul.f32 %v1901, %v1902
    %1915 = vrot.lane.b32.xlu0 %v1913, 64
    %v1916 = vpop.permute.xlu0 %1915
    %v1918 = vadd.f32 %v1912, %v1916
    %v1919 = vtanh.pop %v1918
    %v1920 = vmul.f32 %v1908, %v1919
    %1922 = vrot.lane.b32.xlu0 %v1920, 64
    %v1923 = vpop.permute.xlu0 %1922
    %1925 = vst.msk [vmem:[#allocation4 + $0x8] sm:$0xc] %vm395, %v1923
    %1926 = vst.msk [vmem:[#allocation5 + $0x2] sm:$0xc] %vm395, %v1923
    %v1927 = vrot.slane %v1920, 2
    %1928 = vrot.lane.b32.xlu0 %v1927, 64
    %v1929 = vpop.permute.xlu0 %1928
    %v1930 = vsel %vm179, %v1929, 0
    %1932 = vmatprep.subr.mxu0 0.0
    %1933 = vmatpush1.msra.mxu0 0.0
    %1934 = vmatprep.subr.mxu0 0.0
    %1935 = vmatpush1.msra.mxu0 0.0
    %1936 = vmatprep.subr.mxu0 0.0
    %1937 = vmatpush1.msra.mxu0 0.0
    %1938 = vmatprep.subr.mxu0 0.0
    %1939 = vmatpush1.msra.mxu0 0.0
    %1940 = vmatprep.subr.mxu0 0.0
    %1941 = vmatpush1.msra.mxu0 0.0
    %1942 = vmatprep.subr.mxu0 0.0
    %1943 = vmatpush1.msra.mxu0 0.0
    %1944 = vmatprep.subr.mxu0 0.0
    %1945 = vmatpush1.msra.mxu0 0.0
    %1946 = vmatprep.subr.mxu0 0.0
    %1947 = vmatpush1.msra.mxu0 0.0
    %1948 = vmatprep.subr.mxu0 %v82
    %1949 = vmatpush1.msra.mxu0 %v81
    %1950 = vmatprep.subr.mxu0 %v80
    %1951 = vmatpush1.msra.mxu0 %v79
    %1952 = vmatprep.subr.mxu0 %v78
    %1953 = vmatpush1.msra.mxu0 %v77
    %1954 = vmatprep.subr.mxu0 %v76
    %1955 = vmatpush1.msra.mxu0 %v75
    %1956 = vmatprep.subr.mxu0 %v74
    %1957 = vmatpush1.msra.mxu0 %v73
    %1958 = vmatprep.subr.mxu0 %v72
    %1959 = vmatpush1.msra.mxu0 %v71
    %1960 = vmatprep.subr.mxu0 %v70
    %1961 = vmatpush1.msra.mxu0 %v69
    %1962 = vmatprep.subr.mxu0 %v68
    %1963 = vmatpush1.msra.mxu0 %v67
    %1964 = vmatprep.subr.mxu0 0.0
    %1965 = vmatpush2.msra.mxu0 0.0
    %1966 = vmatprep.subr.mxu0 0.0
    %1967 = vmatpush2.msra.mxu0 0.0
    %1968 = vmatprep.subr.mxu0 0.0
    %1969 = vmatpush2.msra.mxu0 0.0
    %1970 = vmatprep.subr.mxu0 0.0
    %1971 = vmatpush2.msra.mxu0 0.0
    %1972 = vmatprep.subr.mxu0 0.0
    %1973 = vmatpush2.msra.mxu0 0.0
    %1974 = vmatprep.subr.mxu0 0.0
    %1975 = vmatpush2.msra.mxu0 0.0
    %1976 = vmatprep.subr.mxu0 0.0
    %1977 = vmatpush2.msra.mxu0 0.0
    %1978 = vmatprep.subr.mxu0 0.0
    %1979 = vmatpush2.msra.mxu0 0.0
    %1980 = vmatprep.subr.mxu0 0.0
    %1981 = vmatpush2.msra.mxu0 0.0
    %1982 = vmatprep.subr.mxu0 0.0
    %1983 = vmatpush2.msra.mxu0 0.0
    %1984 = vmatprep.subr.mxu0 0.0
    %1985 = vmatpush2.msra.mxu0 0.0
    %1986 = vmatprep.subr.mxu0 0.0
    %1987 = vmatpush2.msra.mxu0 0.0
    %1988 = vmatprep.subr.mxu0 0.0
    %1989 = vmatpush2.msra.mxu0 0.0
    %1990 = vmatprep.subr.mxu0 0.0
    %1991 = vmatpush2.msra.mxu0 0.0
    %1992 = vmatprep.subr.mxu0 0.0
    %1993 = vmatpush2.msra.mxu0 0.0
    %1994 = vmatprep.subr.mxu0 0.0
    %1995 = vmatpush2.msra.mxu0 0.0
    %1996 = vmatprep.mubr.f32.mxu0 0.0
    %1997 = vmatmul.mubr.f32.gmra.mxu0 %v1930
    %v1998 = vpop.f32.mrf.mxu0
    %v1999 = vadd.f32 0.0, %v1998
    %v2000 = vpop.f32.mrf.mxu0
    %v2001 = vadd.f32 0.0, %v2000
    %2002 = vdwg.mxu0
    %v2005 = vrot.slane %v1999, 4
    %v2006 = vrot.slane %v2001, 4
    %v2009 = vadd.f32 %v1261, %v2005
    %v2010 = vadd.f32 %v1262, %v2006
    %v2011 = vxor.u32 %v2009, 2147483648
    %v2012 = vmul.f32 %v2011, 1.442695
    %v2013 = vpow.pop %v2012
    %v2014 = vadd.f32 %v2013, 1.0
    %v2015 = vrcp.pop %v2014
    %v2016 = vmul.f32 1.0, %v2015
    %v2017 = vtanh.pop %v2010
    %v2018 = vxor.u32 %v2010, 2147483648
    %v2019 = vmul.f32 %v2018, 1.442695
    %v2020 = vpow.pop %v2019
    %v2021 = vadd.f32 %v2020, 1.0
    %v2022 = vrcp.pop %v2021
    %v2023 = vmul.f32 1.0, %v2022
    %v2025 = vrot.slane %v1918, 6
    %v2027 = vmul.f32 %v2016, %v2025
    %v2028 = vmul.f32 %v2016, %v2017
    %2030 = vrot.lane.b32.xlu0 %v2028, 64
    %v2031 = vpop.permute.xlu0 %2030
    %v2033 = vadd.f32 %v2027, %v2031
    %v2034 = vtanh.pop %v2033
    %v2035 = vmul.f32 %v2023, %v2034
    %2037 = vrot.lane.b32.xlu0 %v2035, 64
    %v2038 = vpop.permute.xlu0 %2037
    %2040 = vst.msk [vmem:[#allocation4 + $0x8] sm:$0x30] %vm511, %v2038
    %2041 = vst.msk [vmem:[#allocation5 - $0x2] sm:$0x30] %vm511, %v2038
    %v2042 = vrot.slane %v2035, 4
    %2043 = vrot.lane.b32.xlu0 %v2042, 64
    %v2044 = vpop.permute.xlu0 %2043
    %v2045 = vsel %vm179, %v2044, 0
    %2047 = vmatprep.subr.mxu0 0.0
    %2048 = vmatpush1.msra.mxu0 0.0
    %2049 = vmatprep.subr.mxu0 0.0
    %2050 = vmatpush1.msra.mxu0 0.0
    %2051 = vmatprep.subr.mxu0 0.0
    %2052 = vmatpush1.msra.mxu0 0.0
    %2053 = vmatprep.subr.mxu0 0.0
    %2054 = vmatpush1.msra.mxu0 0.0
    %2055 = vmatprep.subr.mxu0 0.0
    %2056 = vmatpush1.msra.mxu0 0.0
    %2057 = vmatprep.subr.mxu0 0.0
    %2058 = vmatpush1.msra.mxu0 0.0
    %2059 = vmatprep.subr.mxu0 0.0
    %2060 = vmatpush1.msra.mxu0 0.0
    %2061 = vmatprep.subr.mxu0 0.0
    %2062 = vmatpush1.msra.mxu0 0.0
    %2063 = vmatprep.subr.mxu0 %v82
    %2064 = vmatpush1.msra.mxu0 %v81
    %2065 = vmatprep.subr.mxu0 %v80
    %2066 = vmatpush1.msra.mxu0 %v79
    %2067 = vmatprep.subr.mxu0 %v78
    %2068 = vmatpush1.msra.mxu0 %v77
    %2069 = vmatprep.subr.mxu0 %v76
    %2070 = vmatpush1.msra.mxu0 %v75
    %2071 = vmatprep.subr.mxu0 %v74
    %2072 = vmatpush1.msra.mxu0 %v73
    %2073 = vmatprep.subr.mxu0 %v72
    %2074 = vmatpush1.msra.mxu0 %v71
    %2075 = vmatprep.subr.mxu0 %v70
    %2076 = vmatpush1.msra.mxu0 %v69
    %2077 = vmatprep.subr.mxu0 %v68
    %2078 = vmatpush1.msra.mxu0 %v67
    %2079 = vmatprep.subr.mxu0 0.0
    %2080 = vmatpush2.msra.mxu0 0.0
    %2081 = vmatprep.subr.mxu0 0.0
    %2082 = vmatpush2.msra.mxu0 0.0
    %2083 = vmatprep.subr.mxu0 0.0
    %2084 = vmatpush2.msra.mxu0 0.0
    %2085 = vmatprep.subr.mxu0 0.0
    %2086 = vmatpush2.msra.mxu0 0.0
    %2087 = vmatprep.subr.mxu0 0.0
    %2088 = vmatpush2.msra.mxu0 0.0
    %2089 = vmatprep.subr.mxu0 0.0
    %2090 = vmatpush2.msra.mxu0 0.0
    %2091 = vmatprep.subr.mxu0 0.0
    %2092 = vmatpush2.msra.mxu0 0.0
    %2093 = vmatprep.subr.mxu0 0.0
    %2094 = vmatpush2.msra.mxu0 0.0
    %2095 = vmatprep.subr.mxu0 0.0
    %2096 = vmatpush2.msra.mxu0 0.0
    %2097 = vmatprep.subr.mxu0 0.0
    %2098 = vmatpush2.msra.mxu0 0.0
    %2099 = vmatprep.subr.mxu0 0.0
    %2100 = vmatpush2.msra.mxu0 0.0
    %2101 = vmatprep.subr.mxu0 0.0
    %2102 = vmatpush2.msra.mxu0 0.0
    %2103 = vmatprep.subr.mxu0 0.0
    %2104 = vmatpush2.msra.mxu0 0.0
    %2105 = vmatprep.subr.mxu0 0.0
    %2106 = vmatpush2.msra.mxu0 0.0
    %2107 = vmatprep.subr.mxu0 0.0
    %2108 = vmatpush2.msra.mxu0 0.0
    %2109 = vmatprep.subr.mxu0 0.0
    %2110 = vmatpush2.msra.mxu0 0.0
    %2111 = vmatprep.mubr.f32.mxu0 0.0
    %2112 = vmatmul.mubr.f32.gmra.mxu0 %v2045
    %v2113 = vpop.f32.mrf.mxu0
    %v2114 = vadd.f32 0.0, %v2113
    %v2115 = vpop.f32.mrf.mxu0
    %v2116 = vadd.f32 0.0, %v2115
    %2117 = vdwg.mxu0
    %v2120 = vrot.slane %v2114, 2
    %v2121 = vrot.slane %v2116, 2
    %v2124 = vadd.f32 %v1261, %v2120
    %v2125 = vadd.f32 %v1262, %v2121
    %v2126 = vxor.u32 %v2124, 2147483648
    %v2127 = vmul.f32 %v2126, 1.442695
    %v2128 = vpow.pop %v2127
    %v2129 = vadd.f32 %v2128, 1.0
    %v2130 = vrcp.pop %v2129
    %v2131 = vmul.f32 1.0, %v2130
    %v2132 = vtanh.pop %v2125
    %v2133 = vxor.u32 %v2125, 2147483648
    %v2134 = vmul.f32 %v2133, 1.442695
    %v2135 = vpow.pop %v2134
    %v2136 = vadd.f32 %v2135, 1.0
    %v2137 = vrcp.pop %v2136
    %v2138 = vmul.f32 1.0, %v2137
    %v2140 = vrot.slane %v2033, 6
    %v2142 = vmul.f32 %v2131, %v2140
    %v2143 = vmul.f32 %v2131, %v2132
    %2145 = vrot.lane.b32.xlu0 %v2143, 64
    %v2146 = vpop.permute.xlu0 %2145
    %v2148 = vadd.f32 %v2142, %v2146
    %v2149 = vtanh.pop %v2148
    %v2150 = vmul.f32 %v2138, %v2149
    %2152 = vrot.lane.b32.xlu0 %v2150, 64
    %v2153 = vpop.permute.xlu0 %2152
    %2155 = vst.msk [vmem:[#allocation4 + $0x8] sm:$0xc0] %vm627, %v2153
    %2156 = vst.msk [vmem:[#allocation5 - $0x6] sm:$0xc0] %vm627, %v2153
    %v2157 = vlaneseq
    %v2158 = vand.u32 %v2157, 127
    %vm2159 = vcmp.lt.s32.totalorder %v2158, 32
    %v2160 = vld [vmem:[#allocation4] sm:$0xff]
    %v2161 = vld [vmem:[#allocation4 + $0x8] sm:$0xff]
    %v2162 = vld [vmem:[#allocation5] sm:$0xff]
    %v2163 = vld [vmem:[#allocation5 + $0x8] sm:$0xff]
    %v2164 = vsel %vm2159, %v2160, %v2162
    %v2165 = vsel %vm2159, %v2161, %v2163
    %v2166 = vld [vmem:[%s2] sm:$0xff]
    %v2167 = vld [vmem:[%s2 + $0x8] sm:$0xff]
    %v2168 = vld [vmem:[%s2 + $0x10] sm:$0xff]
    %v2169 = vld [vmem:[%s2 + $0x18] sm:$0xff]
    %v2170 = vld [vmem:[%s2 + $0x20] sm:$0xff]
    %v2171 = vld [vmem:[%s2 + $0x28] sm:$0xff]
    %v2172 = vld [vmem:[%s2 + $0x30] sm:$0xff]
    %v2173 = vld [vmem:[%s2 + $0x38] sm:$0xff]
    %v2174 = vld [vmem:[%s2 + $0x40] sm:$0xff]
    %v2175 = vld [vmem:[%s2 + $0x48] sm:$0xff]
    %v2176 = vld [vmem:[%s2 + $0x50] sm:$0xff]
    %v2177 = vld [vmem:[%s2 + $0x58] sm:$0xff]
    %v2178 = vld [vmem:[%s2 + $0x60] sm:$0xff]
    %v2179 = vld [vmem:[%s2 + $0x68] sm:$0xff]
    %v2180 = vld [vmem:[%s2 + $0x70] sm:$0xff]
    %v2181 = vld [vmem:[%s2 + $0x78] sm:$0xff]
    %v2182 = vld [vmem:[%s2 + $0x80] sm:$0xff]
    %v2183 = vld [vmem:[%s2 + $0x88] sm:$0xff]
    %v2184 = vld [vmem:[%s2 + $0x90] sm:$0xff]
    %v2185 = vld [vmem:[%s2 + $0x98] sm:$0xff]
    %v2186 = vld [vmem:[%s2 + $0xa0] sm:$0xff]
    %v2187 = vld [vmem:[%s2 + $0xa8] sm:$0xff]
    %v2188 = vlaneseq
    %v2189 = vshrl.u32 %v2188, 7
    %v2190 = vsub.s32 0, %v2189
    %v2191 = vrot.slane %v2186, %v2190
    %v2192 = vmul.f32 %v2164, %v2191
    %v2193 = vmul.f32 %v2165, %v2191
    %v2194 = vsel %vm179, %v2192, 0.0
    %2195 = vadd.xlane.f32.xlu0 %v2194
    %v2196 = vpop.xlane.xlu0 %2195
    %v2197 = vsel %vm179, %v2193, 0.0
    %2198 = vadd.xlane.f32.xlu0 %v2197
    %v2199 = vpop.xlane.xlu0 %2198
    %v2200 = vlaneseq
    %v2201 = vshrl.u32 %v2200, 7
    %v2202 = vsub.s32 3, %v2201
    %v2203 = vrot.slane %v2187, %v2202
    %v2204 = vadd.f32 %v2196, %v2203
    %v2205 = vadd.f32 %v2199, %v2203
    %vm2206 = vcmask 7168
    %v2207 = vsel %vm2206, %v2204, -inf
    %v2208 = vsel %vm2206, %v2205, -inf
    %v2209 = vmax.f32 %v2207, %v2208
    %v2210 = vrot.slane %v2209, 4
    %v2211 = vmax.f32 %v2209, %v2210
    %v2212 = vrot.slane %v2211, 2
    %v2213 = vmax.f32 %v2211, %v2212
    %v2214 = vrot.slane %v2213, 1
    %v2215 = vmax.f32 %v2213, %v2214
    %v2216 = vsub.f32 %v2204, %v2215
    %v2217 = vsub.f32 %v2205, %v2215
    %v2218 = vmul.f32 %v2216, 1.442695
    %v2219 = vpow.pop %v2218
    %v2220 = vmul.f32 %v2217, 1.442695
    %v2221 = vpow.pop %v2220
    %2223 = vset.pattern.permute.xlu0 0
    %2224 = vperm.xlu0 %2223, %v2219
    %v2225 = vpop.permute.xlu0 %2224
    %v2227 = vmul.f32 %v2164, %v2225
    %v2228 = vadd.f32 %v2227, 0.0
    %v2229 = vadd.f32 %v2219, 0.0
    %v2231 = vrot.slane %v2227, 2
    %v2233 = vadd.f32 %v2228, %v2231
    %v2234 = vrot.slane %v2219, 2
    %v2236 = vadd.f32 %v2229, %v2234
    %v2237 = vrot.slane %v2227, 4
    %v2239 = vadd.f32 %v2233, %v2237
    %v2240 = vrot.slane %v2219, 4
    %v2242 = vadd.f32 %v2236, %v2240
    %v2243 = vrot.slane %v2227, 6
    %v2245 = vadd.f32 %v2239, %v2243
    %v2246 = vrot.slane %v2219, 6
    %v2248 = vadd.f32 %v2242, %v2246
    %2250 = vset.pattern.permute.xlu0 0
    %2251 = vperm.xlu0 %2250, %v2221
    %v2252 = vpop.permute.xlu0 %2251
    %v2254 = vmul.f32 %v2165, %v2252
    %v2255 = vadd.f32 %v2245, %v2254
    %v2256 = vadd.f32 %v2248, %v2221
    %v2258 = vrot.slane %v2254, 2
    %v2260 = vadd.f32 %v2255, %v2258
    %v2261 = vrot.slane %v2221, 2
    %v2263 = vadd.f32 %v2256, %v2261
    %v2264 = vrot.slane %v2254, 4
    %v2266 = vadd.f32 %v2260, %v2264
    %v2267 = vrot.slane %v2221, 4
    %v2269 = vadd.f32 %v2263, %v2267
    %v2270 = vrot.slane %v2254, 6
    %v2272 = vadd.f32 %v2266, %v2270
    %v2273 = vrot.slane %v2221, 6
    %v2275 = vadd.f32 %v2269, %v2273
    %v2276 = vrcp.pop %v2275
    %v2277 = vmul.f32 1.0, %v2276
    %2279 = vset.pattern.permute.xlu0 0
    %2280 = vperm.xlu0 %2279, %v2277
    %v2281 = vpop.permute.xlu0 %2280
    %v2283 = vmul.f32 %v2272, %v2281
    %v2284 = vlaneseq
    %v2285 = vshrl.u32 %v2284, 7
    %v2286 = vsub.s32 2, %v2285
    %v2287 = vrot.slane %v2186, %v2286
    %v2289 = vsel %vm179, %v2283, 0
    %2291 = vmatprep.subr.mxu0 0.0
    %2292 = vmatpush1.msra.mxu0 0.0
    %2293 = vmatprep.subr.mxu0 0.0
    %2294 = vmatpush1.msra.mxu0 0.0
    %2295 = vmatprep.subr.mxu0 0.0
    %2296 = vmatpush1.msra.mxu0 0.0
    %2297 = vmatprep.subr.mxu0 0.0
    %2298 = vmatpush1.msra.mxu0 0.0
    %2299 = vmatprep.subr.mxu0 0.0
    %2300 = vmatpush1.msra.mxu0 0.0
    %2301 = vmatprep.subr.mxu0 0.0
    %2302 = vmatpush1.msra.mxu0 0.0
    %2303 = vmatprep.subr.mxu0 0.0
    %2304 = vmatpush1.msra.mxu0 0.0
    %2305 = vmatprep.subr.mxu0 0.0
    %2306 = vmatpush1.msra.mxu0 0.0
    %2307 = vmatprep.subr.mxu0 0.0
    %2308 = vmatpush1.msra.mxu0 %v2173
    %2309 = vmatprep.subr.mxu0 0.0
    %2310 = vmatpush1.msra.mxu0 %v2172
    %2311 = vmatprep.subr.mxu0 0.0
    %2312 = vmatpush1.msra.mxu0 %v2171
    %2313 = vmatprep.subr.mxu0 0.0
    %2314 = vmatpush1.msra.mxu0 %v2170
    %2315 = vmatprep.subr.mxu0 0.0
    %2316 = vmatpush1.msra.mxu0 %v2169
    %2317 = vmatprep.subr.mxu0 0.0
    %2318 = vmatpush1.msra.mxu0 %v2168
    %2319 = vmatprep.subr.mxu0 0.0
    %2320 = vmatpush1.msra.mxu0 %v2167
    %2321 = vmatprep.subr.mxu0 0.0
    %2322 = vmatpush1.msra.mxu0 %v2166
    %2323 = vmatprep.subr.mxu0 0.0
    %2324 = vmatpush2.msra.mxu0 0.0
    %2325 = vmatprep.subr.mxu0 0.0
    %2326 = vmatpush2.msra.mxu0 0.0
    %2327 = vmatprep.subr.mxu0 0.0
    %2328 = vmatpush2.msra.mxu0 0.0
    %2329 = vmatprep.subr.mxu0 0.0
    %2330 = vmatpush2.msra.mxu0 0.0
    %2331 = vmatprep.subr.mxu0 0.0
    %2332 = vmatpush2.msra.mxu0 0.0
    %2333 = vmatprep.subr.mxu0 0.0
    %2334 = vmatpush2.msra.mxu0 0.0
    %2335 = vmatprep.subr.mxu0 0.0
    %2336 = vmatpush2.msra.mxu0 0.0
    %2337 = vmatprep.subr.mxu0 0.0
    %2338 = vmatpush2.msra.mxu0 0.0
    %2339 = vmatprep.subr.mxu0 0.0
    %2340 = vmatpush2.msra.mxu0 0.0
    %2341 = vmatprep.subr.mxu0 0.0
    %2342 = vmatpush2.msra.mxu0 0.0
    %2343 = vmatprep.subr.mxu0 0.0
    %2344 = vmatpush2.msra.mxu0 0.0
    %2345 = vmatprep.subr.mxu0 0.0
    %2346 = vmatpush2.msra.mxu0 0.0
    %2347 = vmatprep.subr.mxu0 0.0
    %2348 = vmatpush2.msra.mxu0 0.0
    %2349 = vmatprep.subr.mxu0 0.0
    %2350 = vmatpush2.msra.mxu0 0.0
    %2351 = vmatprep.subr.mxu0 0.0
    %2352 = vmatpush2.msra.mxu0 0.0
    %2353 = vmatprep.subr.mxu0 0.0
    %2354 = vmatpush2.msra.mxu0 0.0
    %2355 = vmatprep.mubr.f32.mxu0 0.0
    %2356 = vmatmul.mubr.f32.gmra.mxu0 %v2289
    %v2357 = vpop.f32.mrf.mxu0
    %v2358 = vadd.f32 %v2287, %v2357
    %v2359 = vpop.f32.mrf.mxu0
    %2360 = vdwg.mxu0
    %v2361 = vsel %vm282, %v2358, 0.0
    %2362 = vadd.xlane.f32.xlu0 %v2361
    %v2363 = vpop.xlane.xlu0 %2362
    %v2364 = vrcp.pop 64.0
    %v2365 = vmul.f32 %v2363, %v2364
    %v2366 = vsub.f32 %v2358, %v2365
    %v2367 = vmul.f32 %v2366, %v2366
    %v2368 = vsel %vm282, %v2367, 0.0
    %2369 = vadd.xlane.f32.xlu0 %v2368
    %v2370 = vpop.xlane.xlu0 %2369
    %v2371 = vmul.f32 %v2370, %v2364
    %v2372 = vadd.f32 %v2371, 1e-05
    %v2373 = vrsqrt.pop %v2372
    %v2374 = vmul.f32 %v2366, %v2373
    %v2375 = vlaneseq
    %v2376 = vshrl.u32 %v2375, 7
    %v2377 = vsub.s32 3, %v2376
    %v2378 = vrot.slane %v2186, %v2377
    %v2379 = vmul.f32 %v2374, %v2378
    %v2380 = vlaneseq
    %v2381 = vshrl.u32 %v2380, 7
    %v2382 = vsub.s32 4, %v2381
    %v2383 = vrot.slane %v2186, %v2382
    %v2384 = vadd.f32 %v2379, %v2383
    %v2385 = vmul.f32 %v2384, 0.5
    %v2386 = vmul.f32 %v2384, 0.70710677
    %v2387 = verf.f32.pop %v2386
    %v2388 = vadd.f32 %v2387, 1.0
    %v2389 = vmul.f32 %v2385, %v2388
    %v2390 = vlaneseq
    %v2391 = vshrl.u32 %v2390, 7
    %v2392 = vsub.s32 1, %v2391
    %v2393 = vrot.slane %v2186, %v2392
    %v2394 = vmul.f32 %v2389, %v2393
    %v2395 = vsel %vm282, %v2394, 0.0
    %2396 = vadd.xlane.f32.xlu0 %v2395
    %v2397 = vpop.xlane.xlu0 %2396
    %v2398 = vadd.f32 %v2397, %v2203
    %v2399 = vxor.u32 %v2398, 2147483648
    %v2400 = vmul.f32 %v2399, 1.442695
    %v2401 = vpow.pop %v2400
    %v2402 = vadd.f32 %v2401, 1.0
    %v2403 = vrcp.pop %v2402
    %v2404 = vmul.f32 1.0, %v2403
    %2406 = vset.pattern.permute.xlu0 1
    %2407 = vperm.xlu0 %2406, %v2404
    %v2408 = vpop.permute.xlu0 %2407
    %v2410 = vmul.f32 %v2283, %v2408
    %v2412 = vsel %vm179, %v2410, 0
    %2414 = vmatprep.subr.mxu0 0.0
    %2415 = vmatpush1.msra.mxu0 0.0
    %2416 = vmatprep.subr.mxu0 0.0
    %2417 = vmatpush1.msra.mxu0 0.0
    %2418 = vmatprep.subr.mxu0 0.0
    %2419 = vmatpush1.msra.mxu0 0.0
    %2420 = vmatprep.subr.mxu0 0.0
    %2421 = vmatpush1.msra.mxu0 0.0
    %2422 = vmatprep.subr.mxu0 0.0
    %2423 = vmatpush1.msra.mxu0 0.0
    %2424 = vmatprep.subr.mxu0 0.0
    %2425 = vmatpush1.msra.mxu0 0.0
    %2426 = vmatprep.subr.mxu0 0.0
    %2427 = vmatpush1.msra.mxu0 0.0
    %2428 = vmatprep.subr.mxu0 0.0
    %2429 = vmatpush1.msra.mxu0 0.0
    %2430 = vmatprep.subr.mxu0 0.0
    %2431 = vmatpush1.msra.mxu0 %v2181
    %2432 = vmatprep.subr.mxu0 0.0
    %2433 = vmatpush1.msra.mxu0 %v2180
    %2434 = vmatprep.subr.mxu0 0.0
    %2435 = vmatpush1.msra.mxu0 %v2179
    %2436 = vmatprep.subr.mxu0 0.0
    %2437 = vmatpush1.msra.mxu0 %v2178
    %2438 = vmatprep.subr.mxu0 0.0
    %2439 = vmatpush1.msra.mxu0 %v2177
    %2440 = vmatprep.subr.mxu0 0.0
    %2441 = vmatpush1.msra.mxu0 %v2176
    %2442 = vmatprep.subr.mxu0 0.0
    %2443 = vmatpush1.msra.mxu0 %v2175
    %2444 = vmatprep.subr.mxu0 0.0
    %2445 = vmatpush1.msra.mxu0 %v2174
    %2446 = vmatprep.subr.mxu0 0.0
    %2447 = vmatpush2.msra.mxu0 0.0
    %2448 = vmatprep.subr.mxu0 0.0
    %2449 = vmatpush2.msra.mxu0 0.0
    %2450 = vmatprep.subr.mxu0 0.0
    %2451 = vmatpush2.msra.mxu0 0.0
    %2452 = vmatprep.subr.mxu0 0.0
    %2453 = vmatpush2.msra.mxu0 0.0
    %2454 = vmatprep.subr.mxu0 0.0
    %2455 = vmatpush2.msra.mxu0 0.0
    %2456 = vmatprep.subr.mxu0 0.0
    %2457 = vmatpush2.msra.mxu0 0.0
    %2458 = vmatprep.subr.mxu0 0.0
    %2459 = vmatpush2.msra.mxu0 0.0
    %2460 = vmatprep.subr.mxu0 0.0
    %2461 = vmatpush2.msra.mxu0 0.0
    %2462 = vmatprep.subr.mxu0 0.0
    %2463 = vmatpush2.msra.mxu0 0.0
    %2464 = vmatprep.subr.mxu0 0.0
    %2465 = vmatpush2.msra.mxu0 0.0
    %2466 = vmatprep.subr.mxu0 0.0
    %2467 = vmatpush2.msra.mxu0 0.0
    %2468 = vmatprep.subr.mxu0 0.0
    %2469 = vmatpush2.msra.mxu0 0.0
    %2470 = vmatprep.subr.mxu0 0.0
    %2471 = vmatpush2.msra.mxu0 0.0
    %2472 = vmatprep.subr.mxu0 0.0
    %2473 = vmatpush2.msra.mxu0 0.0
    %2474 = vmatprep.subr.mxu0 0.0
    %2475 = vmatpush2.msra.mxu0 0.0
    %2476 = vmatprep.subr.mxu0 0.0
    %2477 = vmatpush2.msra.mxu0 0.0
    %2478 = vmatprep.mubr.f32.mxu0 0.0
    %2479 = vmatmul.mubr.f32.gmra.mxu0 %v2412
    %v2480 = vpop.f32.mrf.mxu0
    %v2481 = vadd.f32 0.0, %v2480
    %v2482 = vpop.f32.mrf.mxu0
    %2483 = vdwg.mxu0
    %v2484 = vlaneseq
    %v2485 = vshrl.u32 %v2484, 7
    %v2486 = vsub.s32 5, %v2485
    %v2487 = vrot.slane %v2186, %v2486
    %v2488 = vadd.f32 %v2481, %v2487
    %vm2489 = vcmask 254976
    %v2490 = vsel %vm2489, %v2488, 0.0
    %2491 = vadd.xlane.f32.xlu0 %v2490
    %v2492 = vpop.xlane.xlu0 %2491
    %v2493 = vrcp.pop 32.0
    %v2494 = vmul.f32 %v2492, %v2493
    %v2495 = vsub.f32 %v2488, %v2494
    %v2496 = vmul.f32 %v2495, %v2495
    %v2497 = vsel %vm2489, %v2496, 0.0
    %2498 = vadd.xlane.f32.xlu0 %v2497
    %v2499 = vpop.xlane.xlu0 %2498
    %v2500 = vmul.f32 %v2499, %v2493
    %v2501 = vadd.f32 %v2500, 1e-05
    %v2502 = vrsqrt.pop %v2501
    %v2503 = vmul.f32 %v2495, %v2502
    %v2504 = vlaneseq
    %v2505 = vshrl.u32 %v2504, 7
    %v2506 = vsub.s32 6, %v2505
    %v2507 = vrot.slane %v2186, %v2506
    %v2508 = vmul.f32 %v2503, %v2507
    %v2509 = vlaneseq
    %v2510 = vshrl.u32 %v2509, 7
    %v2511 = vsub.s32 7, %v2510
    %v2512 = vrot.slane %v2186, %v2511
    %v2513 = vadd.f32 %v2508, %v2512
    %v2514 = vmul.f32 %v2513, 0.5
    %v2515 = vmul.f32 %v2513, 0.70710677
    %v2516 = verf.f32.pop %v2515
    %v2517 = vadd.f32 %v2516, 1.0
    %v2518 = vmul.f32 %v2514, %v2517
    %vm2519 = vcmask 261120
    %v2521 = vsel %vm2519, %v2518, 0
    %2523 = vmatprep.subr.mxu0 0.0
    %2524 = vmatpush1.msra.mxu0 0.0
    %2525 = vmatprep.subr.mxu0 0.0
    %2526 = vmatpush1.msra.mxu0 0.0
    %2527 = vmatprep.subr.mxu0 0.0
    %2528 = vmatpush1.msra.mxu0 0.0
    %2529 = vmatprep.subr.mxu0 0.0
    %2530 = vmatpush1.msra.mxu0 0.0
    %2531 = vmatprep.subr.mxu0 0.0
    %2532 = vmatpush1.msra.mxu0 0.0
    %2533 = vmatprep.subr.mxu0 0.0
    %2534 = vmatpush1.msra.mxu0 0.0
    %2535 = vmatprep.subr.mxu0 0.0
    %2536 = vmatpush1.msra.mxu0 0.0
    %2537 = vmatprep.subr.mxu0 0.0
    %2538 = vmatpush1.msra.mxu0 0.0
    %2539 = vmatprep.subr.mxu0 0.0
    %2540 = vmatpush1.msra.mxu0 0.0
    %2541 = vmatprep.subr.mxu0 0.0
    %2542 = vmatpush1.msra.mxu0 0.0
    %2543 = vmatprep.subr.mxu0 0.0
    %2544 = vmatpush1.msra.mxu0 0.0
    %2545 = vmatprep.subr.mxu0 0.0
    %2546 = vmatpush1.msra.mxu0 0.0
    %2547 = vmatprep.subr.mxu0 0.0
    %2548 = vmatpush1.msra.mxu0 %v2185
    %2549 = vmatprep.subr.mxu0 0.0
    %2550 = vmatpush1.msra.mxu0 %v2184
    %2551 = vmatprep.subr.mxu0 0.0
    %2552 = vmatpush1.msra.mxu0 %v2183
    %2553 = vmatprep.subr.mxu0 0.0
    %2554 = vmatpush1.msra.mxu0 %v2182
    %2555 = vmatprep.subr.mxu0 0.0
    %2556 = vmatpush2.msra.mxu0 0.0
    %2557 = vmatprep.subr.mxu0 0.0
    %2558 = vmatpush2.msra.mxu0 0.0
    %2559 = vmatprep.subr.mxu0 0.0
    %2560 = vmatpush2.msra.mxu0 0.0
    %2561 = vmatprep.subr.mxu0 0.0
    %2562 = vmatpush2.msra.mxu0 0.0
    %2563 = vmatprep.subr.mxu0 0.0
    %2564 = vmatpush2.msra.mxu0 0.0
    %2565 = vmatprep.subr.mxu0 0.0
    %2566 = vmatpush2.msra.mxu0 0.0
    %2567 = vmatprep.subr.mxu0 0.0
    %2568 = vmatpush2.msra.mxu0 0.0
    %2569 = vmatprep.subr.mxu0 0.0
    %2570 = vmatpush2.msra.mxu0 0.0
    %2571 = vmatprep.subr.mxu0 0.0
    %2572 = vmatpush2.msra.mxu0 0.0
    %2573 = vmatprep.subr.mxu0 0.0
    %2574 = vmatpush2.msra.mxu0 0.0
    %2575 = vmatprep.subr.mxu0 0.0
    %2576 = vmatpush2.msra.mxu0 0.0
    %2577 = vmatprep.subr.mxu0 0.0
    %2578 = vmatpush2.msra.mxu0 0.0
    %2579 = vmatprep.subr.mxu0 0.0
    %2580 = vmatpush2.msra.mxu0 0.0
    %2581 = vmatprep.subr.mxu0 0.0
    %2582 = vmatpush2.msra.mxu0 0.0
    %2583 = vmatprep.subr.mxu0 0.0
    %2584 = vmatpush2.msra.mxu0 0.0
    %2585 = vmatprep.subr.mxu0 0.0
    %2586 = vmatpush2.msra.mxu0 0.0
    %2587 = vmatprep.mubr.f32.mxu0 0.0
    %2588 = vmatmul.mubr.f32.gmra.mxu0 %v2521
    %v2589 = vpop.f32.mrf.mxu0
    %v2590 = vadd.f32 0.0, %v2589
    %v2591 = vpop.f32.mrf.mxu0
    %2592 = vdwg.mxu0
    %v2593 = vlaneseq
    %v2594 = vshrl.u32 %v2593, 7
    %v2595 = vsub.s32 0, %v2594
    %v2596 = vrot.slane %v2187, %v2595
    %v2597 = vadd.f32 %v2590, %v2596
    %vm2598 = vcmask 123904
    %v2599 = vsel %vm2598, %v2597, 0.0
    %2600 = vadd.xlane.f32.xlu0 %v2599
    %v2601 = vpop.xlane.xlu0 %2600
    %v2602 = vrcp.pop 16.0
    %v2603 = vmul.f32 %v2601, %v2602
    %v2604 = vsub.f32 %v2597, %v2603
    %v2605 = vmul.f32 %v2604, %v2604
    %v2606 = vsel %vm2598, %v2605, 0.0
    %2607 = vadd.xlane.f32.xlu0 %v2606
    %v2608 = vpop.xlane.xlu0 %2607
    %v2609 = vmul.f32 %v2608, %v2602
    %v2610 = vadd.f32 %v2609, 1e-05
    %v2611 = vrsqrt.pop %v2610
    %v2612 = vmul.f32 %v2604, %v2611
    %v2613 = vlaneseq
    %v2614 = vshrl.u32 %v2613, 7
    %v2615 = vsub.s32 1, %v2614
    %v2616 = vrot.slane %v2187, %v2615
    %v2617 = vmul.f32 %v2612, %v2616
    %v2618 = vlaneseq
    %v2619 = vshrl.u32 %v2618, 7
    %v2620 = vsub.s32 2, %v2619
    %v2621 = vrot.slane %v2187, %v2620
    %v2622 = vadd.f32 %v2617, %v2621
    %v2623 = vmul.f32 %v2622, 0.5
    %v2624 = vmul.f32 %v2622, 0.70710677
    %v2625 = verf.f32.pop %v2624
    %v2626 = vadd.f32 %v2625, 1.0
    %v2627 = vmul.f32 %v2623, %v2626
    %2628 = vst.msk [vmem:[#allocation6] sm:$0x3] %vm2598, %v2627
    // Predicated region
    $region14: #{lstm_branch_forward.1} parent=1 // pred_check
      _
    $region15: #{lstm_branch_forward.1} parent=1 // pred_check_branch
      %2630 = sbr.rel (0) target = $region17
    $region16: #{lstm_branch_forward.1} parent=1 // pred_region
      %s2632 = ssub.s32 32, 32
      %2633 = vsyncadd [#allocation7], %s2632
      %s2635 = sshll.u32 [#allocation6], 4
      %s2636 = int_to_ptr.vmem [resolvable:$true] %s2635
      %2638 = dma.vmem_to_hbm [thread:$0]  %s2636, 32, %s3, [#allocation7]
    $region17: #{lstm_branch_forward.1} parent=1 // pred_fallthru
      _
    // Predicated region
    $region18: #{lstm_branch_forward.1} parent=1 // pred_check
      _
    $region19: #{lstm_branch_forward.1} parent=1 // pred_check_branch
      %2640 = sbr.rel (0) target = $region21
    $region20: #{lstm_branch_forward.1} parent=1 // pred_region
      %2641 = dma.done [#allocation7], 32
    $region21: #{lstm_branch_forward.1} parent=1 // pred_fallthru
      _
    %2642 = vsyncpa [#allocation7], 1

</llo_original>
